<compile_context>
chip_gen: v6e
topology: v6e:2x2x1
jax: 0.10.0
libtpu: 0.0.40
codegen_flags: <defaults>
</compile_context>

<pallas_src>
import functools

import jax
import jax.numpy as jnp
import numpy as np
from jax import lax
from jax.experimental import pallas as pl
from jax.experimental.pallas import tpu as pltpu


def _deep_basic_block_kernel(x_ref, w1_ref, b1_ref, w2_ref, b2_ref, out_ref):
    """conv3x3 -> BN -> ReLU -> conv3x3 -> BN -> +identity -> ReLU for one (batch, row-block).

    x_ref  : (H+4, W+2, Cin)   bf16  whole zero-padded image for this batch element
                                     (resident in VMEM across all row blocks of the image)
    w1_ref : (9, Cin, Cout)    bf16  conv1 weights (taps flattened, BN1 scale pre-folded)
    b1_ref : (1, Cout)         f32   folded BN1 shift
    w2_ref : (9, Cout, Cout)   bf16  conv2 weights (taps flattened, BN2 scale pre-folded)
    b2_ref : (1, Cout)         f32   folded BN2 shift
    out_ref: (TH, W, Cout)     f32   output rows of this row block
    """
    TH, W, Cout = out_ref.shape
    r0 = pl.program_id(1) * TH                     # first output image row of this block
    h_total = pl.num_programs(1) * TH              # total image rows

    # ---- conv1 (+ folded BN1 scale): 9 bf16 MXU matmuls, f32 accumulation -----------------
    # out1 covers image rows r0-1 .. r0+TH (TH+2 rows: one halo row above/below for conv2).
    acc1 = None
    for kh in range(3):
        xrow = x_ref[pl.ds(r0 + kh, TH + 2)]       # (TH+2, W+2, Cin) bf16 window for this kh
        for kw in range(3):
            t = lax.dot_general(xrow[:, kw:kw + W, :], w1_ref[kh * 3 + kw],
                                (((2,), (0,)), ((), ())),
                                preferred_element_type=jnp.float32)
            acc1 = t if acc1 is None else acc1 + t

    out1 = jnp.maximum(acc1 + b1_ref[...], 0.0)    # BN1 shift + ReLU   (f32, (TH+2, W, Cout))

    # Rows of out1 that fall outside the image are conv2's zero padding: zero them with an
    # iota row mask (VALU) instead of re-materializing the tile through a concat.
    row = lax.broadcasted_iota(jnp.int32, (TH + 2, 1, 1), 0)
    keep = jnp.logical_and(jnp.logical_or(row != 0, r0 > 0),
                           jnp.logical_or(row != TH + 1, r0 + TH < h_total))
    out1 = jnp.where(keep, out1, 0.0).astype(jnp.bfloat16)   # cast once, before any copies

    # ---- conv2 (+ folded BN2 scale): zero column padding via two bf16 shifted views --------
    zcol = jnp.zeros((TH + 2, 1, Cout), jnp.bfloat16)
    o1_cols = (
        jnp.concatenate([zcol, out1[:, :W - 1, :]], axis=1),   # input column w-1 (kw = 0)
        out1,                                                   # input column w   (kw = 1)
        jnp.concatenate([out1[:, 1:, :], zcol], axis=1),        # input column w+1 (kw = 2)
    )
    acc2 = None
    for kh in range(3):
        for kw in range(3):
            t = lax.dot_general(o1_cols[kw][kh:kh + TH], w2_ref[kh * 3 + kw],
                                (((2,), (0,)), ((), ())),
                                preferred_element_type=jnp.float32)
            acc2 = t if acc2 is None else acc2 + t

    # BN2 shift + residual (identity re-read from the resident input ref, upcast) + ReLU.
    identity = x_ref[pl.ds(r0 + 2, TH), pl.ds(1, W), :].astype(jnp.float32)
    out_ref[...] = jnp.maximum(acc2 + b2_ref[...] + identity, 0.0)


def _fold_bn(gamma, beta, mean, var, eps=1e-5):
    scale = gamma / jnp.sqrt(var + eps)
    shift = (beta - mean * scale).astype(jnp.float32).reshape(1, -1)
    return scale.astype(jnp.float32), shift


def _prep_conv_weight(w_oihw, scale):
    # torch OIHW (O, I, 3, 3) -> HWIO (3, 3, I, O); fold the BN scale over the output-channel
    # axis in f32 (before the bf16 cast); flatten the 3x3 taps for single-int ref indexing.
    w = jnp.transpose(w_oihw, (2, 3, 1, 0)).astype(jnp.float32) * scale[None, None, None, :]
    return w.reshape(9, w.shape[2], w.shape[3]).astype(jnp.bfloat16)


@functools.partial(jax.jit, static_argnames=("row_block",))
def deep_basic_block(x_nchw, params, *, row_block=None):
    """x_nchw: (N, C, H, W) float32.  stride=1, downsample=None, in_planes == planes."""
    x = jnp.transpose(x_nchw, (0, 2, 3, 1))                       # NCHW -> NHWC
    N, H, W, Cin = x.shape
    P = params["w1"].shape[0]
    if P != Cin:
        raise NotImplementedError("channel change / downsample branch not supported")

    if row_block is None:
        # Bigger tiles amortize per-step overhead; shrink for very large images / v7x VMEM.
        row_block = next((t for t in (64, 32, 16, 8) if H % t == 0), H)
    TH = int(row_block)
    assert H % TH == 0, "row_block must divide H"
    NB = H // TH

    s1, b1 = _fold_bn(params["bn1_gamma"], params["bn1_beta"],
                      params["bn1_mean"], params["bn1_var"])
    s2, b2 = _fold_bn(params["bn2_gamma"], params["bn2_beta"],
                      params["bn2_mean"], params["bn2_var"])
    w1r = _prep_conv_weight(params["w1"], s1)
    w2r = _prep_conv_weight(params["w2"], s2)

    # bf16 activations (halves input HBM traffic); spatial zero halo only -- channels stay at
    # the true count in HBM (no 128-lane padding pass, no overlapping-block stacking).
    xpad = jnp.pad(x.astype(jnp.bfloat16), ((0, 0), (2, 2), (1, 1), (0, 0)))

    out = pl.pallas_call(
        _deep_basic_block_kernel,
        grid=(N, NB),
        in_specs=[
            # Whole padded image per batch element: the block index depends only on the batch
            # grid axis, so Pallas keeps it resident in VMEM across the inner row-block axis
            # and fetches it from HBM once per image.  Row windows are sliced in-kernel.
            pl.BlockSpec((None, H + 4, W + 2, Cin), lambda n, r: (n, 0, 0, 0)),
            # Constant operands (fetched once).  TODO(synk): for large C, single-buffer these
            # (pipeline_mode=pl.Buffered(1)) to halve their VMEM cost on v7x.
            pl.BlockSpec((9, Cin, P), lambda n, r: (0, 0, 0)),
            pl.BlockSpec((1, P), lambda n, r: (0, 0)),
            pl.BlockSpec((9, P, P), lambda n, r: (0, 0, 0)),
            pl.BlockSpec((1, P), lambda n, r: (0, 0)),
        ],
        out_specs=pl.BlockSpec((None, TH, W, P), lambda n, r: (n, r, 0, 0)),
        out_shape=jax.ShapeDtypeStruct((N, H, W, P), jnp.float32),
        compiler_params=pltpu.CompilerParams(
            dimension_semantics=("parallel", "parallel"),   # megacore sharding on v7x
            # Safe on all generations for these tiles; raise (to ~100 MiB) on v5e/v6e for
            # larger row blocks, keep <= ~48 MiB usable on v7x.
            vmem_limit_bytes=32 * 1024 * 1024),
    )(xpad, w1r, b1, w2r, b2)

    return jnp.transpose(out, (0, 3, 1, 2))                       # NHWC -> NCHW


def _reference_forward(x_nchw, params):
    """Pure-JAX (XLA, float32) reference of the same forward pass, for verification."""
    x = jnp.transpose(x_nchw, (0, 2, 3, 1))
    w1 = jnp.transpose(params["w1"], (2, 3, 1, 0))
    w2 = jnp.transpose(params["w2"], (2, 3, 1, 0))
    dn = ("NHWC", "HWIO", "NHWC")

    def bn(y, g, b, m, v, eps=1e-5):
        return (y - m) / jnp.sqrt(v + eps) * g + b

    out = lax.conv_general_dilated(x, w1, (1, 1), "SAME", dimension_numbers=dn)
    out = bn(out, params["bn1_gamma"], params["bn1_beta"],
             params["bn1_mean"], params["bn1_var"])
    out = jnp.maximum(out, 0.0)
    out = lax.conv_general_dilated(out, w2, (1, 1), "SAME", dimension_numbers=dn)
    out = bn(out, params["bn2_gamma"], params["bn2_beta"],
             params["bn2_mean"], params["bn2_var"])
    out = out + x
    out = jnp.maximum(out, 0.0)
    return jnp.transpose(out, (0, 3, 1, 2))


def _init_params(key, in_planes, planes):
    ks = jax.random.split(key, 10)
    return {
        "w1": jax.random.normal(ks[0], (planes, in_planes, 3, 3), jnp.float32) * 0.1,
        "w2": jax.random.normal(ks[1], (planes, planes, 3, 3), jnp.float32) * 0.1,
        "bn1_gamma": jax.random.uniform(ks[2], (planes,), jnp.float32, 0.5, 1.5),
        "bn1_beta": jax.random.normal(ks[3], (planes,), jnp.float32) * 0.1,
        "bn1_mean": jax.random.normal(ks[4], (planes,), jnp.float32) * 0.1,
        "bn1_var": jax.random.uniform(ks[5], (planes,), jnp.float32, 0.5, 1.5),
        "bn2_gamma": jax.random.uniform(ks[6], (planes,), jnp.float32, 0.5, 1.5),
        "bn2_beta": jax.random.normal(ks[7], (planes,), jnp.float32) * 0.1,
        "bn2_mean": jax.random.normal(ks[8], (planes,), jnp.float32) * 0.1,
        "bn2_var": jax.random.uniform(ks[9], (planes,), jnp.float32, 0.5, 1.5),
    }


if __name__ == "__main__":
    key = jax.random.PRNGKey(0)
    k_x, k_p = jax.random.split(key)

    N, C, H, W = 2, 8, 16, 16          # in_planes == planes == 8, stride=1, downsample=None
    x = jax.random.normal(k_x, (N, C, H, W), jnp.float32)
    params = _init_params(k_p, in_planes=C, planes=C)

    # row_block=8 -> 2 row blocks per image: exercises the halo / multi-block path.
    out = jax.block_until_ready(deep_basic_block(x, params, row_block=8))
    ref = jax.block_until_ready(_reference_forward(x, params))

    # bf16 MXU operands + bf16-quantized activations/identity (f32 accumulation) -> slightly
    # looser tolerance than a pure-f32 run.
    np.testing.assert_allclose(np.asarray(out), np.asarray(ref), rtol=2e-2, atol=3e-2)

    print("KERNEL_OK")
</pallas_src>

<mosaic_0001>
module attributes {stable_mosaic.version = 11 : i64} {
  func.func @_deep_basic_block_kernel(%arg0: i32, %arg1: i32, %arg2: memref<1x20x18x8xbf16, #tpu.memory_space<vmem>>, %arg3: memref<9x8x8xbf16, #tpu.memory_space<vmem>>, %arg4: memref<1x8xf32, #tpu.memory_space<vmem>>, %arg5: memref<9x8x8xbf16, #tpu.memory_space<vmem>>, %arg6: memref<1x8xf32, #tpu.memory_space<vmem>>, %arg7: memref<1x8x16x8xf32, #tpu.memory_space<vmem>>) attributes {dimension_semantics = [#tpu.dimension_semantics<parallel>, #tpu.dimension_semantics<parallel>], iteration_bounds = array<i64: 2, 2>, scalar_prefetch = 0 : i64, scratch_operands = 0 : i64, tpu.core_type = #tpu.core_type<tc>, window_params = [{transform_indices = @transform_0, window_bounds = array<i64: 1, 20, 18, 8>}, {pipeline_mode = #tpu.pipeline_mode<synchronous>, transform_indices = @transform_1, window_bounds = array<i64: 9, 8, 8>}, {pipeline_mode = #tpu.pipeline_mode<synchronous>, transform_indices = @transform_2, window_bounds = array<i64: 1, 8>}, {pipeline_mode = #tpu.pipeline_mode<synchronous>, transform_indices = @transform_3, window_bounds = array<i64: 9, 8, 8>}, {pipeline_mode = #tpu.pipeline_mode<synchronous>, transform_indices = @transform_4, window_bounds = array<i64: 1, 8>}, {transform_indices = @transform_5, window_bounds = array<i64: 1, 8, 16, 8>}]} {
    %c8_i32 = arith.constant 8 : i32
    %0 = arith.muli %arg1, %c8_i32 : i32
    %c0_i32 = arith.constant 0 : i32
    %1 = arith.addi %0, %c0_i32 : i32
    %c0 = arith.constant 0 : index
    %2 = arith.index_cast %1 : i32 to index
    %c0_0 = arith.constant 0 : index
    %c0_1 = arith.constant 0 : index
    %3 = vector.load %arg2[%c0, %2, %c0_0, %c0_1] : memref<1x20x18x8xbf16, #tpu.memory_space<vmem>>, vector<1x10x18x8xbf16>
    %4 = vector.shape_cast %3 : vector<1x10x18x8xbf16> to vector<10x18x8xbf16>
    %5 = vector.extract_strided_slice %4 {offsets = [0, 0, 0], sizes = [10, 16, 8], strides = [1, 1, 1]} : vector<10x18x8xbf16> to vector<10x16x8xbf16>
    %c0_2 = arith.constant 0 : index
    %c0_3 = arith.constant 0 : index
    %c0_4 = arith.constant 0 : index
    %6 = vector.load %arg3[%c0_2, %c0_3, %c0_4] : memref<9x8x8xbf16, #tpu.memory_space<vmem>>, vector<1x8x8xbf16>
    %7 = vector.shape_cast %6 : vector<1x8x8xbf16> to vector<8x8xbf16>
    %cst = arith.constant dense<0.000000e+00> : vector<10x16x8xf32>
    %8 = tpu.matmul %5, %7, %cst {dimension_numbers = #tpu.dot_dimension_numbers<[2], [0], [0, 1], [1], [0, 0, 0, 1, 1, 1], [], []>} : vector<10x16x8xbf16>, vector<8x8xbf16>, vector<10x16x8xf32> -> vector<10x16x8xf32>
    %9 = vector.extract_strided_slice %4 {offsets = [0, 1, 0], sizes = [10, 16, 8], strides = [1, 1, 1]} : vector<10x18x8xbf16> to vector<10x16x8xbf16>
    %c1 = arith.constant 1 : index
    %c0_5 = arith.constant 0 : index
    %c0_6 = arith.constant 0 : index
    %10 = vector.load %arg3[%c1, %c0_5, %c0_6] : memref<9x8x8xbf16, #tpu.memory_space<vmem>>, vector<1x8x8xbf16>
    %11 = vector.shape_cast %10 : vector<1x8x8xbf16> to vector<8x8xbf16>
    %cst_7 = arith.constant dense<0.000000e+00> : vector<10x16x8xf32>
    %12 = tpu.matmul %9, %11, %cst_7 {dimension_numbers = #tpu.dot_dimension_numbers<[2], [0], [0, 1], [1], [0, 0, 0, 1, 1, 1], [], []>} : vector<10x16x8xbf16>, vector<8x8xbf16>, vector<10x16x8xf32> -> vector<10x16x8xf32>
    %13 = arith.addf %8, %12 : vector<10x16x8xf32>
    %14 = vector.extract_strided_slice %4 {offsets = [0, 2, 0], sizes = [10, 16, 8], strides = [1, 1, 1]} : vector<10x18x8xbf16> to vector<10x16x8xbf16>
    %c2 = arith.constant 2 : index
    %c0_8 = arith.constant 0 : index
    %c0_9 = arith.constant 0 : index
    %15 = vector.load %arg3[%c2, %c0_8, %c0_9] : memref<9x8x8xbf16, #tpu.memory_space<vmem>>, vector<1x8x8xbf16>
    %16 = vector.shape_cast %15 : vector<1x8x8xbf16> to vector<8x8xbf16>
    %cst_10 = arith.constant dense<0.000000e+00> : vector<10x16x8xf32>
    %17 = tpu.matmul %14, %16, %cst_10 {dimension_numbers = #tpu.dot_dimension_numbers<[2], [0], [0, 1], [1], [0, 0, 0, 1, 1, 1], [], []>} : vector<10x16x8xbf16>, vector<8x8xbf16>, vector<10x16x8xf32> -> vector<10x16x8xf32>
    %18 = arith.addf %13, %17 : vector<10x16x8xf32>
    %c1_i32 = arith.constant 1 : i32
    %19 = arith.addi %0, %c1_i32 : i32
    %c0_11 = arith.constant 0 : index
    %20 = arith.index_cast %19 : i32 to index
    %c0_12 = arith.constant 0 : index
    %c0_13 = arith.constant 0 : index
    %21 = vector.load %arg2[%c0_11, %20, %c0_12, %c0_13] : memref<1x20x18x8xbf16, #tpu.memory_space<vmem>>, vector<1x10x18x8xbf16>
    %22 = vector.shape_cast %21 : vector<1x10x18x8xbf16> to vector<10x18x8xbf16>
    %23 = vector.extract_strided_slice %22 {offsets = [0, 0, 0], sizes = [10, 16, 8], strides = [1, 1, 1]} : vector<10x18x8xbf16> to vector<10x16x8xbf16>
    %c3 = arith.constant 3 : index
    %c0_14 = arith.constant 0 : index
    %c0_15 = arith.constant 0 : index
    %24 = vector.load %arg3[%c3, %c0_14, %c0_15] : memref<9x8x8xbf16, #tpu.memory_space<vmem>>, vector<1x8x8xbf16>
    %25 = vector.shape_cast %24 : vector<1x8x8xbf16> to vector<8x8xbf16>
    %cst_16 = arith.constant dense<0.000000e+00> : vector<10x16x8xf32>
    %26 = tpu.matmul %23, %25, %cst_16 {dimension_numbers = #tpu.dot_dimension_numbers<[2], [0], [0, 1], [1], [0, 0, 0, 1, 1, 1], [], []>} : vector<10x16x8xbf16>, vector<8x8xbf16>, vector<10x16x8xf32> -> vector<10x16x8xf32>
    %27 = arith.addf %18, %26 : vector<10x16x8xf32>
    %28 = vector.extract_strided_slice %22 {offsets = [0, 1, 0], sizes = [10, 16, 8], strides = [1, 1, 1]} : vector<10x18x8xbf16> to vector<10x16x8xbf16>
    %c4 = arith.constant 4 : index
    %c0_17 = arith.constant 0 : index
    %c0_18 = arith.constant 0 : index
    %29 = vector.load %arg3[%c4, %c0_17, %c0_18] : memref<9x8x8xbf16, #tpu.memory_space<vmem>>, vector<1x8x8xbf16>
    %30 = vector.shape_cast %29 : vector<1x8x8xbf16> to vector<8x8xbf16>
    %cst_19 = arith.constant dense<0.000000e+00> : vector<10x16x8xf32>
    %31 = tpu.matmul %28, %30, %cst_19 {dimension_numbers = #tpu.dot_dimension_numbers<[2], [0], [0, 1], [1], [0, 0, 0, 1, 1, 1], [], []>} : vector<10x16x8xbf16>, vector<8x8xbf16>, vector<10x16x8xf32> -> vector<10x16x8xf32>
    %32 = arith.addf %27, %31 : vector<10x16x8xf32>
    %33 = vector.extract_strided_slice %22 {offsets = [0, 2, 0], sizes = [10, 16, 8], strides = [1, 1, 1]} : vector<10x18x8xbf16> to vector<10x16x8xbf16>
    %c5 = arith.constant 5 : index
    %c0_20 = arith.constant 0 : index
    %c0_21 = arith.constant 0 : index
    %34 = vector.load %arg3[%c5, %c0_20, %c0_21] : memref<9x8x8xbf16, #tpu.memory_space<vmem>>, vector<1x8x8xbf16>
    %35 = vector.shape_cast %34 : vector<1x8x8xbf16> to vector<8x8xbf16>
    %cst_22 = arith.constant dense<0.000000e+00> : vector<10x16x8xf32>
    %36 = tpu.matmul %33, %35, %cst_22 {dimension_numbers = #tpu.dot_dimension_numbers<[2], [0], [0, 1], [1], [0, 0, 0, 1, 1, 1], [], []>} : vector<10x16x8xbf16>, vector<8x8xbf16>, vector<10x16x8xf32> -> vector<10x16x8xf32>
    %37 = arith.addf %32, %36 : vector<10x16x8xf32>
    %c2_i32 = arith.constant 2 : i32
    %38 = arith.addi %0, %c2_i32 : i32
    %c0_23 = arith.constant 0 : index
    %39 = arith.index_cast %38 : i32 to index
    %c0_24 = arith.constant 0 : index
    %c0_25 = arith.constant 0 : index
    %40 = vector.load %arg2[%c0_23, %39, %c0_24, %c0_25] : memref<1x20x18x8xbf16, #tpu.memory_space<vmem>>, vector<1x10x18x8xbf16>
    %41 = vector.shape_cast %40 : vector<1x10x18x8xbf16> to vector<10x18x8xbf16>
    %42 = vector.extract_strided_slice %41 {offsets = [0, 0, 0], sizes = [10, 16, 8], strides = [1, 1, 1]} : vector<10x18x8xbf16> to vector<10x16x8xbf16>
    %c6 = arith.constant 6 : index
    %c0_26 = arith.constant 0 : index
    %c0_27 = arith.constant 0 : index
    %43 = vector.load %arg3[%c6, %c0_26, %c0_27] : memref<9x8x8xbf16, #tpu.memory_space<vmem>>, vector<1x8x8xbf16>
    %44 = vector.shape_cast %43 : vector<1x8x8xbf16> to vector<8x8xbf16>
    %cst_28 = arith.constant dense<0.000000e+00> : vector<10x16x8xf32>
    %45 = tpu.matmul %42, %44, %cst_28 {dimension_numbers = #tpu.dot_dimension_numbers<[2], [0], [0, 1], [1], [0, 0, 0, 1, 1, 1], [], []>} : vector<10x16x8xbf16>, vector<8x8xbf16>, vector<10x16x8xf32> -> vector<10x16x8xf32>
    %46 = arith.addf %37, %45 : vector<10x16x8xf32>
    %47 = vector.extract_strided_slice %41 {offsets = [0, 1, 0], sizes = [10, 16, 8], strides = [1, 1, 1]} : vector<10x18x8xbf16> to vector<10x16x8xbf16>
    %c7 = arith.constant 7 : index
    %c0_29 = arith.constant 0 : index
    %c0_30 = arith.constant 0 : index
    %48 = vector.load %arg3[%c7, %c0_29, %c0_30] : memref<9x8x8xbf16, #tpu.memory_space<vmem>>, vector<1x8x8xbf16>
    %49 = vector.shape_cast %48 : vector<1x8x8xbf16> to vector<8x8xbf16>
    %cst_31 = arith.constant dense<0.000000e+00> : vector<10x16x8xf32>
    %50 = tpu.matmul %47, %49, %cst_31 {dimension_numbers = #tpu.dot_dimension_numbers<[2], [0], [0, 1], [1], [0, 0, 0, 1, 1, 1], [], []>} : vector<10x16x8xbf16>, vector<8x8xbf16>, vector<10x16x8xf32> -> vector<10x16x8xf32>
    %51 = arith.addf %46, %50 : vector<10x16x8xf32>
    %52 = vector.extract_strided_slice %41 {offsets = [0, 2, 0], sizes = [10, 16, 8], strides = [1, 1, 1]} : vector<10x18x8xbf16> to vector<10x16x8xbf16>
    %c8 = arith.constant 8 : index
    %c0_32 = arith.constant 0 : index
    %c0_33 = arith.constant 0 : index
    %53 = vector.load %arg3[%c8, %c0_32, %c0_33] : memref<9x8x8xbf16, #tpu.memory_space<vmem>>, vector<1x8x8xbf16>
    %54 = vector.shape_cast %53 : vector<1x8x8xbf16> to vector<8x8xbf16>
    %cst_34 = arith.constant dense<0.000000e+00> : vector<10x16x8xf32>
    %55 = tpu.matmul %52, %54, %cst_34 {dimension_numbers = #tpu.dot_dimension_numbers<[2], [0], [0, 1], [1], [0, 0, 0, 1, 1, 1], [], []>} : vector<10x16x8xbf16>, vector<8x8xbf16>, vector<10x16x8xf32> -> vector<10x16x8xf32>
    %56 = arith.addf %51, %55 : vector<10x16x8xf32>
    %c0_35 = arith.constant 0 : index
    %c0_36 = arith.constant 0 : index
    %57 = vector.load %arg4[%c0_35, %c0_36] : memref<1x8xf32, #tpu.memory_space<vmem>>, vector<1x8xf32>
    %58 = vector.shape_cast %57 : vector<1x8xf32> to vector<1x1x8xf32>
    %59 = vector.broadcast %58 : vector<1x1x8xf32> to vector<10x16x8xf32>
    %60 = arith.addf %56, %59 : vector<10x16x8xf32>
    %cst_37 = arith.constant 0.000000e+00 : f32
    %61 = vector.broadcast %cst_37 : f32 to vector<10x16x8xf32>
    %62 = arith.maximumf %60, %61 : vector<10x16x8xf32>
    %63 = tpu.iota {dimensions = array<i32: 0>} : vector<10x1x1xi32>
    %c0_i32_38 = arith.constant 0 : i32
    %64 = vector.broadcast %c0_i32_38 : i32 to vector<10x1x1xi32>
    %65 = arith.cmpi ne, %63, %64 : vector<10x1x1xi32>
    %c0_i32_39 = arith.constant 0 : i32
    %66 = arith.cmpi sgt, %0, %c0_i32_39 : i32
    %67 = vector.broadcast %66 : i1 to vector<10x1x1xi1>
    %68 = arith.ori %65, %67 : vector<10x1x1xi1>
    %c9_i32 = arith.constant 9 : i32
    %69 = vector.broadcast %c9_i32 : i32 to vector<10x1x1xi32>
    %70 = arith.cmpi ne, %63, %69 : vector<10x1x1xi32>
    %c8_i32_40 = arith.constant 8 : i32
    %71 = arith.addi %0, %c8_i32_40 : i32
    %c16_i32 = arith.constant 16 : i32
    %72 = arith.cmpi slt, %71, %c16_i32 : i32
    %73 = vector.broadcast %72 : i1 to vector<10x1x1xi1>
    %74 = arith.ori %70, %73 : vector<10x1x1xi1>
    %75 = arith.andi %68, %74 : vector<10x1x1xi1>
    %cst_41 = arith.constant 0.000000e+00 : f32
    %76 = vector.shape_cast %75 : vector<10x1x1xi1> to vector<10x1x1xi1>
    %77 = vector.broadcast %76 : vector<10x1x1xi1> to vector<10x16x8xi1>
    %78 = vector.broadcast %cst_41 : f32 to vector<10x16x8xf32>
    %79 = arith.select %77, %62, %78 : vector<10x16x8xi1>, vector<10x16x8xf32>
    %80 = arith.truncf %79 : vector<10x16x8xf32> to vector<10x16x8xbf16>
    %cst_42 = arith.constant 0.000000e+00 : bf16
    %81 = vector.broadcast %cst_42 : bf16 to vector<10x1x8xbf16>
    %82 = vector.extract_strided_slice %80 {offsets = [0, 0, 0], sizes = [10, 15, 8], strides = [1, 1, 1]} : vector<10x16x8xbf16> to vector<10x15x8xbf16>
    %83 = tpu.concatenate %81, %82 in 1 : vector<10x1x8xbf16>, vector<10x15x8xbf16> -> vector<10x16x8xbf16>
    %84 = vector.extract_strided_slice %80 {offsets = [0, 1, 0], sizes = [10, 15, 8], strides = [1, 1, 1]} : vector<10x16x8xbf16> to vector<10x15x8xbf16>
    %85 = tpu.concatenate %84, %81 in 1 : vector<10x15x8xbf16>, vector<10x1x8xbf16> -> vector<10x16x8xbf16>
    %86 = vector.extract_strided_slice %83 {offsets = [0, 0, 0], sizes = [8, 16, 8], strides = [1, 1, 1]} : vector<10x16x8xbf16> to vector<8x16x8xbf16>
    %c0_43 = arith.constant 0 : index
    %c0_44 = arith.constant 0 : index
    %c0_45 = arith.constant 0 : index
    %87 = vector.load %arg5[%c0_43, %c0_44, %c0_45] : memref<9x8x8xbf16, #tpu.memory_space<vmem>>, vector<1x8x8xbf16>
    %88 = vector.shape_cast %87 : vector<1x8x8xbf16> to vector<8x8xbf16>
    %cst_46 = arith.constant dense<0.000000e+00> : vector<8x16x8xf32>
    %89 = tpu.matmul %86, %88, %cst_46 {dimension_numbers = #tpu.dot_dimension_numbers<[2], [0], [0, 1], [1], [0, 0, 0, 1, 1, 1], [], []>} : vector<8x16x8xbf16>, vector<8x8xbf16>, vector<8x16x8xf32> -> vector<8x16x8xf32>
    %90 = vector.extract_strided_slice %80 {offsets = [0, 0, 0], sizes = [8, 16, 8], strides = [1, 1, 1]} : vector<10x16x8xbf16> to vector<8x16x8xbf16>
    %c1_47 = arith.constant 1 : index
    %c0_48 = arith.constant 0 : index
    %c0_49 = arith.constant 0 : index
    %91 = vector.load %arg5[%c1_47, %c0_48, %c0_49] : memref<9x8x8xbf16, #tpu.memory_space<vmem>>, vector<1x8x8xbf16>
    %92 = vector.shape_cast %91 : vector<1x8x8xbf16> to vector<8x8xbf16>
    %cst_50 = arith.constant dense<0.000000e+00> : vector<8x16x8xf32>
    %93 = tpu.matmul %90, %92, %cst_50 {dimension_numbers = #tpu.dot_dimension_numbers<[2], [0], [0, 1], [1], [0, 0, 0, 1, 1, 1], [], []>} : vector<8x16x8xbf16>, vector<8x8xbf16>, vector<8x16x8xf32> -> vector<8x16x8xf32>
    %94 = arith.addf %89, %93 : vector<8x16x8xf32>
    %95 = vector.extract_strided_slice %85 {offsets = [0, 0, 0], sizes = [8, 16, 8], strides = [1, 1, 1]} : vector<10x16x8xbf16> to vector<8x16x8xbf16>
    %c2_51 = arith.constant 2 : index
    %c0_52 = arith.constant 0 : index
    %c0_53 = arith.constant 0 : index
    %96 = vector.load %arg5[%c2_51, %c0_52, %c0_53] : memref<9x8x8xbf16, #tpu.memory_space<vmem>>, vector<1x8x8xbf16>
    %97 = vector.shape_cast %96 : vector<1x8x8xbf16> to vector<8x8xbf16>
    %cst_54 = arith.constant dense<0.000000e+00> : vector<8x16x8xf32>
    %98 = tpu.matmul %95, %97, %cst_54 {dimension_numbers = #tpu.dot_dimension_numbers<[2], [0], [0, 1], [1], [0, 0, 0, 1, 1, 1], [], []>} : vector<8x16x8xbf16>, vector<8x8xbf16>, vector<8x16x8xf32> -> vector<8x16x8xf32>
    %99 = arith.addf %94, %98 : vector<8x16x8xf32>
    %100 = vector.extract_strided_slice %83 {offsets = [1, 0, 0], sizes = [8, 16, 8], strides = [1, 1, 1]} : vector<10x16x8xbf16> to vector<8x16x8xbf16>
    %c3_55 = arith.constant 3 : index
    %c0_56 = arith.constant 0 : index
    %c0_57 = arith.constant 0 : index
    %101 = vector.load %arg5[%c3_55, %c0_56, %c0_57] : memref<9x8x8xbf16, #tpu.memory_space<vmem>>, vector<1x8x8xbf16>
    %102 = vector.shape_cast %101 : vector<1x8x8xbf16> to vector<8x8xbf16>
    %cst_58 = arith.constant dense<0.000000e+00> : vector<8x16x8xf32>
    %103 = tpu.matmul %100, %102, %cst_58 {dimension_numbers = #tpu.dot_dimension_numbers<[2], [0], [0, 1], [1], [0, 0, 0, 1, 1, 1], [], []>} : vector<8x16x8xbf16>, vector<8x8xbf16>, vector<8x16x8xf32> -> vector<8x16x8xf32>
    %104 = arith.addf %99, %103 : vector<8x16x8xf32>
    %105 = vector.extract_strided_slice %80 {offsets = [1, 0, 0], sizes = [8, 16, 8], strides = [1, 1, 1]} : vector<10x16x8xbf16> to vector<8x16x8xbf16>
    %c4_59 = arith.constant 4 : index
    %c0_60 = arith.constant 0 : index
    %c0_61 = arith.constant 0 : index
    %106 = vector.load %arg5[%c4_59, %c0_60, %c0_61] : memref<9x8x8xbf16, #tpu.memory_space<vmem>>, vector<1x8x8xbf16>
    %107 = vector.shape_cast %106 : vector<1x8x8xbf16> to vector<8x8xbf16>
    %cst_62 = arith.constant dense<0.000000e+00> : vector<8x16x8xf32>
    %108 = tpu.matmul %105, %107, %cst_62 {dimension_numbers = #tpu.dot_dimension_numbers<[2], [0], [0, 1], [1], [0, 0, 0, 1, 1, 1], [], []>} : vector<8x16x8xbf16>, vector<8x8xbf16>, vector<8x16x8xf32> -> vector<8x16x8xf32>
    %109 = arith.addf %104, %108 : vector<8x16x8xf32>
    %110 = vector.extract_strided_slice %85 {offsets = [1, 0, 0], sizes = [8, 16, 8], strides = [1, 1, 1]} : vector<10x16x8xbf16> to vector<8x16x8xbf16>
    %c5_63 = arith.constant 5 : index
    %c0_64 = arith.constant 0 : index
    %c0_65 = arith.constant 0 : index
    %111 = vector.load %arg5[%c5_63, %c0_64, %c0_65] : memref<9x8x8xbf16, #tpu.memory_space<vmem>>, vector<1x8x8xbf16>
    %112 = vector.shape_cast %111 : vector<1x8x8xbf16> to vector<8x8xbf16>
    %cst_66 = arith.constant dense<0.000000e+00> : vector<8x16x8xf32>
    %113 = tpu.matmul %110, %112, %cst_66 {dimension_numbers = #tpu.dot_dimension_numbers<[2], [0], [0, 1], [1], [0, 0, 0, 1, 1, 1], [], []>} : vector<8x16x8xbf16>, vector<8x8xbf16>, vector<8x16x8xf32> -> vector<8x16x8xf32>
    %114 = arith.addf %109, %113 : vector<8x16x8xf32>
    %115 = vector.extract_strided_slice %83 {offsets = [2, 0, 0], sizes = [8, 16, 8], strides = [1, 1, 1]} : vector<10x16x8xbf16> to vector<8x16x8xbf16>
    %c6_67 = arith.constant 6 : index
    %c0_68 = arith.constant 0 : index
    %c0_69 = arith.constant 0 : index
    %116 = vector.load %arg5[%c6_67, %c0_68, %c0_69] : memref<9x8x8xbf16, #tpu.memory_space<vmem>>, vector<1x8x8xbf16>
    %117 = vector.shape_cast %116 : vector<1x8x8xbf16> to vector<8x8xbf16>
    %cst_70 = arith.constant dense<0.000000e+00> : vector<8x16x8xf32>
    %118 = tpu.matmul %115, %117, %cst_70 {dimension_numbers = #tpu.dot_dimension_numbers<[2], [0], [0, 1], [1], [0, 0, 0, 1, 1, 1], [], []>} : vector<8x16x8xbf16>, vector<8x8xbf16>, vector<8x16x8xf32> -> vector<8x16x8xf32>
    %119 = arith.addf %114, %118 : vector<8x16x8xf32>
    %120 = vector.extract_strided_slice %80 {offsets = [2, 0, 0], sizes = [8, 16, 8], strides = [1, 1, 1]} : vector<10x16x8xbf16> to vector<8x16x8xbf16>
    %c7_71 = arith.constant 7 : index
    %c0_72 = arith.constant 0 : index
    %c0_73 = arith.constant 0 : index
    %121 = vector.load %arg5[%c7_71, %c0_72, %c0_73] : memref<9x8x8xbf16, #tpu.memory_space<vmem>>, vector<1x8x8xbf16>
    %122 = vector.shape_cast %121 : vector<1x8x8xbf16> to vector<8x8xbf16>
    %cst_74 = arith.constant dense<0.000000e+00> : vector<8x16x8xf32>
    %123 = tpu.matmul %120, %122, %cst_74 {dimension_numbers = #tpu.dot_dimension_numbers<[2], [0], [0, 1], [1], [0, 0, 0, 1, 1, 1], [], []>} : vector<8x16x8xbf16>, vector<8x8xbf16>, vector<8x16x8xf32> -> vector<8x16x8xf32>
    %124 = arith.addf %119, %123 : vector<8x16x8xf32>
    %125 = vector.extract_strided_slice %85 {offsets = [2, 0, 0], sizes = [8, 16, 8], strides = [1, 1, 1]} : vector<10x16x8xbf16> to vector<8x16x8xbf16>
    %c8_75 = arith.constant 8 : index
    %c0_76 = arith.constant 0 : index
    %c0_77 = arith.constant 0 : index
    %126 = vector.load %arg5[%c8_75, %c0_76, %c0_77] : memref<9x8x8xbf16, #tpu.memory_space<vmem>>, vector<1x8x8xbf16>
    %127 = vector.shape_cast %126 : vector<1x8x8xbf16> to vector<8x8xbf16>
    %cst_78 = arith.constant dense<0.000000e+00> : vector<8x16x8xf32>
    %128 = tpu.matmul %125, %127, %cst_78 {dimension_numbers = #tpu.dot_dimension_numbers<[2], [0], [0, 1], [1], [0, 0, 0, 1, 1, 1], [], []>} : vector<8x16x8xbf16>, vector<8x8xbf16>, vector<8x16x8xf32> -> vector<8x16x8xf32>
    %129 = arith.addf %124, %128 : vector<8x16x8xf32>
    %c2_i32_79 = arith.constant 2 : i32
    %130 = arith.addi %0, %c2_i32_79 : i32
    %c0_80 = arith.constant 0 : index
    %131 = arith.index_cast %130 : i32 to index
    %c1_81 = arith.constant 1 : index
    %c0_82 = arith.constant 0 : index
    %132 = vector.load %arg2[%c0_80, %131, %c1_81, %c0_82] : memref<1x20x18x8xbf16, #tpu.memory_space<vmem>>, vector<1x8x16x8xbf16>
    %133 = vector.shape_cast %132 : vector<1x8x16x8xbf16> to vector<8x16x8xbf16>
    %134 = arith.extf %133 : vector<8x16x8xbf16> to vector<8x16x8xf32>
    %c0_83 = arith.constant 0 : index
    %c0_84 = arith.constant 0 : index
    %135 = vector.load %arg6[%c0_83, %c0_84] : memref<1x8xf32, #tpu.memory_space<vmem>>, vector<1x8xf32>
    %136 = vector.shape_cast %135 : vector<1x8xf32> to vector<1x1x8xf32>
    %137 = vector.broadcast %136 : vector<1x1x8xf32> to vector<8x16x8xf32>
    %138 = arith.addf %129, %137 : vector<8x16x8xf32>
    %139 = arith.addf %138, %134 : vector<8x16x8xf32>
    %cst_85 = arith.constant 0.000000e+00 : f32
    %140 = vector.broadcast %cst_85 : f32 to vector<8x16x8xf32>
    %141 = arith.maximumf %139, %140 : vector<8x16x8xf32>
    %c0_86 = arith.constant 0 : index
    %c0_87 = arith.constant 0 : index
    %c0_88 = arith.constant 0 : index
    %c0_89 = arith.constant 0 : index
    %142 = vector.load %arg7[%c0_86, %c0_87, %c0_88, %c0_89] : memref<1x8x16x8xf32, #tpu.memory_space<vmem>>, vector<1x8x16x8xf32>
    %143 = vector.shape_cast %142 : vector<1x8x16x8xf32> to vector<8x16x8xf32>
    %144 = vector.shape_cast %141 : vector<8x16x8xf32> to vector<1x8x16x8xf32>
    tpu.vector_store %arg7[%c0_86, %c0_87, %c0_88, %c0_89], %144 {strides = array<i32>} : memref<1x8x16x8xf32, #tpu.memory_space<vmem>>, vector<1x8x16x8xf32>,
    return
  }
  func.func @transform_0(%arg0: i32, %arg1: i32) -> (i32, i32, i32, i32) {
    %c0_i32 = arith.constant 0 : i32
    %c0_i32_0 = arith.constant 0 : i32
    %c0_i32_1 = arith.constant 0 : i32
    %c0_i32_2 = arith.constant 0 : i32
    return %arg0, %c0_i32, %c0_i32_0, %c0_i32_1 : i32, i32, i32, i32
  }
  func.func @transform_1(%arg0: i32, %arg1: i32) -> (i32, i32, i32) {
    %c0_i32 = arith.constant 0 : i32
    %c0_i32_0 = arith.constant 0 : i32
    %c0_i32_1 = arith.constant 0 : i32
    %c0_i32_2 = arith.constant 0 : i32
    return %c0_i32, %c0_i32_0, %c0_i32_1 : i32, i32, i32
  }
  func.func @transform_2(%arg0: i32, %arg1: i32) -> (i32, i32) {
    %c0_i32 = arith.constant 0 : i32
    %c0_i32_0 = arith.constant 0 : i32
    %c0_i32_1 = arith.constant 0 : i32
    return %c0_i32, %c0_i32_0 : i32, i32
  }
  func.func @transform_3(%arg0: i32, %arg1: i32) -> (i32, i32, i32) {
    %c0_i32 = arith.constant 0 : i32
    %c0_i32_0 = arith.constant 0 : i32
    %c0_i32_1 = arith.constant 0 : i32
    %c0_i32_2 = arith.constant 0 : i32
    return %c0_i32, %c0_i32_0, %c0_i32_1 : i32, i32, i32
  }
  func.func @transform_4(%arg0: i32, %arg1: i32) -> (i32, i32) {
    %c0_i32 = arith.constant 0 : i32
    %c0_i32_0 = arith.constant 0 : i32
    %c0_i32_1 = arith.constant 0 : i32
    return %c0_i32, %c0_i32_0 : i32, i32
  }
  func.func @transform_5(%arg0: i32, %arg1: i32) -> (i32, i32, i32, i32) {
    %c0_i32 = arith.constant 0 : i32
    %c0_i32_0 = arith.constant 0 : i32
    %c0_i32_1 = arith.constant 0 : i32
    return %arg0, %arg1, %c0_i32, %c0_i32_0 : i32, i32, i32, i32
  }
}

</mosaic_0001>

<llo_original>
// kernel: deep_basic_block.1
$region0: #{deep_basic_block.1}
  #allocation0 [shape = 'u32[]', space=smem, size = 0x4, offset = 0x4, fixed_abs, tag = 'smem constant byte address 0x4 - core index']
  #allocation1 [shape = 'u32[144,128]{1,0:T(1,128)}', space=vmem, size = 0x12000, scoped, tag = 'internal scratch']
  %s0 = inlined_call_operand.vmem [shape: bf16[2,20,18,8], index: 0, kind: input, shape index: {}]
  %s1 = inlined_call_operand.vmem [shape: bf16[9,8,8], index: 1, kind: input, shape index: {}]
  %s2 = inlined_call_operand.vmem [shape: f32[1,8], index: 2, kind: input, shape index: {}]
  %s3 = inlined_call_operand.vmem [shape: bf16[9,8,8], index: 3, kind: input, shape index: {}]
  %s4 = inlined_call_operand.vmem [shape: f32[1,8], index: 4, kind: input, shape index: {}]
  %s5 = inlined_call_operand.vmem [shape: f32[2,16,16,8], index: 5, kind: output, shape index: {}]
  %s6 = sld [smem:[#allocation0]]
  $region53: #{deep_basic_block.1} parent=0
    _
  %s8 = ssub.s32 1, %s6
  %s9 = scalar_select 0, %s8, %s6
  loop: start=0, step=1, limit=6
  $region2: #{deep_basic_block.1} parent=0 // loop_pre_header
    _
  $region3: #{deep_basic_block.1} parent=0 // loop_header
    %s11 = sphi 0, %s15
    %p12 = scmp.ge.s32.totalorder %s11, 6
    %s18 = sphi 0, %s30
    %s19 = sphi 0, %s26
    %s20 = sphi 0, %s18
    %s21 = sphi 0, %s19
    %s22 = sphi 0, %s20
    %s23 = sphi 0, %s21
    %s33 = sphi 0, %s35
    %s36 = sphi 0, %s33
    %s37 = sphi 0, %s36
    %s53 = sphi 0, %s37
    %s57 = sphi 0, %s57
    %s59 = sphi 0, %s57
    %s60 = sphi 0, %s59
    %s74 = sphi 0, %s60
    %s78 = sphi 0, %s78
    %s80 = sphi 0, %s78
    %s81 = sphi 0, %s80
    %s95 = sphi 0, %s81
    %s99 = sphi 0, %s99
    %s101 = sphi 0, %s99
    %s102 = sphi 0, %s101
    %s116 = sphi 0, %s102
    %s120 = sphi 0, %s120
    %s122 = sphi 0, %s120
    %s123 = sphi 0, %s122
    %s137 = sphi 0, %s123
    %s145 = sphi 0, %s147
    %s148 = sphi 0, %s145
    %s149 = sphi 0, %s148
    %s165 = sphi 0, %s149
  $region4: #{deep_basic_block.1} parent=0 // loop_header_branch
    %14 = sbr.rel (%p12) target = $region8
  $region5: #{deep_basic_block.1} parent=0 // loop_body
    %s16 = ssub.s32 %s11, 1
    %s17 = ssub.s32 %s11, 2
    %s24 = sadd.s32 1, %s19
    %p25 = scmp.ge.s32.totalorder %s24, 2
    %s26 = scalar_select %p25, 0, %s24
    %s27 = sadd.s32 1, %s18
    %s28 = scalar_select %p25, %s27, %s18
    %p29 = scmp.ge.s32.totalorder %s28, 2
    %s30 = scalar_select %p29, 0, %s28
    %s31 = ssub.s32 %s18, %s30
    %p32 = scmp.eq.s32.totalorder %s31, 0
    %s34 = sadd.s32 %s33, 1
    %s35 = scalar_select %p32, %s33, %s34
    %p38 = pneg %p32
    %p39 = scmp.eq.s32.totalorder %s11, 3
    %p40 = por %p38, %p39
    %p41 = scmp.ne.s32.totalorder %s33, %s36
    %p42 = scmp.eq.s32.totalorder %s11, 0
    %p43 = por %p41, %p42
    %p44 = scmp.ne.s32.totalorder %s33, %s36
    %p45 = scmp.eq.s32.totalorder %s16, 3
    %p46 = por %p44, %p45
    %p47 = scmp.ne.s32.totalorder %s36, %s37
    %p48 = scmp.eq.s32.totalorder %s16, 0
    %p49 = por %p47, %p48
    %p50 = scmp.ne.s32.totalorder %s36, %s37
    %p51 = scmp.eq.s32.totalorder %s17, 3
    %p52 = por %p50, %p51
    %p54 = scmp.ne.s32.totalorder %s37, %s53
    %p55 = scmp.eq.s32.totalorder %s17, 0
    %p56 = por %p54, %p55
    %s58 = sadd.s32 %s57, 1
    %p61 = scmp.eq.s32.totalorder %s11, 3
    %p62 = scmp.ne.s32.totalorder %s57, %s59
    %p63 = scmp.eq.s32.totalorder %s11, 0
    %p64 = por %p62, %p63
    %p65 = scmp.ne.s32.totalorder %s57, %s59
    %p66 = scmp.eq.s32.totalorder %s16, 3
    %p67 = por %p65, %p66
    %p68 = scmp.ne.s32.totalorder %s59, %s60
    %p69 = scmp.eq.s32.totalorder %s16, 0
    %p70 = por %p68, %p69
    %p71 = scmp.ne.s32.totalorder %s59, %s60
    %p72 = scmp.eq.s32.totalorder %s17, 3
    %p73 = por %p71, %p72
    %p75 = scmp.ne.s32.totalorder %s60, %s74
    %p76 = scmp.eq.s32.totalorder %s17, 0
    %p77 = por %p75, %p76
    %s79 = sadd.s32 %s78, 1
    %p82 = scmp.eq.s32.totalorder %s11, 3
    %p83 = scmp.ne.s32.totalorder %s78, %s80
    %p84 = scmp.eq.s32.totalorder %s11, 0
    %p85 = por %p83, %p84
    %p86 = scmp.ne.s32.totalorder %s78, %s80
    %p87 = scmp.eq.s32.totalorder %s16, 3
    %p88 = por %p86, %p87
    %p89 = scmp.ne.s32.totalorder %s80, %s81
    %p90 = scmp.eq.s32.totalorder %s16, 0
    %p91 = por %p89, %p90
    %p92 = scmp.ne.s32.totalorder %s80, %s81
    %p93 = scmp.eq.s32.totalorder %s17, 3
    %p94 = por %p92, %p93
    %p96 = scmp.ne.s32.totalorder %s81, %s95
    %p97 = scmp.eq.s32.totalorder %s17, 0
    %p98 = por %p96, %p97
    %s100 = sadd.s32 %s99, 1
    %p103 = scmp.eq.s32.totalorder %s11, 3
    %p104 = scmp.ne.s32.totalorder %s99, %s101
    %p105 = scmp.eq.s32.totalorder %s11, 0
    %p106 = por %p104, %p105
    %p107 = scmp.ne.s32.totalorder %s99, %s101
    %p108 = scmp.eq.s32.totalorder %s16, 3
    %p109 = por %p107, %p108
    %p110 = scmp.ne.s32.totalorder %s101, %s102
    %p111 = scmp.eq.s32.totalorder %s16, 0
    %p112 = por %p110, %p111
    %p113 = scmp.ne.s32.totalorder %s101, %s102
    %p114 = scmp.eq.s32.totalorder %s17, 3
    %p115 = por %p113, %p114
    %p117 = scmp.ne.s32.totalorder %s102, %s116
    %p118 = scmp.eq.s32.totalorder %s17, 0
    %p119 = por %p117, %p118
    %s121 = sadd.s32 %s120, 1
    %p124 = scmp.eq.s32.totalorder %s11, 3
    %p125 = scmp.ne.s32.totalorder %s120, %s122
    %p126 = scmp.eq.s32.totalorder %s11, 0
    %p127 = por %p125, %p126
    %p128 = scmp.ne.s32.totalorder %s120, %s122
    %p129 = scmp.eq.s32.totalorder %s16, 3
    %p130 = por %p128, %p129
    %p131 = scmp.ne.s32.totalorder %s122, %s123
    %p132 = scmp.eq.s32.totalorder %s16, 0
    %p133 = por %p131, %p132
    %p134 = scmp.ne.s32.totalorder %s122, %s123
    %p135 = scmp.eq.s32.totalorder %s17, 3
    %p136 = por %p134, %p135
    %p138 = scmp.ne.s32.totalorder %s123, %s137
    %p139 = scmp.eq.s32.totalorder %s17, 0
    %p140 = por %p138, %p139
    %s141 = ssub.s32 %s18, %s30
    %s142 = ssub.s32 %s19, %s26
    %s143 = sor.u32 %s141, %s142
    %p144 = scmp.eq.s32.totalorder %s143, 0
    %s146 = sadd.s32 %s145, 1
    %s147 = scalar_select %p144, %s145, %s146
    %p150 = pneg %p144
    %p151 = scmp.eq.s32.totalorder %s11, 3
    %p152 = por %p150, %p151
    %p153 = scmp.ne.s32.totalorder %s145, %s148
    %p154 = scmp.eq.s32.totalorder %s11, 0
    %p155 = por %p153, %p154
    %p156 = scmp.ne.s32.totalorder %s145, %s148
    %p157 = scmp.eq.s32.totalorder %s16, 3
    %p158 = por %p156, %p157
    %p159 = scmp.ne.s32.totalorder %s148, %s149
    %p160 = scmp.eq.s32.totalorder %s16, 0
    %p161 = por %p159, %p160
    %p162 = scmp.ne.s32.totalorder %s148, %s149
    %p163 = scmp.eq.s32.totalorder %s17, 3
    %p164 = por %p162, %p163
    %p166 = scmp.ne.s32.totalorder %s149, %s165
    %p167 = scmp.eq.s32.totalorder %s17, 0
    %p168 = por %p166, %p167
    %p169 = scmp.le.s32.totalorder 1, %s11
    %p170 = scmp.lt.s32.totalorder %s11, 5
    %p171 = pnand %p169, %p170
    %p172 = pneg %p171
    // Predicated region
    $region9: #{deep_basic_block.1} parent=5 // pred_check
      _
    $region10: #{deep_basic_block.1} parent=5 // pred_check_branch
      %174 = sbr.rel (%p171) target = $region12
    $region11: #{deep_basic_block.1} parent=5 // pred_region
      %s175 = ssub.s32 %s11, 1
      // Predicated region
      $region13: #{deep_basic_block.1} parent=11 // pred_check
        %p176 = pneg %p70
      $region14: #{deep_basic_block.1} parent=11 // pred_check_branch
        %178 = sbr.rel (%p176) target = $region16
      $region15: #{deep_basic_block.1} parent=11 // pred_region
        _
      $region16: #{deep_basic_block.1} parent=11 // pred_fallthru
        _
      // Predicated region
      $region17: #{deep_basic_block.1} parent=11 // pred_check
        %p179 = pneg %p91
      $region18: #{deep_basic_block.1} parent=11 // pred_check_branch
        %181 = sbr.rel (%p179) target = $region20
      $region19: #{deep_basic_block.1} parent=11 // pred_region
        _
      $region20: #{deep_basic_block.1} parent=11 // pred_fallthru
        _
      // Predicated region
      $region21: #{deep_basic_block.1} parent=11 // pred_check
        %p182 = pneg %p112
      $region22: #{deep_basic_block.1} parent=11 // pred_check_branch
        %184 = sbr.rel (%p182) target = $region24
      $region23: #{deep_basic_block.1} parent=11 // pred_region
        _
      $region24: #{deep_basic_block.1} parent=11 // pred_fallthru
        _
      // Predicated region
      $region25: #{deep_basic_block.1} parent=11 // pred_check
        %p185 = pneg %p133
      $region26: #{deep_basic_block.1} parent=11 // pred_check_branch
        %187 = sbr.rel (%p185) target = $region28
      $region27: #{deep_basic_block.1} parent=11 // pred_region
        _
      $region28: #{deep_basic_block.1} parent=11 // pred_fallthru
        _
    $region12: #{deep_basic_block.1} parent=5 // pred_fallthru
      _
    %p188 = scmp.lt.s32.totalorder %s11, 4
    // Predicated region
    $region29: #{deep_basic_block.1} parent=5 // pred_check
      %p189 = pneg %p188
    $region30: #{deep_basic_block.1} parent=5 // pred_check_branch
      %191 = sbr.rel (%p189) target = $region32
    $region31: #{deep_basic_block.1} parent=5 // pred_region
      // Predicated region
      $region33: #{deep_basic_block.1} parent=31 // pred_check
        %p192 = pneg %p43
      $region34: #{deep_basic_block.1} parent=31 // pred_check_branch
        %194 = sbr.rel (%p192) target = $region36
      $region35: #{deep_basic_block.1} parent=31 // pred_region
        %p195 = scmp.lt.s32.totalorder %s18, 1
        %s196 = scalar_select %p195, %s18, 1
        %s197 = smul.addr %s196, 60
        %s198 = smul.addr %s197, 4
        %s199 = scalar_lea.vmem %s0, %s198
      $region36: #{deep_basic_block.1} parent=31 // pred_fallthru
        _
    $region32: #{deep_basic_block.1} parent=5 // pred_fallthru
      _
    %p200 = scmp.le.s32.totalorder 1, %s11
    %p201 = scmp.lt.s32.totalorder %s11, 5
    %p202 = pnand %p200, %p201
    %p203 = pneg %p202
    // Predicated region
    $region37: #{deep_basic_block.1} parent=5 // pred_check
      _
    $region38: #{deep_basic_block.1} parent=5 // pred_check_branch
      %205 = sbr.rel (%p202) target = $region40
    $region39: #{deep_basic_block.1} parent=5 // pred_region
      %s206 = ssub.s32 %s11, 1
      %p207 = scmp.lt.s32.totalorder %s20, 1
      %s208 = scalar_select %p207, %s20, 1
      %s209 = smul.addr %s208, 60
      %s210 = smul.addr %s209, 4
      %s211 = scalar_lea.vmem %s0, %s210
      %p212 = pneg %p49
      %p213 = pneg %p46
      %p214 = pneg %p70
      %p215 = pneg %p67
      %p216 = pneg %p91
      %p217 = pneg %p88
      %p218 = pneg %p112
      %p219 = pneg %p109
      %p220 = pneg %p133
      %p221 = pneg %p130
      %p222 = pneg %p161
      %p223 = pneg %p158
      %s224 = smul.u32 8, %s21
      %p225 = scmp.lt.s32.totalorder %s20, 1
      %s226 = scalar_select %p225, %s20, 1
      %p227 = scmp.lt.s32.totalorder %s224, 15
      %s228 = scalar_select %p227, %s224, 15
      %s229 = smul.addr %s228, 2
      %s230 = smul.addr %s226, 32
      %s231 = sadd.s32 %s229, %s230
      %s232 = smul.addr %s231, 8
      %s233 = scalar_lea.vmem %s5, %s232
      %p234 = scmp.lt.s32.totalorder %s20, 1
      %s235 = scalar_select %p234, %s20, 1
      %s236 = smul.addr %s235, 60
      %s237 = smul.addr %s236, 4
      %s238 = scalar_lea.vmem %s0, %s237
      %s239 = smul.u32 8, %s21
      %p240 = scmp.lt.s32.totalorder %s20, 1
      %s241 = scalar_select %p240, %s20, 1
      %p242 = scmp.lt.s32.totalorder %s239, 15
      %s243 = scalar_select %p242, %s239, 15
      %s244 = smul.addr %s243, 2
      %s245 = smul.addr %s241, 32
      %s246 = sadd.s32 %s244, %s245
      %s247 = smul.addr %s246, 8
      %s248 = scalar_lea.vmem %s5, %s247
      %s249 = smul.u32 8, %s21
      %s251 = smul.u32 %s21, 8
      %s252 = smul.u32 %s251, 3
      %s253 = smul.addr %s252, 4
      %s254 = scalar_lea.vmem %s238, %s253
      %v255 = vld [vmem:[%s254] sm:$0xf]
      %v256 = vld [vmem:[%s254 + $0x4] sm:$0xf]
      %v257 = vld [vmem:[%s254 + $0x8] sm:$0x1]
      %v258 = vld [vmem:[%s254 + $0xc] sm:$0xf]
      %v259 = vld [vmem:[%s254 + $0x10] sm:$0xf]
      %v260 = vld [vmem:[%s254 + $0x14] sm:$0x1]
      %v261 = vld [vmem:[%s254 + $0x18] sm:$0xf]
      %v262 = vld [vmem:[%s254 + $0x1c] sm:$0xf]
      %v263 = vld [vmem:[%s254 + $0x20] sm:$0x1]
      %v264 = vld [vmem:[%s254 + $0x24] sm:$0xf]
      %v265 = vld [vmem:[%s254 + $0x28] sm:$0xf]
      %v266 = vld [vmem:[%s254 + $0x2c] sm:$0x1]
      %v267 = vld [vmem:[%s254 + $0x30] sm:$0xf]
      %v268 = vld [vmem:[%s254 + $0x34] sm:$0xf]
      %v269 = vld [vmem:[%s254 + $0x38] sm:$0x1]
      %v270 = vld [vmem:[%s254 + $0x3c] sm:$0xf]
      %v271 = vld [vmem:[%s254 + $0x40] sm:$0xf]
      %v272 = vld [vmem:[%s254 + $0x44] sm:$0x1]
      %v273 = vld [vmem:[%s254 + $0x48] sm:$0xf]
      %v274 = vld [vmem:[%s254 + $0x4c] sm:$0xf]
      %v275 = vld [vmem:[%s254 + $0x50] sm:$0x1]
      %v276 = vld [vmem:[%s254 + $0x54] sm:$0xf]
      %v277 = vld [vmem:[%s254 + $0x58] sm:$0xf]
      %v278 = vld [vmem:[%s254 + $0x5c] sm:$0x1]
      %v279 = vld [vmem:[%s254 + $0x60] sm:$0xf]
      %v280 = vld [vmem:[%s254 + $0x64] sm:$0xf]
      %v281 = vld [vmem:[%s254 + $0x68] sm:$0x1]
      %v282 = vld [vmem:[%s254 + $0x6c] sm:$0xf]
      %v283 = vld [vmem:[%s254 + $0x70] sm:$0xf]
      %v284 = vld [vmem:[%s254 + $0x74] sm:$0x1]
      %v285 = vld [vmem:[%s1] sm:$0xf]
      %s286 = scalar_lea.vmem %s1, 4
      %v287 = vld [vmem:[%s286] sm:$0xf]
      %vm288 = vsmask.f32 3328
      %vm289 = vsmask.f32 7440
      %vm290 = vmor %vm288, %vm289
      %v292 = vshrl.u32 %v255, 16
      %v294 = vrot.slane %v292, 4
      %v295 = vshll.u32 %v255, 16
      %v297 = vrot.slane %v295, 5
      %v298 = vor.u32 %v294, %v297
      %v299 = vrot.slane %v298, 4
      %v301 = vshll.u32 %v256, 16
      %v303 = vrot.slane %v301, 5
      %v304 = vsel %vm290, %v299, %v303
      %v305 = vshrl.u32 %v256, 16
      %v307 = vrot.slane %v305, 4
      %v308 = vor.u32 %v307, %v303
      %v309 = vrot.slane %v308, 4
      %v311 = vshll.u32 %v257, 16
      %v313 = vrot.slane %v311, 5
      %v314 = vsel %vm290, %v309, %v313
      %v316 = vshrl.u32 %v258, 16
      %v318 = vrot.slane %v316, 4
      %v319 = vshll.u32 %v258, 16
      %v321 = vrot.slane %v319, 5
      %v322 = vor.u32 %v318, %v321
      %v323 = vrot.slane %v322, 4
      %v325 = vshll.u32 %v259, 16
      %v327 = vrot.slane %v325, 5
      %v328 = vsel %vm290, %v323, %v327
      %v329 = vshrl.u32 %v259, 16
      %v331 = vrot.slane %v329, 4
      %v332 = vor.u32 %v331, %v327
      %v333 = vrot.slane %v332, 4
      %v335 = vshll.u32 %v260, 16
      %v337 = vrot.slane %v335, 5
      %v338 = vsel %vm290, %v333, %v337
      %v340 = vshrl.u32 %v261, 16
      %v342 = vrot.slane %v340, 4
      %v343 = vshll.u32 %v261, 16
      %v345 = vrot.slane %v343, 5
      %v346 = vor.u32 %v342, %v345
      %v347 = vrot.slane %v346, 4
      %v349 = vshll.u32 %v262, 16
      %v351 = vrot.slane %v349, 5
      %v352 = vsel %vm290, %v347, %v351
      %v353 = vshrl.u32 %v262, 16
      %v355 = vrot.slane %v353, 4
      %v356 = vor.u32 %v355, %v351
      %v357 = vrot.slane %v356, 4
      %v359 = vshll.u32 %v263, 16
      %v361 = vrot.slane %v359, 5
      %v362 = vsel %vm290, %v357, %v361
      %v364 = vshrl.u32 %v264, 16
      %v366 = vrot.slane %v364, 4
      %v367 = vshll.u32 %v264, 16
      %v369 = vrot.slane %v367, 5
      %v370 = vor.u32 %v366, %v369
      %v371 = vrot.slane %v370, 4
      %v373 = vshll.u32 %v265, 16
      %v375 = vrot.slane %v373, 5
      %v376 = vsel %vm290, %v371, %v375
      %v377 = vshrl.u32 %v265, 16
      %v379 = vrot.slane %v377, 4
      %v380 = vor.u32 %v379, %v375
      %v381 = vrot.slane %v380, 4
      %v383 = vshll.u32 %v266, 16
      %v385 = vrot.slane %v383, 5
      %v386 = vsel %vm290, %v381, %v385
      %v388 = vshrl.u32 %v267, 16
      %v390 = vrot.slane %v388, 4
      %v391 = vshll.u32 %v267, 16
      %v393 = vrot.slane %v391, 5
      %v394 = vor.u32 %v390, %v393
      %v395 = vrot.slane %v394, 4
      %v397 = vshll.u32 %v268, 16
      %v399 = vrot.slane %v397, 5
      %v400 = vsel %vm290, %v395, %v399
      %v401 = vshrl.u32 %v268, 16
      %v403 = vrot.slane %v401, 4
      %v404 = vor.u32 %v403, %v399
      %v405 = vrot.slane %v404, 4
      %v407 = vshll.u32 %v269, 16
      %v409 = vrot.slane %v407, 5
      %v410 = vsel %vm290, %v405, %v409
      %v412 = vshrl.u32 %v270, 16
      %v414 = vrot.slane %v412, 4
      %v415 = vshll.u32 %v270, 16
      %v417 = vrot.slane %v415, 5
      %v418 = vor.u32 %v414, %v417
      %v419 = vrot.slane %v418, 4
      %v421 = vshll.u32 %v271, 16
      %v423 = vrot.slane %v421, 5
      %v424 = vsel %vm290, %v419, %v423
      %v425 = vshrl.u32 %v271, 16
      %v427 = vrot.slane %v425, 4
      %v428 = vor.u32 %v427, %v423
      %v429 = vrot.slane %v428, 4
      %v431 = vshll.u32 %v272, 16
      %v433 = vrot.slane %v431, 5
      %v434 = vsel %vm290, %v429, %v433
      %v436 = vshrl.u32 %v273, 16
      %v438 = vrot.slane %v436, 4
      %v439 = vshll.u32 %v273, 16
      %v441 = vrot.slane %v439, 5
      %v442 = vor.u32 %v438, %v441
      %v443 = vrot.slane %v442, 4
      %v445 = vshll.u32 %v274, 16
      %v447 = vrot.slane %v445, 5
      %v448 = vsel %vm290, %v443, %v447
      %v449 = vshrl.u32 %v274, 16
      %v451 = vrot.slane %v449, 4
      %v452 = vor.u32 %v451, %v447
      %v453 = vrot.slane %v452, 4
      %v455 = vshll.u32 %v275, 16
      %v457 = vrot.slane %v455, 5
      %v458 = vsel %vm290, %v453, %v457
      %v460 = vshrl.u32 %v276, 16
      %v462 = vrot.slane %v460, 4
      %v463 = vshll.u32 %v276, 16
      %v465 = vrot.slane %v463, 5
      %v466 = vor.u32 %v462, %v465
      %v467 = vrot.slane %v466, 4
      %v469 = vshll.u32 %v277, 16
      %v471 = vrot.slane %v469, 5
      %v472 = vsel %vm290, %v467, %v471
      %v473 = vshrl.u32 %v277, 16
      %v475 = vrot.slane %v473, 4
      %v476 = vor.u32 %v475, %v471
      %v477 = vrot.slane %v476, 4
      %v479 = vshll.u32 %v278, 16
      %v481 = vrot.slane %v479, 5
      %v482 = vsel %vm290, %v477, %v481
      %v484 = vshrl.u32 %v279, 16
      %v486 = vrot.slane %v484, 4
      %v487 = vshll.u32 %v279, 16
      %v489 = vrot.slane %v487, 5
      %v490 = vor.u32 %v486, %v489
      %v491 = vrot.slane %v490, 4
      %v493 = vshll.u32 %v280, 16
      %v495 = vrot.slane %v493, 5
      %v496 = vsel %vm290, %v491, %v495
      %v497 = vshrl.u32 %v280, 16
      %v499 = vrot.slane %v497, 4
      %v500 = vor.u32 %v499, %v495
      %v501 = vrot.slane %v500, 4
      %v503 = vshll.u32 %v281, 16
      %v505 = vrot.slane %v503, 5
      %v506 = vsel %vm290, %v501, %v505
      %v508 = vshrl.u32 %v282, 16
      %v510 = vrot.slane %v508, 4
      %v511 = vshll.u32 %v282, 16
      %v513 = vrot.slane %v511, 5
      %v514 = vor.u32 %v510, %v513
      %v515 = vrot.slane %v514, 4
      %v517 = vshll.u32 %v283, 16
      %v519 = vrot.slane %v517, 5
      %v520 = vsel %vm290, %v515, %v519
      %v521 = vshrl.u32 %v283, 16
      %v523 = vrot.slane %v521, 4
      %v524 = vor.u32 %v523, %v519
      %v525 = vrot.slane %v524, 4
      %v527 = vshll.u32 %v284, 16
      %v529 = vrot.slane %v527, 5
      %v530 = vsel %vm290, %v525, %v529
      %v531 = vunpack.c.l.b16 %v304
      %v532 = vunpack.c.l.b16 %v314
      %v533 = vunpack.c.l.b16 %v328
      %v534 = vunpack.c.l.b16 %v338
      %v535 = vunpack.c.l.b16 %v352
      %v536 = vunpack.c.l.b16 %v362
      %v537 = vunpack.c.l.b16 %v376
      %v538 = vunpack.c.l.b16 %v386
      %v539 = vunpack.c.l.b16 %v400
      %v540 = vunpack.c.l.b16 %v410
      %v541 = vunpack.c.l.b16 %v424
      %v542 = vunpack.c.l.b16 %v434
      %v543 = vunpack.c.l.b16 %v448
      %v544 = vunpack.c.l.b16 %v458
      %v545 = vunpack.c.l.b16 %v472
      %v546 = vunpack.c.l.b16 %v482
      %v547 = vunpack.c.l.b16 %v496
      %v548 = vunpack.c.l.b16 %v506
      %v549 = vunpack.c.l.b16 %v520
      %v550 = vunpack.c.l.b16 %v530
      %v551 = vpack.c.b16 %v532, %v531
      %v552 = vpack.c.b16 %v534, %v533
      %v553 = vpack.c.b16 %v536, %v535
      %v554 = vpack.c.b16 %v538, %v537
      %v555 = vpack.c.b16 %v540, %v539
      %v556 = vpack.c.b16 %v542, %v541
      %v557 = vpack.c.b16 %v544, %v543
      %v558 = vpack.c.b16 %v546, %v545
      %v559 = vpack.c.b16 %v548, %v547
      %v560 = vpack.c.b16 %v550, %v549
      %vm561 = vcmask 64512
      %v563 = vsel %vm561, %v551, 0
      %v566 = vsel %vm561, %v552, 0
      %v569 = vsel %vm561, %v553, 0
      %v572 = vsel %vm561, %v554, 0
      %v575 = vsel %vm561, %v555, 0
      %v578 = vsel %vm561, %v556, 0
      %v581 = vsel %vm561, %v557, 0
      %v584 = vsel %vm561, %v558, 0
      %v587 = vsel %vm561, %v559, 0
      %v590 = vsel %vm561, %v560, 0
      %vm592 = vcmask 1043456
      %v594 = vsel %vm592, %v287, 0
      %596 = vmatprep.subr.bf16.mxu0 0
      %597 = vmatpush1.bf16.msra.mxu0 0
      %598 = vmatprep.subr.bf16.mxu0 0
      %599 = vmatpush1.bf16.msra.mxu0 0
      %600 = vmatprep.subr.bf16.mxu0 0
      %601 = vmatpush1.bf16.msra.mxu0 0
      %602 = vmatprep.subr.bf16.mxu0 0
      %603 = vmatpush1.bf16.msra.mxu0 0
      %604 = vmatprep.subr.bf16.mxu0 0
      %605 = vmatpush1.bf16.msra.mxu0 0
      %606 = vmatprep.subr.bf16.mxu0 0
      %607 = vmatpush1.bf16.msra.mxu0 0
      %608 = vmatprep.subr.bf16.mxu0 0
      %609 = vmatpush1.bf16.msra.mxu0 0
      %610 = vmatprep.subr.bf16.mxu0 0
      %611 = vmatpush1.bf16.msra.mxu0 %v594
      %612 = vmatprep.subr.bf16.mxu0 0
      %613 = vmatpush2.bf16.msra.mxu0 0
      %614 = vmatprep.subr.bf16.mxu0 0
      %615 = vmatpush2.bf16.msra.mxu0 0
      %616 = vmatprep.subr.bf16.mxu0 0
      %617 = vmatpush2.bf16.msra.mxu0 0
      %618 = vmatprep.subr.bf16.mxu0 0
      %619 = vmatpush2.bf16.msra.mxu0 0
      %620 = vmatprep.subr.bf16.mxu0 0
      %621 = vmatpush2.bf16.msra.mxu0 0
      %622 = vmatprep.subr.bf16.mxu0 0
      %623 = vmatpush2.bf16.msra.mxu0 0
      %624 = vmatprep.subr.bf16.mxu0 0
      %625 = vmatpush2.bf16.msra.mxu0 0
      %626 = vmatprep.subr.bf16.mxu0 0
      %627 = vmatpush2.bf16.msra.mxu0 0
      %628 = vmatprep.mubr.bf16.mxu0 0
      %629 = vmatmul.mubr.bf16.gmra.mxu0 %v563
      %v630 = vpop.f32.mrf.mxu0
      %v631 = vadd.f32 0.0, %v630
      %v632 = vpop.f32.mrf.mxu0
      %v633 = vpop.f32.mrf.mxu0
      %v634 = vadd.f32 0.0, %v633
      %v635 = vpop.f32.mrf.mxu0
      %636 = vmatprep.mubr.bf16.mxu0 0
      %637 = vmatmul.mubr.bf16.gmra.mxu0 %v566
      %v638 = vpop.f32.mrf.mxu0
      %v639 = vadd.f32 0.0, %v638
      %v640 = vpop.f32.mrf.mxu0
      %v641 = vpop.f32.mrf.mxu0
      %v642 = vadd.f32 0.0, %v641
      %v643 = vpop.f32.mrf.mxu0
      %644 = vmatprep.mubr.bf16.mxu0 0
      %645 = vmatmul.mubr.bf16.gmra.mxu0 %v569
      %v646 = vpop.f32.mrf.mxu0
      %v647 = vadd.f32 0.0, %v646
      %v648 = vpop.f32.mrf.mxu0
      %v649 = vpop.f32.mrf.mxu0
      %v650 = vadd.f32 0.0, %v649
      %v651 = vpop.f32.mrf.mxu0
      %652 = vmatprep.mubr.bf16.mxu0 0
      %653 = vmatmul.mubr.bf16.gmra.mxu0 %v572
      %v654 = vpop.f32.mrf.mxu0
      %v655 = vadd.f32 0.0, %v654
      %v656 = vpop.f32.mrf.mxu0
      %v657 = vpop.f32.mrf.mxu0
      %v658 = vadd.f32 0.0, %v657
      %v659 = vpop.f32.mrf.mxu0
      %660 = vmatprep.mubr.bf16.mxu0 0
      %661 = vmatmul.mubr.bf16.gmra.mxu0 %v575
      %v662 = vpop.f32.mrf.mxu0
      %v663 = vadd.f32 0.0, %v662
      %v664 = vpop.f32.mrf.mxu0
      %v665 = vpop.f32.mrf.mxu0
      %v666 = vadd.f32 0.0, %v665
      %v667 = vpop.f32.mrf.mxu0
      %668 = vmatprep.mubr.bf16.mxu0 0
      %669 = vmatmul.mubr.bf16.gmra.mxu0 %v578
      %v670 = vpop.f32.mrf.mxu0
      %v671 = vadd.f32 0.0, %v670
      %v672 = vpop.f32.mrf.mxu0
      %v673 = vpop.f32.mrf.mxu0
      %v674 = vadd.f32 0.0, %v673
      %v675 = vpop.f32.mrf.mxu0
      %676 = vmatprep.mubr.bf16.mxu0 0
      %677 = vmatmul.mubr.bf16.gmra.mxu0 %v581
      %v678 = vpop.f32.mrf.mxu0
      %v679 = vadd.f32 0.0, %v678
      %v680 = vpop.f32.mrf.mxu0
      %v681 = vpop.f32.mrf.mxu0
      %v682 = vadd.f32 0.0, %v681
      %v683 = vpop.f32.mrf.mxu0
      %684 = vmatprep.mubr.bf16.mxu0 0
      %685 = vmatmul.mubr.bf16.gmra.mxu0 %v584
      %v686 = vpop.f32.mrf.mxu0
      %v687 = vadd.f32 0.0, %v686
      %v688 = vpop.f32.mrf.mxu0
      %v689 = vpop.f32.mrf.mxu0
      %v690 = vadd.f32 0.0, %v689
      %v691 = vpop.f32.mrf.mxu0
      %692 = vmatprep.mubr.bf16.mxu0 0
      %693 = vmatmul.mubr.bf16.gmra.mxu0 %v587
      %v694 = vpop.f32.mrf.mxu0
      %v695 = vadd.f32 0.0, %v694
      %v696 = vpop.f32.mrf.mxu0
      %v697 = vpop.f32.mrf.mxu0
      %v698 = vadd.f32 0.0, %v697
      %v699 = vpop.f32.mrf.mxu0
      %700 = vmatprep.mubr.bf16.mxu0 0
      %701 = vmatmul.mubr.bf16.gmra.mxu0 %v590
      %v702 = vpop.f32.mrf.mxu0
      %v703 = vadd.f32 0.0, %v702
      %v704 = vpop.f32.mrf.mxu0
      %v705 = vpop.f32.mrf.mxu0
      %v706 = vadd.f32 0.0, %v705
      %v707 = vpop.f32.mrf.mxu0
      %708 = vdwg.mxu0
      %v729 = vunpack.c.l.b16 %v255
      %v730 = vunpack.c.l.b16 %v256
      %v731 = vunpack.c.l.b16 %v258
      %v732 = vunpack.c.l.b16 %v259
      %v733 = vunpack.c.l.b16 %v261
      %v734 = vunpack.c.l.b16 %v262
      %v735 = vunpack.c.l.b16 %v264
      %v736 = vunpack.c.l.b16 %v265
      %v737 = vunpack.c.l.b16 %v267
      %v738 = vunpack.c.l.b16 %v268
      %v739 = vunpack.c.l.b16 %v270
      %v740 = vunpack.c.l.b16 %v271
      %v741 = vunpack.c.l.b16 %v273
      %v742 = vunpack.c.l.b16 %v274
      %v743 = vunpack.c.l.b16 %v276
      %v744 = vunpack.c.l.b16 %v277
      %v745 = vunpack.c.l.b16 %v279
      %v746 = vunpack.c.l.b16 %v280
      %v747 = vunpack.c.l.b16 %v282
      %v748 = vunpack.c.l.b16 %v283
      %v749 = vpack.c.b16 %v730, %v729
      %v750 = vpack.c.b16 %v732, %v731
      %v751 = vpack.c.b16 %v734, %v733
      %v752 = vpack.c.b16 %v736, %v735
      %v753 = vpack.c.b16 %v738, %v737
      %v754 = vpack.c.b16 %v740, %v739
      %v755 = vpack.c.b16 %v742, %v741
      %v756 = vpack.c.b16 %v744, %v743
      %v757 = vpack.c.b16 %v746, %v745
      %v758 = vpack.c.b16 %v748, %v747
      %v760 = vsel %vm561, %v749, 0
      %v763 = vsel %vm561, %v750, 0
      %v766 = vsel %vm561, %v751, 0
      %v769 = vsel %vm561, %v752, 0
      %v772 = vsel %vm561, %v753, 0
      %v775 = vsel %vm561, %v754, 0
      %v778 = vsel %vm561, %v755, 0
      %v781 = vsel %vm561, %v756, 0
      %v784 = vsel %vm561, %v757, 0
      %v787 = vsel %vm561, %v758, 0
      %v790 = vsel %vm592, %v285, 0
      %792 = vmatprep.subr.bf16.mxu0 0
      %793 = vmatpush1.bf16.msra.mxu0 0
      %794 = vmatprep.subr.bf16.mxu0 0
      %795 = vmatpush1.bf16.msra.mxu0 0
      %796 = vmatprep.subr.bf16.mxu0 0
      %797 = vmatpush1.bf16.msra.mxu0 0
      %798 = vmatprep.subr.bf16.mxu0 0
      %799 = vmatpush1.bf16.msra.mxu0 0
      %800 = vmatprep.subr.bf16.mxu0 0
      %801 = vmatpush1.bf16.msra.mxu0 0
      %802 = vmatprep.subr.bf16.mxu0 0
      %803 = vmatpush1.bf16.msra.mxu0 0
      %804 = vmatprep.subr.bf16.mxu0 0
      %805 = vmatpush1.bf16.msra.mxu0 0
      %806 = vmatprep.subr.bf16.mxu0 0
      %807 = vmatpush1.bf16.msra.mxu0 %v790
      %808 = vmatprep.subr.bf16.mxu0 0
      %809 = vmatpush2.bf16.msra.mxu0 0
      %810 = vmatprep.subr.bf16.mxu0 0
      %811 = vmatpush2.bf16.msra.mxu0 0
      %812 = vmatprep.subr.bf16.mxu0 0
      %813 = vmatpush2.bf16.msra.mxu0 0
      %814 = vmatprep.subr.bf16.mxu0 0
      %815 = vmatpush2.bf16.msra.mxu0 0
      %816 = vmatprep.subr.bf16.mxu0 0
      %817 = vmatpush2.bf16.msra.mxu0 0
      %818 = vmatprep.subr.bf16.mxu0 0
      %819 = vmatpush2.bf16.msra.mxu0 0
      %820 = vmatprep.subr.bf16.mxu0 0
      %821 = vmatpush2.bf16.msra.mxu0 0
      %822 = vmatprep.subr.bf16.mxu0 0
      %823 = vmatpush2.bf16.msra.mxu0 0
      %824 = vmatprep.mubr.bf16.mxu0 0
      %825 = vmatmul.mubr.bf16.gmra.mxu0 %v760
      %v826 = vpop.f32.mrf.mxu0
      %v827 = vadd.f32 %v631, %v826
      %v828 = vpop.f32.mrf.mxu0
      %v829 = vpop.f32.mrf.mxu0
      %v830 = vadd.f32 %v634, %v829
      %v831 = vpop.f32.mrf.mxu0
      %832 = vmatprep.mubr.bf16.mxu0 0
      %833 = vmatmul.mubr.bf16.gmra.mxu0 %v763
      %v834 = vpop.f32.mrf.mxu0
      %v835 = vadd.f32 %v639, %v834
      %v836 = vpop.f32.mrf.mxu0
      %v837 = vpop.f32.mrf.mxu0
      %v838 = vadd.f32 %v642, %v837
      %v839 = vpop.f32.mrf.mxu0
      %840 = vmatprep.mubr.bf16.mxu0 0
      %841 = vmatmul.mubr.bf16.gmra.mxu0 %v766
      %v842 = vpop.f32.mrf.mxu0
      %v843 = vadd.f32 %v647, %v842
      %v844 = vpop.f32.mrf.mxu0
      %v845 = vpop.f32.mrf.mxu0
      %v846 = vadd.f32 %v650, %v845
      %v847 = vpop.f32.mrf.mxu0
      %848 = vmatprep.mubr.bf16.mxu0 0
      %849 = vmatmul.mubr.bf16.gmra.mxu0 %v769
      %v850 = vpop.f32.mrf.mxu0
      %v851 = vadd.f32 %v655, %v850
      %v852 = vpop.f32.mrf.mxu0
      %v853 = vpop.f32.mrf.mxu0
      %v854 = vadd.f32 %v658, %v853
      %v855 = vpop.f32.mrf.mxu0
      %856 = vmatprep.mubr.bf16.mxu0 0
      %857 = vmatmul.mubr.bf16.gmra.mxu0 %v772
      %v858 = vpop.f32.mrf.mxu0
      %v859 = vadd.f32 %v663, %v858
      %v860 = vpop.f32.mrf.mxu0
      %v861 = vpop.f32.mrf.mxu0
      %v862 = vadd.f32 %v666, %v861
      %v863 = vpop.f32.mrf.mxu0
      %864 = vmatprep.mubr.bf16.mxu0 0
      %865 = vmatmul.mubr.bf16.gmra.mxu0 %v775
      %v866 = vpop.f32.mrf.mxu0
      %v867 = vadd.f32 %v671, %v866
      %v868 = vpop.f32.mrf.mxu0
      %v869 = vpop.f32.mrf.mxu0
      %v870 = vadd.f32 %v674, %v869
      %v871 = vpop.f32.mrf.mxu0
      %872 = vmatprep.mubr.bf16.mxu0 0
      %873 = vmatmul.mubr.bf16.gmra.mxu0 %v778
      %v874 = vpop.f32.mrf.mxu0
      %v875 = vadd.f32 %v679, %v874
      %v876 = vpop.f32.mrf.mxu0
      %v877 = vpop.f32.mrf.mxu0
      %v878 = vadd.f32 %v682, %v877
      %v879 = vpop.f32.mrf.mxu0
      %880 = vmatprep.mubr.bf16.mxu0 0
      %881 = vmatmul.mubr.bf16.gmra.mxu0 %v781
      %v882 = vpop.f32.mrf.mxu0
      %v883 = vadd.f32 %v687, %v882
      %v884 = vpop.f32.mrf.mxu0
      %v885 = vpop.f32.mrf.mxu0
      %v886 = vadd.f32 %v690, %v885
      %v887 = vpop.f32.mrf.mxu0
      %888 = vmatprep.mubr.bf16.mxu0 0
      %889 = vmatmul.mubr.bf16.gmra.mxu0 %v784
      %v890 = vpop.f32.mrf.mxu0
      %v891 = vadd.f32 %v695, %v890
      %v892 = vpop.f32.mrf.mxu0
      %v893 = vpop.f32.mrf.mxu0
      %v894 = vadd.f32 %v698, %v893
      %v895 = vpop.f32.mrf.mxu0
      %896 = vmatprep.mubr.bf16.mxu0 0
      %897 = vmatmul.mubr.bf16.gmra.mxu0 %v787
      %v898 = vpop.f32.mrf.mxu0
      %v899 = vadd.f32 %v703, %v898
      %v900 = vpop.f32.mrf.mxu0
      %v901 = vpop.f32.mrf.mxu0
      %v902 = vadd.f32 %v706, %v901
      %v903 = vpop.f32.mrf.mxu0
      %904 = vdwg.mxu0
      %s905 = scalar_lea.vmem %s1, 8
      %v906 = vld [vmem:[%s905] sm:$0xf]
      %vm917 = vcmask 1042432
      %vm918 = vcmask 1046532
      %vm919 = vmor %vm917, %vm918
      %v920 = vrot.slane %v255, 5
      %v921 = vrot.slane %v920, 4
      %v922 = vrot.slane %v256, 5
      %v923 = vsel %vm919, %v921, %v922
      %v924 = vrot.slane %v922, 4
      %v925 = vrot.slane %v257, 5
      %v926 = vsel %vm919, %v924, %v925
      %v927 = vrot.slane %v258, 5
      %v928 = vrot.slane %v927, 4
      %v929 = vrot.slane %v259, 5
      %v930 = vsel %vm919, %v928, %v929
      %v931 = vrot.slane %v929, 4
      %v932 = vrot.slane %v260, 5
      %v933 = vsel %vm919, %v931, %v932
      %v934 = vrot.slane %v261, 5
      %v935 = vrot.slane %v934, 4
      %v936 = vrot.slane %v262, 5
      %v937 = vsel %vm919, %v935, %v936
      %v938 = vrot.slane %v936, 4
      %v939 = vrot.slane %v263, 5
      %v940 = vsel %vm919, %v938, %v939
      %v941 = vrot.slane %v264, 5
      %v942 = vrot.slane %v941, 4
      %v943 = vrot.slane %v265, 5
      %v944 = vsel %vm919, %v942, %v943
      %v945 = vrot.slane %v943, 4
      %v946 = vrot.slane %v266, 5
      %v947 = vsel %vm919, %v945, %v946
      %v948 = vrot.slane %v267, 5
      %v949 = vrot.slane %v948, 4
      %v950 = vrot.slane %v268, 5
      %v951 = vsel %vm919, %v949, %v950
      %v952 = vrot.slane %v950, 4
      %v953 = vrot.slane %v269, 5
      %v954 = vsel %vm919, %v952, %v953
      %v955 = vrot.slane %v270, 5
      %v956 = vrot.slane %v955, 4
      %v957 = vrot.slane %v271, 5
      %v958 = vsel %vm919, %v956, %v957
      %v959 = vrot.slane %v957, 4
      %v960 = vrot.slane %v272, 5
      %v961 = vsel %vm919, %v959, %v960
      %v962 = vrot.slane %v273, 5
      %v963 = vrot.slane %v962, 4
      %v964 = vrot.slane %v274, 5
      %v965 = vsel %vm919, %v963, %v964
      %v966 = vrot.slane %v964, 4
      %v967 = vrot.slane %v275, 5
      %v968 = vsel %vm919, %v966, %v967
      %v969 = vrot.slane %v276, 5
      %v970 = vrot.slane %v969, 4
      %v971 = vrot.slane %v277, 5
      %v972 = vsel %vm919, %v970, %v971
      %v973 = vrot.slane %v971, 4
      %v974 = vrot.slane %v278, 5
      %v975 = vsel %vm919, %v973, %v974
      %v976 = vrot.slane %v279, 5
      %v977 = vrot.slane %v976, 4
      %v978 = vrot.slane %v280, 5
      %v979 = vsel %vm919, %v977, %v978
      %v980 = vrot.slane %v978, 4
      %v981 = vrot.slane %v281, 5
      %v982 = vsel %vm919, %v980, %v981
      %v983 = vrot.slane %v282, 5
      %v984 = vrot.slane %v983, 4
      %v985 = vrot.slane %v283, 5
      %v986 = vsel %vm919, %v984, %v985
      %v987 = vrot.slane %v985, 4
      %v988 = vrot.slane %v284, 5
      %v989 = vsel %vm919, %v987, %v988
      %v990 = vunpack.c.l.b16 %v923
      %v991 = vunpack.c.l.b16 %v926
      %v992 = vunpack.c.l.b16 %v930
      %v993 = vunpack.c.l.b16 %v933
      %v994 = vunpack.c.l.b16 %v937
      %v995 = vunpack.c.l.b16 %v940
      %v996 = vunpack.c.l.b16 %v944
      %v997 = vunpack.c.l.b16 %v947
      %v998 = vunpack.c.l.b16 %v951
      %v999 = vunpack.c.l.b16 %v954
      %v1000 = vunpack.c.l.b16 %v958
      %v1001 = vunpack.c.l.b16 %v961
      %v1002 = vunpack.c.l.b16 %v965
      %v1003 = vunpack.c.l.b16 %v968
      %v1004 = vunpack.c.l.b16 %v972
      %v1005 = vunpack.c.l.b16 %v975
      %v1006 = vunpack.c.l.b16 %v979
      %v1007 = vunpack.c.l.b16 %v982
      %v1008 = vunpack.c.l.b16 %v986
      %v1009 = vunpack.c.l.b16 %v989
      %v1010 = vpack.c.b16 %v991, %v990
      %v1011 = vpack.c.b16 %v993, %v992
      %v1012 = vpack.c.b16 %v995, %v994
      %v1013 = vpack.c.b16 %v997, %v996
      %v1014 = vpack.c.b16 %v999, %v998
      %v1015 = vpack.c.b16 %v1001, %v1000
      %v1016 = vpack.c.b16 %v1003, %v1002
      %v1017 = vpack.c.b16 %v1005, %v1004
      %v1018 = vpack.c.b16 %v1007, %v1006
      %v1019 = vpack.c.b16 %v1009, %v1008
      %v1021 = vsel %vm561, %v1010, 0
      %v1024 = vsel %vm561, %v1011, 0
      %v1027 = vsel %vm561, %v1012, 0
      %v1030 = vsel %vm561, %v1013, 0
      %v1033 = vsel %vm561, %v1014, 0
      %v1036 = vsel %vm561, %v1015, 0
      %v1039 = vsel %vm561, %v1016, 0
      %v1042 = vsel %vm561, %v1017, 0
      %v1045 = vsel %vm561, %v1018, 0
      %v1048 = vsel %vm561, %v1019, 0
      %v1051 = vsel %vm592, %v906, 0
      %1053 = vmatprep.subr.bf16.mxu0 0
      %1054 = vmatpush1.bf16.msra.mxu0 0
      %1055 = vmatprep.subr.bf16.mxu0 0
      %1056 = vmatpush1.bf16.msra.mxu0 0
      %1057 = vmatprep.subr.bf16.mxu0 0
      %1058 = vmatpush1.bf16.msra.mxu0 0
      %1059 = vmatprep.subr.bf16.mxu0 0
      %1060 = vmatpush1.bf16.msra.mxu0 0
      %1061 = vmatprep.subr.bf16.mxu0 0
      %1062 = vmatpush1.bf16.msra.mxu0 0
      %1063 = vmatprep.subr.bf16.mxu0 0
      %1064 = vmatpush1.bf16.msra.mxu0 0
      %1065 = vmatprep.subr.bf16.mxu0 0
      %1066 = vmatpush1.bf16.msra.mxu0 0
      %1067 = vmatprep.subr.bf16.mxu0 0
      %1068 = vmatpush1.bf16.msra.mxu0 %v1051
      %1069 = vmatprep.subr.bf16.mxu0 0
      %1070 = vmatpush2.bf16.msra.mxu0 0
      %1071 = vmatprep.subr.bf16.mxu0 0
      %1072 = vmatpush2.bf16.msra.mxu0 0
      %1073 = vmatprep.subr.bf16.mxu0 0
      %1074 = vmatpush2.bf16.msra.mxu0 0
      %1075 = vmatprep.subr.bf16.mxu0 0
      %1076 = vmatpush2.bf16.msra.mxu0 0
      %1077 = vmatprep.subr.bf16.mxu0 0
      %1078 = vmatpush2.bf16.msra.mxu0 0
      %1079 = vmatprep.subr.bf16.mxu0 0
      %1080 = vmatpush2.bf16.msra.mxu0 0
      %1081 = vmatprep.subr.bf16.mxu0 0
      %1082 = vmatpush2.bf16.msra.mxu0 0
      %1083 = vmatprep.subr.bf16.mxu0 0
      %1084 = vmatpush2.bf16.msra.mxu0 0
      %1085 = vmatprep.mubr.bf16.mxu0 0
      %1086 = vmatmul.mubr.bf16.gmra.mxu0 %v1021
      %v1087 = vpop.f32.mrf.mxu0
      %v1088 = vadd.f32 0.0, %v1087
      %v1089 = vpop.f32.mrf.mxu0
      %v1090 = vpop.f32.mrf.mxu0
      %v1091 = vadd.f32 0.0, %v1090
      %v1092 = vpop.f32.mrf.mxu0
      %1093 = vmatprep.mubr.bf16.mxu0 0
      %1094 = vmatmul.mubr.bf16.gmra.mxu0 %v1024
      %v1095 = vpop.f32.mrf.mxu0
      %v1096 = vadd.f32 0.0, %v1095
      %v1097 = vpop.f32.mrf.mxu0
      %v1098 = vpop.f32.mrf.mxu0
      %v1099 = vadd.f32 0.0, %v1098
      %v1100 = vpop.f32.mrf.mxu0
      %1101 = vmatprep.mubr.bf16.mxu0 0
      %1102 = vmatmul.mubr.bf16.gmra.mxu0 %v1027
      %v1103 = vpop.f32.mrf.mxu0
      %v1104 = vadd.f32 0.0, %v1103
      %v1105 = vpop.f32.mrf.mxu0
      %v1106 = vpop.f32.mrf.mxu0
      %v1107 = vadd.f32 0.0, %v1106
      %v1108 = vpop.f32.mrf.mxu0
      %1109 = vmatprep.mubr.bf16.mxu0 0
      %1110 = vmatmul.mubr.bf16.gmra.mxu0 %v1030
      %v1111 = vpop.f32.mrf.mxu0
      %v1112 = vadd.f32 0.0, %v1111
      %v1113 = vpop.f32.mrf.mxu0
      %v1114 = vpop.f32.mrf.mxu0
      %v1115 = vadd.f32 0.0, %v1114
      %v1116 = vpop.f32.mrf.mxu0
      %1117 = vmatprep.mubr.bf16.mxu0 0
      %1118 = vmatmul.mubr.bf16.gmra.mxu0 %v1033
      %v1119 = vpop.f32.mrf.mxu0
      %v1120 = vadd.f32 0.0, %v1119
      %v1121 = vpop.f32.mrf.mxu0
      %v1122 = vpop.f32.mrf.mxu0
      %v1123 = vadd.f32 0.0, %v1122
      %v1124 = vpop.f32.mrf.mxu0
      %1125 = vmatprep.mubr.bf16.mxu0 0
      %1126 = vmatmul.mubr.bf16.gmra.mxu0 %v1036
      %v1127 = vpop.f32.mrf.mxu0
      %v1128 = vadd.f32 0.0, %v1127
      %v1129 = vpop.f32.mrf.mxu0
      %v1130 = vpop.f32.mrf.mxu0
      %v1131 = vadd.f32 0.0, %v1130
      %v1132 = vpop.f32.mrf.mxu0
      %1133 = vmatprep.mubr.bf16.mxu0 0
      %1134 = vmatmul.mubr.bf16.gmra.mxu0 %v1039
      %v1135 = vpop.f32.mrf.mxu0
      %v1136 = vadd.f32 0.0, %v1135
      %v1137 = vpop.f32.mrf.mxu0
      %v1138 = vpop.f32.mrf.mxu0
      %v1139 = vadd.f32 0.0, %v1138
      %v1140 = vpop.f32.mrf.mxu0
      %1141 = vmatprep.mubr.bf16.mxu0 0
      %1142 = vmatmul.mubr.bf16.gmra.mxu0 %v1042
      %v1143 = vpop.f32.mrf.mxu0
      %v1144 = vadd.f32 0.0, %v1143
      %v1145 = vpop.f32.mrf.mxu0
      %v1146 = vpop.f32.mrf.mxu0
      %v1147 = vadd.f32 0.0, %v1146
      %v1148 = vpop.f32.mrf.mxu0
      %1149 = vmatprep.mubr.bf16.mxu0 0
      %1150 = vmatmul.mubr.bf16.gmra.mxu0 %v1045
      %v1151 = vpop.f32.mrf.mxu0
      %v1152 = vadd.f32 0.0, %v1151
      %v1153 = vpop.f32.mrf.mxu0
      %v1154 = vpop.f32.mrf.mxu0
      %v1155 = vadd.f32 0.0, %v1154
      %v1156 = vpop.f32.mrf.mxu0
      %1157 = vmatprep.mubr.bf16.mxu0 0
      %1158 = vmatmul.mubr.bf16.gmra.mxu0 %v1048
      %v1159 = vpop.f32.mrf.mxu0
      %v1160 = vadd.f32 0.0, %v1159
      %v1161 = vpop.f32.mrf.mxu0
      %v1162 = vpop.f32.mrf.mxu0
      %v1163 = vadd.f32 0.0, %v1162
      %v1164 = vpop.f32.mrf.mxu0
      %1165 = vdwg.mxu0
      %v1166 = vadd.f32 %v827, %v1088
      %v1167 = vadd.f32 %v830, %v1091
      %v1168 = vadd.f32 %v835, %v1096
      %v1169 = vadd.f32 %v838, %v1099
      %v1170 = vadd.f32 %v843, %v1104
      %v1171 = vadd.f32 %v846, %v1107
      %v1172 = vadd.f32 %v851, %v1112
      %v1173 = vadd.f32 %v854, %v1115
      %v1174 = vadd.f32 %v859, %v1120
      %v1175 = vadd.f32 %v862, %v1123
      %v1176 = vadd.f32 %v867, %v1128
      %v1177 = vadd.f32 %v870, %v1131
      %v1178 = vadd.f32 %v875, %v1136
      %v1179 = vadd.f32 %v878, %v1139
      %v1180 = vadd.f32 %v883, %v1144
      %v1181 = vadd.f32 %v886, %v1147
      %v1182 = vadd.f32 %v891, %v1152
      %v1183 = vadd.f32 %v894, %v1155
      %v1184 = vadd.f32 %v899, %v1160
      %v1185 = vadd.f32 %v902, %v1163
      %s1186 = sadd.s32 %s251, 1
      %s1187 = smul.u32 %s1186, 3
      %s1188 = smul.addr %s1187, 4
      %s1189 = scalar_lea.vmem %s238, %s1188
      %v1190 = vld [vmem:[%s1189] sm:$0xf]
      %v1191 = vld [vmem:[%s1189 + $0x4] sm:$0xf]
      %v1192 = vld [vmem:[%s1189 + $0x8] sm:$0x1]
      %v1193 = vld [vmem:[%s1189 + $0xc] sm:$0xf]
      %v1194 = vld [vmem:[%s1189 + $0x10] sm:$0xf]
      %v1195 = vld [vmem:[%s1189 + $0x14] sm:$0x1]
      %v1196 = vld [vmem:[%s1189 + $0x18] sm:$0xf]
      %v1197 = vld [vmem:[%s1189 + $0x1c] sm:$0xf]
      %v1198 = vld [vmem:[%s1189 + $0x20] sm:$0x1]
      %v1199 = vld [vmem:[%s1189 + $0x24] sm:$0xf]
      %v1200 = vld [vmem:[%s1189 + $0x28] sm:$0xf]
      %v1201 = vld [vmem:[%s1189 + $0x2c] sm:$0x1]
      %v1202 = vld [vmem:[%s1189 + $0x30] sm:$0xf]
      %v1203 = vld [vmem:[%s1189 + $0x34] sm:$0xf]
      %v1204 = vld [vmem:[%s1189 + $0x38] sm:$0x1]
      %v1205 = vld [vmem:[%s1189 + $0x3c] sm:$0xf]
      %v1206 = vld [vmem:[%s1189 + $0x40] sm:$0xf]
      %v1207 = vld [vmem:[%s1189 + $0x44] sm:$0x1]
      %v1208 = vld [vmem:[%s1189 + $0x48] sm:$0xf]
      %v1209 = vld [vmem:[%s1189 + $0x4c] sm:$0xf]
      %v1210 = vld [vmem:[%s1189 + $0x50] sm:$0x1]
      %v1211 = vld [vmem:[%s1189 + $0x54] sm:$0xf]
      %v1212 = vld [vmem:[%s1189 + $0x58] sm:$0xf]
      %v1213 = vld [vmem:[%s1189 + $0x5c] sm:$0x1]
      %v1214 = vld [vmem:[%s1189 + $0x60] sm:$0xf]
      %v1215 = vld [vmem:[%s1189 + $0x64] sm:$0xf]
      %v1216 = vld [vmem:[%s1189 + $0x68] sm:$0x1]
      %v1217 = vld [vmem:[%s1189 + $0x6c] sm:$0xf]
      %v1218 = vld [vmem:[%s1189 + $0x70] sm:$0xf]
      %v1219 = vld [vmem:[%s1189 + $0x74] sm:$0x1]
      %s1220 = scalar_lea.vmem %s1, 12
      %v1221 = vld [vmem:[%s1220] sm:$0xf]
      %v1242 = vunpack.c.l.b16 %v1190
      %v1243 = vunpack.c.l.b16 %v1191
      %v1244 = vunpack.c.l.b16 %v1193
      %v1245 = vunpack.c.l.b16 %v1194
      %v1246 = vunpack.c.l.b16 %v1196
      %v1247 = vunpack.c.l.b16 %v1197
      %v1248 = vunpack.c.l.b16 %v1199
      %v1249 = vunpack.c.l.b16 %v1200
      %v1250 = vunpack.c.l.b16 %v1202
      %v1251 = vunpack.c.l.b16 %v1203
      %v1252 = vunpack.c.l.b16 %v1205
      %v1253 = vunpack.c.l.b16 %v1206
      %v1254 = vunpack.c.l.b16 %v1208
      %v1255 = vunpack.c.l.b16 %v1209
      %v1256 = vunpack.c.l.b16 %v1211
      %v1257 = vunpack.c.l.b16 %v1212
      %v1258 = vunpack.c.l.b16 %v1214
      %v1259 = vunpack.c.l.b16 %v1215
      %v1260 = vunpack.c.l.b16 %v1217
      %v1261 = vunpack.c.l.b16 %v1218
      %v1262 = vpack.c.b16 %v1243, %v1242
      %v1263 = vpack.c.b16 %v1245, %v1244
      %v1264 = vpack.c.b16 %v1247, %v1246
      %v1265 = vpack.c.b16 %v1249, %v1248
      %v1266 = vpack.c.b16 %v1251, %v1250
      %v1267 = vpack.c.b16 %v1253, %v1252
      %v1268 = vpack.c.b16 %v1255, %v1254
      %v1269 = vpack.c.b16 %v1257, %v1256
      %v1270 = vpack.c.b16 %v1259, %v1258
      %v1271 = vpack.c.b16 %v1261, %v1260
      %v1273 = vsel %vm561, %v1262, 0
      %v1276 = vsel %vm561, %v1263, 0
      %v1279 = vsel %vm561, %v1264, 0
      %v1282 = vsel %vm561, %v1265, 0
      %v1285 = vsel %vm561, %v1266, 0
      %v1288 = vsel %vm561, %v1267, 0
      %v1291 = vsel %vm561, %v1268, 0
      %v1294 = vsel %vm561, %v1269, 0
      %v1297 = vsel %vm561, %v1270, 0
      %v1300 = vsel %vm561, %v1271, 0
      %v1303 = vsel %vm592, %v1221, 0
      %1305 = vmatprep.subr.bf16.mxu0 0
      %1306 = vmatpush1.bf16.msra.mxu0 0
      %1307 = vmatprep.subr.bf16.mxu0 0
      %1308 = vmatpush1.bf16.msra.mxu0 0
      %1309 = vmatprep.subr.bf16.mxu0 0
      %1310 = vmatpush1.bf16.msra.mxu0 0
      %1311 = vmatprep.subr.bf16.mxu0 0
      %1312 = vmatpush1.bf16.msra.mxu0 0
      %1313 = vmatprep.subr.bf16.mxu0 0
      %1314 = vmatpush1.bf16.msra.mxu0 0
      %1315 = vmatprep.subr.bf16.mxu0 0
      %1316 = vmatpush1.bf16.msra.mxu0 0
      %1317 = vmatprep.subr.bf16.mxu0 0
      %1318 = vmatpush1.bf16.msra.mxu0 0
      %1319 = vmatprep.subr.bf16.mxu0 0
      %1320 = vmatpush1.bf16.msra.mxu0 %v1303
      %1321 = vmatprep.subr.bf16.mxu0 0
      %1322 = vmatpush2.bf16.msra.mxu0 0
      %1323 = vmatprep.subr.bf16.mxu0 0
      %1324 = vmatpush2.bf16.msra.mxu0 0
      %1325 = vmatprep.subr.bf16.mxu0 0
      %1326 = vmatpush2.bf16.msra.mxu0 0
      %1327 = vmatprep.subr.bf16.mxu0 0
      %1328 = vmatpush2.bf16.msra.mxu0 0
      %1329 = vmatprep.subr.bf16.mxu0 0
      %1330 = vmatpush2.bf16.msra.mxu0 0
      %1331 = vmatprep.subr.bf16.mxu0 0
      %1332 = vmatpush2.bf16.msra.mxu0 0
      %1333 = vmatprep.subr.bf16.mxu0 0
      %1334 = vmatpush2.bf16.msra.mxu0 0
      %1335 = vmatprep.subr.bf16.mxu0 0
      %1336 = vmatpush2.bf16.msra.mxu0 0
      %1337 = vmatprep.mubr.bf16.mxu0 0
      %1338 = vmatmul.mubr.bf16.gmra.mxu0 %v1273
      %v1339 = vpop.f32.mrf.mxu0
      %v1340 = vadd.f32 0.0, %v1339
      %v1341 = vpop.f32.mrf.mxu0
      %v1342 = vpop.f32.mrf.mxu0
      %v1343 = vadd.f32 0.0, %v1342
      %v1344 = vpop.f32.mrf.mxu0
      %1345 = vmatprep.mubr.bf16.mxu0 0
      %1346 = vmatmul.mubr.bf16.gmra.mxu0 %v1276
      %v1347 = vpop.f32.mrf.mxu0
      %v1348 = vadd.f32 0.0, %v1347
      %v1349 = vpop.f32.mrf.mxu0
      %v1350 = vpop.f32.mrf.mxu0
      %v1351 = vadd.f32 0.0, %v1350
      %v1352 = vpop.f32.mrf.mxu0
      %1353 = vmatprep.mubr.bf16.mxu0 0
      %1354 = vmatmul.mubr.bf16.gmra.mxu0 %v1279
      %v1355 = vpop.f32.mrf.mxu0
      %v1356 = vadd.f32 0.0, %v1355
      %v1357 = vpop.f32.mrf.mxu0
      %v1358 = vpop.f32.mrf.mxu0
      %v1359 = vadd.f32 0.0, %v1358
      %v1360 = vpop.f32.mrf.mxu0
      %1361 = vmatprep.mubr.bf16.mxu0 0
      %1362 = vmatmul.mubr.bf16.gmra.mxu0 %v1282
      %v1363 = vpop.f32.mrf.mxu0
      %v1364 = vadd.f32 0.0, %v1363
      %v1365 = vpop.f32.mrf.mxu0
      %v1366 = vpop.f32.mrf.mxu0
      %v1367 = vadd.f32 0.0, %v1366
      %v1368 = vpop.f32.mrf.mxu0
      %1369 = vmatprep.mubr.bf16.mxu0 0
      %1370 = vmatmul.mubr.bf16.gmra.mxu0 %v1285
      %v1371 = vpop.f32.mrf.mxu0
      %v1372 = vadd.f32 0.0, %v1371
      %v1373 = vpop.f32.mrf.mxu0
      %v1374 = vpop.f32.mrf.mxu0
      %v1375 = vadd.f32 0.0, %v1374
      %v1376 = vpop.f32.mrf.mxu0
      %1377 = vmatprep.mubr.bf16.mxu0 0
      %1378 = vmatmul.mubr.bf16.gmra.mxu0 %v1288
      %v1379 = vpop.f32.mrf.mxu0
      %v1380 = vadd.f32 0.0, %v1379
      %v1381 = vpop.f32.mrf.mxu0
      %v1382 = vpop.f32.mrf.mxu0
      %v1383 = vadd.f32 0.0, %v1382
      %v1384 = vpop.f32.mrf.mxu0
      %1385 = vmatprep.mubr.bf16.mxu0 0
      %1386 = vmatmul.mubr.bf16.gmra.mxu0 %v1291
      %v1387 = vpop.f32.mrf.mxu0
      %v1388 = vadd.f32 0.0, %v1387
      %v1389 = vpop.f32.mrf.mxu0
      %v1390 = vpop.f32.mrf.mxu0
      %v1391 = vadd.f32 0.0, %v1390
      %v1392 = vpop.f32.mrf.mxu0
      %1393 = vmatprep.mubr.bf16.mxu0 0
      %1394 = vmatmul.mubr.bf16.gmra.mxu0 %v1294
      %v1395 = vpop.f32.mrf.mxu0
      %v1396 = vadd.f32 0.0, %v1395
      %v1397 = vpop.f32.mrf.mxu0
      %v1398 = vpop.f32.mrf.mxu0
      %v1399 = vadd.f32 0.0, %v1398
      %v1400 = vpop.f32.mrf.mxu0
      %1401 = vmatprep.mubr.bf16.mxu0 0
      %1402 = vmatmul.mubr.bf16.gmra.mxu0 %v1297
      %v1403 = vpop.f32.mrf.mxu0
      %v1404 = vadd.f32 0.0, %v1403
      %v1405 = vpop.f32.mrf.mxu0
      %v1406 = vpop.f32.mrf.mxu0
      %v1407 = vadd.f32 0.0, %v1406
      %v1408 = vpop.f32.mrf.mxu0
      %1409 = vmatprep.mubr.bf16.mxu0 0
      %1410 = vmatmul.mubr.bf16.gmra.mxu0 %v1300
      %v1411 = vpop.f32.mrf.mxu0
      %v1412 = vadd.f32 0.0, %v1411
      %v1413 = vpop.f32.mrf.mxu0
      %v1414 = vpop.f32.mrf.mxu0
      %v1415 = vadd.f32 0.0, %v1414
      %v1416 = vpop.f32.mrf.mxu0
      %1417 = vdwg.mxu0
      %v1418 = vadd.f32 %v1166, %v1340
      %v1419 = vadd.f32 %v1167, %v1343
      %v1420 = vadd.f32 %v1168, %v1348
      %v1421 = vadd.f32 %v1169, %v1351
      %v1422 = vadd.f32 %v1170, %v1356
      %v1423 = vadd.f32 %v1171, %v1359
      %v1424 = vadd.f32 %v1172, %v1364
      %v1425 = vadd.f32 %v1173, %v1367
      %v1426 = vadd.f32 %v1174, %v1372
      %v1427 = vadd.f32 %v1175, %v1375
      %v1428 = vadd.f32 %v1176, %v1380
      %v1429 = vadd.f32 %v1177, %v1383
      %v1430 = vadd.f32 %v1178, %v1388
      %v1431 = vadd.f32 %v1179, %v1391
      %v1432 = vadd.f32 %v1180, %v1396
      %v1433 = vadd.f32 %v1181, %v1399
      %v1434 = vadd.f32 %v1182, %v1404
      %v1435 = vadd.f32 %v1183, %v1407
      %v1436 = vadd.f32 %v1184, %v1412
      %v1437 = vadd.f32 %v1185, %v1415
      %s1438 = scalar_lea.vmem %s1, 16
      %v1439 = vld [vmem:[%s1438] sm:$0xf]
      %v1441 = vshrl.u32 %v1190, 16
      %v1443 = vrot.slane %v1441, 4
      %v1444 = vshll.u32 %v1190, 16
      %v1446 = vrot.slane %v1444, 5
      %v1447 = vor.u32 %v1443, %v1446
      %v1448 = vrot.slane %v1447, 4
      %v1450 = vshll.u32 %v1191, 16
      %v1452 = vrot.slane %v1450, 5
      %v1453 = vsel %vm290, %v1448, %v1452
      %v1454 = vshrl.u32 %v1191, 16
      %v1456 = vrot.slane %v1454, 4
      %v1457 = vor.u32 %v1456, %v1452
      %v1458 = vrot.slane %v1457, 4
      %v1460 = vshll.u32 %v1192, 16
      %v1462 = vrot.slane %v1460, 5
      %v1463 = vsel %vm290, %v1458, %v1462
      %v1465 = vshrl.u32 %v1193, 16
      %v1467 = vrot.slane %v1465, 4
      %v1468 = vshll.u32 %v1193, 16
      %v1470 = vrot.slane %v1468, 5
      %v1471 = vor.u32 %v1467, %v1470
      %v1472 = vrot.slane %v1471, 4
      %v1474 = vshll.u32 %v1194, 16
      %v1476 = vrot.slane %v1474, 5
      %v1477 = vsel %vm290, %v1472, %v1476
      %v1478 = vshrl.u32 %v1194, 16
      %v1480 = vrot.slane %v1478, 4
      %v1481 = vor.u32 %v1480, %v1476
      %v1482 = vrot.slane %v1481, 4
      %v1484 = vshll.u32 %v1195, 16
      %v1486 = vrot.slane %v1484, 5
      %v1487 = vsel %vm290, %v1482, %v1486
      %v1489 = vshrl.u32 %v1196, 16
      %v1491 = vrot.slane %v1489, 4
      %v1492 = vshll.u32 %v1196, 16
      %v1494 = vrot.slane %v1492, 5
      %v1495 = vor.u32 %v1491, %v1494
      %v1496 = vrot.slane %v1495, 4
      %v1498 = vshll.u32 %v1197, 16
      %v1500 = vrot.slane %v1498, 5
      %v1501 = vsel %vm290, %v1496, %v1500
      %v1502 = vshrl.u32 %v1197, 16
      %v1504 = vrot.slane %v1502, 4
      %v1505 = vor.u32 %v1504, %v1500
      %v1506 = vrot.slane %v1505, 4
      %v1508 = vshll.u32 %v1198, 16
      %v1510 = vrot.slane %v1508, 5
      %v1511 = vsel %vm290, %v1506, %v1510
      %v1513 = vshrl.u32 %v1199, 16
      %v1515 = vrot.slane %v1513, 4
      %v1516 = vshll.u32 %v1199, 16
      %v1518 = vrot.slane %v1516, 5
      %v1519 = vor.u32 %v1515, %v1518
      %v1520 = vrot.slane %v1519, 4
      %v1522 = vshll.u32 %v1200, 16
      %v1524 = vrot.slane %v1522, 5
      %v1525 = vsel %vm290, %v1520, %v1524
      %v1526 = vshrl.u32 %v1200, 16
      %v1528 = vrot.slane %v1526, 4
      %v1529 = vor.u32 %v1528, %v1524
      %v1530 = vrot.slane %v1529, 4
      %v1532 = vshll.u32 %v1201, 16
      %v1534 = vrot.slane %v1532, 5
      %v1535 = vsel %vm290, %v1530, %v1534
      %v1537 = vshrl.u32 %v1202, 16
      %v1539 = vrot.slane %v1537, 4
      %v1540 = vshll.u32 %v1202, 16
      %v1542 = vrot.slane %v1540, 5
      %v1543 = vor.u32 %v1539, %v1542
      %v1544 = vrot.slane %v1543, 4
      %v1546 = vshll.u32 %v1203, 16
      %v1548 = vrot.slane %v1546, 5
      %v1549 = vsel %vm290, %v1544, %v1548
      %v1550 = vshrl.u32 %v1203, 16
      %v1552 = vrot.slane %v1550, 4
      %v1553 = vor.u32 %v1552, %v1548
      %v1554 = vrot.slane %v1553, 4
      %v1556 = vshll.u32 %v1204, 16
      %v1558 = vrot.slane %v1556, 5
      %v1559 = vsel %vm290, %v1554, %v1558
      %v1561 = vshrl.u32 %v1205, 16
      %v1563 = vrot.slane %v1561, 4
      %v1564 = vshll.u32 %v1205, 16
      %v1566 = vrot.slane %v1564, 5
      %v1567 = vor.u32 %v1563, %v1566
      %v1568 = vrot.slane %v1567, 4
      %v1570 = vshll.u32 %v1206, 16
      %v1572 = vrot.slane %v1570, 5
      %v1573 = vsel %vm290, %v1568, %v1572
      %v1574 = vshrl.u32 %v1206, 16
      %v1576 = vrot.slane %v1574, 4
      %v1577 = vor.u32 %v1576, %v1572
      %v1578 = vrot.slane %v1577, 4
      %v1580 = vshll.u32 %v1207, 16
      %v1582 = vrot.slane %v1580, 5
      %v1583 = vsel %vm290, %v1578, %v1582
      %v1585 = vshrl.u32 %v1208, 16
      %v1587 = vrot.slane %v1585, 4
      %v1588 = vshll.u32 %v1208, 16
      %v1590 = vrot.slane %v1588, 5
      %v1591 = vor.u32 %v1587, %v1590
      %v1592 = vrot.slane %v1591, 4
      %v1594 = vshll.u32 %v1209, 16
      %v1596 = vrot.slane %v1594, 5
      %v1597 = vsel %vm290, %v1592, %v1596
      %v1598 = vshrl.u32 %v1209, 16
      %v1600 = vrot.slane %v1598, 4
      %v1601 = vor.u32 %v1600, %v1596
      %v1602 = vrot.slane %v1601, 4
      %v1604 = vshll.u32 %v1210, 16
      %v1606 = vrot.slane %v1604, 5
      %v1607 = vsel %vm290, %v1602, %v1606
      %v1609 = vshrl.u32 %v1211, 16
      %v1611 = vrot.slane %v1609, 4
      %v1612 = vshll.u32 %v1211, 16
      %v1614 = vrot.slane %v1612, 5
      %v1615 = vor.u32 %v1611, %v1614
      %v1616 = vrot.slane %v1615, 4
      %v1618 = vshll.u32 %v1212, 16
      %v1620 = vrot.slane %v1618, 5
      %v1621 = vsel %vm290, %v1616, %v1620
      %v1622 = vshrl.u32 %v1212, 16
      %v1624 = vrot.slane %v1622, 4
      %v1625 = vor.u32 %v1624, %v1620
      %v1626 = vrot.slane %v1625, 4
      %v1628 = vshll.u32 %v1213, 16
      %v1630 = vrot.slane %v1628, 5
      %v1631 = vsel %vm290, %v1626, %v1630
      %v1633 = vshrl.u32 %v1214, 16
      %v1635 = vrot.slane %v1633, 4
      %v1636 = vshll.u32 %v1214, 16
      %v1638 = vrot.slane %v1636, 5
      %v1639 = vor.u32 %v1635, %v1638
      %v1640 = vrot.slane %v1639, 4
      %v1642 = vshll.u32 %v1215, 16
      %v1644 = vrot.slane %v1642, 5
      %v1645 = vsel %vm290, %v1640, %v1644
      %v1646 = vshrl.u32 %v1215, 16
      %v1648 = vrot.slane %v1646, 4
      %v1649 = vor.u32 %v1648, %v1644
      %v1650 = vrot.slane %v1649, 4
      %v1652 = vshll.u32 %v1216, 16
      %v1654 = vrot.slane %v1652, 5
      %v1655 = vsel %vm290, %v1650, %v1654
      %v1657 = vshrl.u32 %v1217, 16
      %v1659 = vrot.slane %v1657, 4
      %v1660 = vshll.u32 %v1217, 16
      %v1662 = vrot.slane %v1660, 5
      %v1663 = vor.u32 %v1659, %v1662
      %v1664 = vrot.slane %v1663, 4
      %v1666 = vshll.u32 %v1218, 16
      %v1668 = vrot.slane %v1666, 5
      %v1669 = vsel %vm290, %v1664, %v1668
      %v1670 = vshrl.u32 %v1218, 16
      %v1672 = vrot.slane %v1670, 4
      %v1673 = vor.u32 %v1672, %v1668
      %v1674 = vrot.slane %v1673, 4
      %v1676 = vshll.u32 %v1219, 16
      %v1678 = vrot.slane %v1676, 5
      %v1679 = vsel %vm290, %v1674, %v1678
      %v1680 = vunpack.c.l.b16 %v1453
      %v1681 = vunpack.c.l.b16 %v1463
      %v1682 = vunpack.c.l.b16 %v1477
      %v1683 = vunpack.c.l.b16 %v1487
      %v1684 = vunpack.c.l.b16 %v1501
      %v1685 = vunpack.c.l.b16 %v1511
      %v1686 = vunpack.c.l.b16 %v1525
      %v1687 = vunpack.c.l.b16 %v1535
      %v1688 = vunpack.c.l.b16 %v1549
      %v1689 = vunpack.c.l.b16 %v1559
      %v1690 = vunpack.c.l.b16 %v1573
      %v1691 = vunpack.c.l.b16 %v1583
      %v1692 = vunpack.c.l.b16 %v1597
      %v1693 = vunpack.c.l.b16 %v1607
      %v1694 = vunpack.c.l.b16 %v1621
      %v1695 = vunpack.c.l.b16 %v1631
      %v1696 = vunpack.c.l.b16 %v1645
      %v1697 = vunpack.c.l.b16 %v1655
      %v1698 = vunpack.c.l.b16 %v1669
      %v1699 = vunpack.c.l.b16 %v1679
      %v1700 = vpack.c.b16 %v1681, %v1680
      %v1701 = vpack.c.b16 %v1683, %v1682
      %v1702 = vpack.c.b16 %v1685, %v1684
      %v1703 = vpack.c.b16 %v1687, %v1686
      %v1704 = vpack.c.b16 %v1689, %v1688
      %v1705 = vpack.c.b16 %v1691, %v1690
      %v1706 = vpack.c.b16 %v1693, %v1692
      %v1707 = vpack.c.b16 %v1695, %v1694
      %v1708 = vpack.c.b16 %v1697, %v1696
      %v1709 = vpack.c.b16 %v1699, %v1698
      %v1711 = vsel %vm561, %v1700, 0
      %v1714 = vsel %vm561, %v1701, 0
      %v1717 = vsel %vm561, %v1702, 0
      %v1720 = vsel %vm561, %v1703, 0
      %v1723 = vsel %vm561, %v1704, 0
      %v1726 = vsel %vm561, %v1705, 0
      %v1729 = vsel %vm561, %v1706, 0
      %v1732 = vsel %vm561, %v1707, 0
      %v1735 = vsel %vm561, %v1708, 0
      %v1738 = vsel %vm561, %v1709, 0
      %v1741 = vsel %vm592, %v1439, 0
      %1743 = vmatprep.subr.bf16.mxu0 0
      %1744 = vmatpush1.bf16.msra.mxu0 0
      %1745 = vmatprep.subr.bf16.mxu0 0
      %1746 = vmatpush1.bf16.msra.mxu0 0
      %1747 = vmatprep.subr.bf16.mxu0 0
      %1748 = vmatpush1.bf16.msra.mxu0 0
      %1749 = vmatprep.subr.bf16.mxu0 0
      %1750 = vmatpush1.bf16.msra.mxu0 0
      %1751 = vmatprep.subr.bf16.mxu0 0
      %1752 = vmatpush1.bf16.msra.mxu0 0
      %1753 = vmatprep.subr.bf16.mxu0 0
      %1754 = vmatpush1.bf16.msra.mxu0 0
      %1755 = vmatprep.subr.bf16.mxu0 0
      %1756 = vmatpush1.bf16.msra.mxu0 0
      %1757 = vmatprep.subr.bf16.mxu0 0
      %1758 = vmatpush1.bf16.msra.mxu0 %v1741
      %1759 = vmatprep.subr.bf16.mxu0 0
      %1760 = vmatpush2.bf16.msra.mxu0 0
      %1761 = vmatprep.subr.bf16.mxu0 0
      %1762 = vmatpush2.bf16.msra.mxu0 0
      %1763 = vmatprep.subr.bf16.mxu0 0
      %1764 = vmatpush2.bf16.msra.mxu0 0
      %1765 = vmatprep.subr.bf16.mxu0 0
      %1766 = vmatpush2.bf16.msra.mxu0 0
      %1767 = vmatprep.subr.bf16.mxu0 0
      %1768 = vmatpush2.bf16.msra.mxu0 0
      %1769 = vmatprep.subr.bf16.mxu0 0
      %1770 = vmatpush2.bf16.msra.mxu0 0
      %1771 = vmatprep.subr.bf16.mxu0 0
      %1772 = vmatpush2.bf16.msra.mxu0 0
      %1773 = vmatprep.subr.bf16.mxu0 0
      %1774 = vmatpush2.bf16.msra.mxu0 0
      %1775 = vmatprep.mubr.bf16.mxu0 0
      %1776 = vmatmul.mubr.bf16.gmra.mxu0 %v1711
      %v1777 = vpop.f32.mrf.mxu0
      %v1778 = vadd.f32 0.0, %v1777
      %v1779 = vpop.f32.mrf.mxu0
      %v1780 = vpop.f32.mrf.mxu0
      %v1781 = vadd.f32 0.0, %v1780
      %v1782 = vpop.f32.mrf.mxu0
      %1783 = vmatprep.mubr.bf16.mxu0 0
      %1784 = vmatmul.mubr.bf16.gmra.mxu0 %v1714
      %v1785 = vpop.f32.mrf.mxu0
      %v1786 = vadd.f32 0.0, %v1785
      %v1787 = vpop.f32.mrf.mxu0
      %v1788 = vpop.f32.mrf.mxu0
      %v1789 = vadd.f32 0.0, %v1788
      %v1790 = vpop.f32.mrf.mxu0
      %1791 = vmatprep.mubr.bf16.mxu0 0
      %1792 = vmatmul.mubr.bf16.gmra.mxu0 %v1717
      %v1793 = vpop.f32.mrf.mxu0
      %v1794 = vadd.f32 0.0, %v1793
      %v1795 = vpop.f32.mrf.mxu0
      %v1796 = vpop.f32.mrf.mxu0
      %v1797 = vadd.f32 0.0, %v1796
      %v1798 = vpop.f32.mrf.mxu0
      %1799 = vmatprep.mubr.bf16.mxu0 0
      %1800 = vmatmul.mubr.bf16.gmra.mxu0 %v1720
      %v1801 = vpop.f32.mrf.mxu0
      %v1802 = vadd.f32 0.0, %v1801
      %v1803 = vpop.f32.mrf.mxu0
      %v1804 = vpop.f32.mrf.mxu0
      %v1805 = vadd.f32 0.0, %v1804
      %v1806 = vpop.f32.mrf.mxu0
      %1807 = vmatprep.mubr.bf16.mxu0 0
      %1808 = vmatmul.mubr.bf16.gmra.mxu0 %v1723
      %v1809 = vpop.f32.mrf.mxu0
      %v1810 = vadd.f32 0.0, %v1809
      %v1811 = vpop.f32.mrf.mxu0
      %v1812 = vpop.f32.mrf.mxu0
      %v1813 = vadd.f32 0.0, %v1812
      %v1814 = vpop.f32.mrf.mxu0
      %1815 = vmatprep.mubr.bf16.mxu0 0
      %1816 = vmatmul.mubr.bf16.gmra.mxu0 %v1726
      %v1817 = vpop.f32.mrf.mxu0
      %v1818 = vadd.f32 0.0, %v1817
      %v1819 = vpop.f32.mrf.mxu0
      %v1820 = vpop.f32.mrf.mxu0
      %v1821 = vadd.f32 0.0, %v1820
      %v1822 = vpop.f32.mrf.mxu0
      %1823 = vmatprep.mubr.bf16.mxu0 0
      %1824 = vmatmul.mubr.bf16.gmra.mxu0 %v1729
      %v1825 = vpop.f32.mrf.mxu0
      %v1826 = vadd.f32 0.0, %v1825
      %v1827 = vpop.f32.mrf.mxu0
      %v1828 = vpop.f32.mrf.mxu0
      %v1829 = vadd.f32 0.0, %v1828
      %v1830 = vpop.f32.mrf.mxu0
      %1831 = vmatprep.mubr.bf16.mxu0 0
      %1832 = vmatmul.mubr.bf16.gmra.mxu0 %v1732
      %v1833 = vpop.f32.mrf.mxu0
      %v1834 = vadd.f32 0.0, %v1833
      %v1835 = vpop.f32.mrf.mxu0
      %v1836 = vpop.f32.mrf.mxu0
      %v1837 = vadd.f32 0.0, %v1836
      %v1838 = vpop.f32.mrf.mxu0
      %1839 = vmatprep.mubr.bf16.mxu0 0
      %1840 = vmatmul.mubr.bf16.gmra.mxu0 %v1735
      %v1841 = vpop.f32.mrf.mxu0
      %v1842 = vadd.f32 0.0, %v1841
      %v1843 = vpop.f32.mrf.mxu0
      %v1844 = vpop.f32.mrf.mxu0
      %v1845 = vadd.f32 0.0, %v1844
      %v1846 = vpop.f32.mrf.mxu0
      %1847 = vmatprep.mubr.bf16.mxu0 0
      %1848 = vmatmul.mubr.bf16.gmra.mxu0 %v1738
      %v1849 = vpop.f32.mrf.mxu0
      %v1850 = vadd.f32 0.0, %v1849
      %v1851 = vpop.f32.mrf.mxu0
      %v1852 = vpop.f32.mrf.mxu0
      %v1853 = vadd.f32 0.0, %v1852
      %v1854 = vpop.f32.mrf.mxu0
      %1855 = vdwg.mxu0
      %v1856 = vadd.f32 %v1418, %v1778
      %v1857 = vadd.f32 %v1419, %v1781
      %v1858 = vadd.f32 %v1420, %v1786
      %v1859 = vadd.f32 %v1421, %v1789
      %v1860 = vadd.f32 %v1422, %v1794
      %v1861 = vadd.f32 %v1423, %v1797
      %v1862 = vadd.f32 %v1424, %v1802
      %v1863 = vadd.f32 %v1425, %v1805
      %v1864 = vadd.f32 %v1426, %v1810
      %v1865 = vadd.f32 %v1427, %v1813
      %v1866 = vadd.f32 %v1428, %v1818
      %v1867 = vadd.f32 %v1429, %v1821
      %v1868 = vadd.f32 %v1430, %v1826
      %v1869 = vadd.f32 %v1431, %v1829
      %v1870 = vadd.f32 %v1432, %v1834
      %v1871 = vadd.f32 %v1433, %v1837
      %v1872 = vadd.f32 %v1434, %v1842
      %v1873 = vadd.f32 %v1435, %v1845
      %v1874 = vadd.f32 %v1436, %v1850
      %v1875 = vadd.f32 %v1437, %v1853
      %s1876 = scalar_lea.vmem %s1, 20
      %v1877 = vld [vmem:[%s1876] sm:$0xf]
      %v1888 = vrot.slane %v1190, 5
      %v1889 = vrot.slane %v1888, 4
      %v1890 = vrot.slane %v1191, 5
      %v1891 = vsel %vm919, %v1889, %v1890
      %v1892 = vrot.slane %v1890, 4
      %v1893 = vrot.slane %v1192, 5
      %v1894 = vsel %vm919, %v1892, %v1893
      %v1895 = vrot.slane %v1193, 5
      %v1896 = vrot.slane %v1895, 4
      %v1897 = vrot.slane %v1194, 5
      %v1898 = vsel %vm919, %v1896, %v1897
      %v1899 = vrot.slane %v1897, 4
      %v1900 = vrot.slane %v1195, 5
      %v1901 = vsel %vm919, %v1899, %v1900
      %v1902 = vrot.slane %v1196, 5
      %v1903 = vrot.slane %v1902, 4
      %v1904 = vrot.slane %v1197, 5
      %v1905 = vsel %vm919, %v1903, %v1904
      %v1906 = vrot.slane %v1904, 4
      %v1907 = vrot.slane %v1198, 5
      %v1908 = vsel %vm919, %v1906, %v1907
      %v1909 = vrot.slane %v1199, 5
      %v1910 = vrot.slane %v1909, 4
      %v1911 = vrot.slane %v1200, 5
      %v1912 = vsel %vm919, %v1910, %v1911
      %v1913 = vrot.slane %v1911, 4
      %v1914 = vrot.slane %v1201, 5
      %v1915 = vsel %vm919, %v1913, %v1914
      %v1916 = vrot.slane %v1202, 5
      %v1917 = vrot.slane %v1916, 4
      %v1918 = vrot.slane %v1203, 5
      %v1919 = vsel %vm919, %v1917, %v1918
      %v1920 = vrot.slane %v1918, 4
      %v1921 = vrot.slane %v1204, 5
      %v1922 = vsel %vm919, %v1920, %v1921
      %v1923 = vrot.slane %v1205, 5
      %v1924 = vrot.slane %v1923, 4
      %v1925 = vrot.slane %v1206, 5
      %v1926 = vsel %vm919, %v1924, %v1925
      %v1927 = vrot.slane %v1925, 4
      %v1928 = vrot.slane %v1207, 5
      %v1929 = vsel %vm919, %v1927, %v1928
      %v1930 = vrot.slane %v1208, 5
      %v1931 = vrot.slane %v1930, 4
      %v1932 = vrot.slane %v1209, 5
      %v1933 = vsel %vm919, %v1931, %v1932
      %v1934 = vrot.slane %v1932, 4
      %v1935 = vrot.slane %v1210, 5
      %v1936 = vsel %vm919, %v1934, %v1935
      %v1937 = vrot.slane %v1211, 5
      %v1938 = vrot.slane %v1937, 4
      %v1939 = vrot.slane %v1212, 5
      %v1940 = vsel %vm919, %v1938, %v1939
      %v1941 = vrot.slane %v1939, 4
      %v1942 = vrot.slane %v1213, 5
      %v1943 = vsel %vm919, %v1941, %v1942
      %v1944 = vrot.slane %v1214, 5
      %v1945 = vrot.slane %v1944, 4
      %v1946 = vrot.slane %v1215, 5
      %v1947 = vsel %vm919, %v1945, %v1946
      %v1948 = vrot.slane %v1946, 4
      %v1949 = vrot.slane %v1216, 5
      %v1950 = vsel %vm919, %v1948, %v1949
      %v1951 = vrot.slane %v1217, 5
      %v1952 = vrot.slane %v1951, 4
      %v1953 = vrot.slane %v1218, 5
      %v1954 = vsel %vm919, %v1952, %v1953
      %v1955 = vrot.slane %v1953, 4
      %v1956 = vrot.slane %v1219, 5
      %v1957 = vsel %vm919, %v1955, %v1956
      %v1958 = vunpack.c.l.b16 %v1891
      %v1959 = vunpack.c.l.b16 %v1894
      %v1960 = vunpack.c.l.b16 %v1898
      %v1961 = vunpack.c.l.b16 %v1901
      %v1962 = vunpack.c.l.b16 %v1905
      %v1963 = vunpack.c.l.b16 %v1908
      %v1964 = vunpack.c.l.b16 %v1912
      %v1965 = vunpack.c.l.b16 %v1915
      %v1966 = vunpack.c.l.b16 %v1919
      %v1967 = vunpack.c.l.b16 %v1922
      %v1968 = vunpack.c.l.b16 %v1926
      %v1969 = vunpack.c.l.b16 %v1929
      %v1970 = vunpack.c.l.b16 %v1933
      %v1971 = vunpack.c.l.b16 %v1936
      %v1972 = vunpack.c.l.b16 %v1940
      %v1973 = vunpack.c.l.b16 %v1943
      %v1974 = vunpack.c.l.b16 %v1947
      %v1975 = vunpack.c.l.b16 %v1950
      %v1976 = vunpack.c.l.b16 %v1954
      %v1977 = vunpack.c.l.b16 %v1957
      %v1978 = vpack.c.b16 %v1959, %v1958
      %v1979 = vpack.c.b16 %v1961, %v1960
      %v1980 = vpack.c.b16 %v1963, %v1962
      %v1981 = vpack.c.b16 %v1965, %v1964
      %v1982 = vpack.c.b16 %v1967, %v1966
      %v1983 = vpack.c.b16 %v1969, %v1968
      %v1984 = vpack.c.b16 %v1971, %v1970
      %v1985 = vpack.c.b16 %v1973, %v1972
      %v1986 = vpack.c.b16 %v1975, %v1974
      %v1987 = vpack.c.b16 %v1977, %v1976
      %v1989 = vsel %vm561, %v1978, 0
      %v1992 = vsel %vm561, %v1979, 0
      %v1995 = vsel %vm561, %v1980, 0
      %v1998 = vsel %vm561, %v1981, 0
      %v2001 = vsel %vm561, %v1982, 0
      %v2004 = vsel %vm561, %v1983, 0
      %v2007 = vsel %vm561, %v1984, 0
      %v2010 = vsel %vm561, %v1985, 0
      %v2013 = vsel %vm561, %v1986, 0
      %v2016 = vsel %vm561, %v1987, 0
      %v2019 = vsel %vm592, %v1877, 0
      %2021 = vmatprep.subr.bf16.mxu0 0
      %2022 = vmatpush1.bf16.msra.mxu0 0
      %2023 = vmatprep.subr.bf16.mxu0 0
      %2024 = vmatpush1.bf16.msra.mxu0 0
      %2025 = vmatprep.subr.bf16.mxu0 0
      %2026 = vmatpush1.bf16.msra.mxu0 0
      %2027 = vmatprep.subr.bf16.mxu0 0
      %2028 = vmatpush1.bf16.msra.mxu0 0
      %2029 = vmatprep.subr.bf16.mxu0 0
      %2030 = vmatpush1.bf16.msra.mxu0 0
      %2031 = vmatprep.subr.bf16.mxu0 0
      %2032 = vmatpush1.bf16.msra.mxu0 0
      %2033 = vmatprep.subr.bf16.mxu0 0
      %2034 = vmatpush1.bf16.msra.mxu0 0
      %2035 = vmatprep.subr.bf16.mxu0 0
      %2036 = vmatpush1.bf16.msra.mxu0 %v2019
      %2037 = vmatprep.subr.bf16.mxu0 0
      %2038 = vmatpush2.bf16.msra.mxu0 0
      %2039 = vmatprep.subr.bf16.mxu0 0
      %2040 = vmatpush2.bf16.msra.mxu0 0
      %2041 = vmatprep.subr.bf16.mxu0 0
      %2042 = vmatpush2.bf16.msra.mxu0 0
      %2043 = vmatprep.subr.bf16.mxu0 0
      %2044 = vmatpush2.bf16.msra.mxu0 0
      %2045 = vmatprep.subr.bf16.mxu0 0
      %2046 = vmatpush2.bf16.msra.mxu0 0
      %2047 = vmatprep.subr.bf16.mxu0 0
      %2048 = vmatpush2.bf16.msra.mxu0 0
      %2049 = vmatprep.subr.bf16.mxu0 0
      %2050 = vmatpush2.bf16.msra.mxu0 0
      %2051 = vmatprep.subr.bf16.mxu0 0
      %2052 = vmatpush2.bf16.msra.mxu0 0
      %2053 = vmatprep.mubr.bf16.mxu0 0
      %2054 = vmatmul.mubr.bf16.gmra.mxu0 %v1989
      %v2055 = vpop.f32.mrf.mxu0
      %v2056 = vadd.f32 0.0, %v2055
      %v2057 = vpop.f32.mrf.mxu0
      %v2058 = vpop.f32.mrf.mxu0
      %v2059 = vadd.f32 0.0, %v2058
      %v2060 = vpop.f32.mrf.mxu0
      %2061 = vmatprep.mubr.bf16.mxu0 0
      %2062 = vmatmul.mubr.bf16.gmra.mxu0 %v1992
      %v2063 = vpop.f32.mrf.mxu0
      %v2064 = vadd.f32 0.0, %v2063
      %v2065 = vpop.f32.mrf.mxu0
      %v2066 = vpop.f32.mrf.mxu0
      %v2067 = vadd.f32 0.0, %v2066
      %v2068 = vpop.f32.mrf.mxu0
      %2069 = vmatprep.mubr.bf16.mxu0 0
      %2070 = vmatmul.mubr.bf16.gmra.mxu0 %v1995
      %v2071 = vpop.f32.mrf.mxu0
      %v2072 = vadd.f32 0.0, %v2071
      %v2073 = vpop.f32.mrf.mxu0
      %v2074 = vpop.f32.mrf.mxu0
      %v2075 = vadd.f32 0.0, %v2074
      %v2076 = vpop.f32.mrf.mxu0
      %2077 = vmatprep.mubr.bf16.mxu0 0
      %2078 = vmatmul.mubr.bf16.gmra.mxu0 %v1998
      %v2079 = vpop.f32.mrf.mxu0
      %v2080 = vadd.f32 0.0, %v2079
      %v2081 = vpop.f32.mrf.mxu0
      %v2082 = vpop.f32.mrf.mxu0
      %v2083 = vadd.f32 0.0, %v2082
      %v2084 = vpop.f32.mrf.mxu0
      %2085 = vmatprep.mubr.bf16.mxu0 0
      %2086 = vmatmul.mubr.bf16.gmra.mxu0 %v2001
      %v2087 = vpop.f32.mrf.mxu0
      %v2088 = vadd.f32 0.0, %v2087
      %v2089 = vpop.f32.mrf.mxu0
      %v2090 = vpop.f32.mrf.mxu0
      %v2091 = vadd.f32 0.0, %v2090
      %v2092 = vpop.f32.mrf.mxu0
      %2093 = vmatprep.mubr.bf16.mxu0 0
      %2094 = vmatmul.mubr.bf16.gmra.mxu0 %v2004
      %v2095 = vpop.f32.mrf.mxu0
      %v2096 = vadd.f32 0.0, %v2095
      %v2097 = vpop.f32.mrf.mxu0
      %v2098 = vpop.f32.mrf.mxu0
      %v2099 = vadd.f32 0.0, %v2098
      %v2100 = vpop.f32.mrf.mxu0
      %2101 = vmatprep.mubr.bf16.mxu0 0
      %2102 = vmatmul.mubr.bf16.gmra.mxu0 %v2007
      %v2103 = vpop.f32.mrf.mxu0
      %v2104 = vadd.f32 0.0, %v2103
      %v2105 = vpop.f32.mrf.mxu0
      %v2106 = vpop.f32.mrf.mxu0
      %v2107 = vadd.f32 0.0, %v2106
      %v2108 = vpop.f32.mrf.mxu0
      %2109 = vmatprep.mubr.bf16.mxu0 0
      %2110 = vmatmul.mubr.bf16.gmra.mxu0 %v2010
      %v2111 = vpop.f32.mrf.mxu0
      %v2112 = vadd.f32 0.0, %v2111
      %v2113 = vpop.f32.mrf.mxu0
      %v2114 = vpop.f32.mrf.mxu0
      %v2115 = vadd.f32 0.0, %v2114
      %v2116 = vpop.f32.mrf.mxu0
      %2117 = vmatprep.mubr.bf16.mxu0 0
      %2118 = vmatmul.mubr.bf16.gmra.mxu0 %v2013
      %v2119 = vpop.f32.mrf.mxu0
      %v2120 = vadd.f32 0.0, %v2119
      %v2121 = vpop.f32.mrf.mxu0
      %v2122 = vpop.f32.mrf.mxu0
      %v2123 = vadd.f32 0.0, %v2122
      %v2124 = vpop.f32.mrf.mxu0
      %2125 = vmatprep.mubr.bf16.mxu0 0
      %2126 = vmatmul.mubr.bf16.gmra.mxu0 %v2016
      %v2127 = vpop.f32.mrf.mxu0
      %v2128 = vadd.f32 0.0, %v2127
      %v2129 = vpop.f32.mrf.mxu0
      %v2130 = vpop.f32.mrf.mxu0
      %v2131 = vadd.f32 0.0, %v2130
      %v2132 = vpop.f32.mrf.mxu0
      %2133 = vdwg.mxu0
      %v2134 = vadd.f32 %v1856, %v2056
      %v2135 = vadd.f32 %v1857, %v2059
      %v2136 = vadd.f32 %v1858, %v2064
      %v2137 = vadd.f32 %v1859, %v2067
      %v2138 = vadd.f32 %v1860, %v2072
      %v2139 = vadd.f32 %v1861, %v2075
      %v2140 = vadd.f32 %v1862, %v2080
      %v2141 = vadd.f32 %v1863, %v2083
      %v2142 = vadd.f32 %v1864, %v2088
      %v2143 = vadd.f32 %v1865, %v2091
      %v2144 = vadd.f32 %v1866, %v2096
      %v2145 = vadd.f32 %v1867, %v2099
      %v2146 = vadd.f32 %v1868, %v2104
      %v2147 = vadd.f32 %v1869, %v2107
      %v2148 = vadd.f32 %v1870, %v2112
      %v2149 = vadd.f32 %v1871, %v2115
      %v2150 = vadd.f32 %v1872, %v2120
      %v2151 = vadd.f32 %v1873, %v2123
      %v2152 = vadd.f32 %v1874, %v2128
      %v2153 = vadd.f32 %v1875, %v2131
      %s2154 = sadd.s32 %s251, 2
      %s2155 = smul.u32 %s2154, 3
      %s2156 = smul.addr %s2155, 4
      %s2157 = scalar_lea.vmem %s238, %s2156
      %v2158 = vld [vmem:[%s2157] sm:$0xf]
      %v2159 = vld [vmem:[%s2157 + $0x4] sm:$0xf]
      %v2160 = vld [vmem:[%s2157 + $0x8] sm:$0x1]
      %v2161 = vld [vmem:[%s2157 + $0xc] sm:$0xf]
      %v2162 = vld [vmem:[%s2157 + $0x10] sm:$0xf]
      %v2163 = vld [vmem:[%s2157 + $0x14] sm:$0x1]
      %v2164 = vld [vmem:[%s2157 + $0x18] sm:$0xf]
      %v2165 = vld [vmem:[%s2157 + $0x1c] sm:$0xf]
      %v2166 = vld [vmem:[%s2157 + $0x20] sm:$0x1]
      %v2167 = vld [vmem:[%s2157 + $0x24] sm:$0xf]
      %v2168 = vld [vmem:[%s2157 + $0x28] sm:$0xf]
      %v2169 = vld [vmem:[%s2157 + $0x2c] sm:$0x1]
      %v2170 = vld [vmem:[%s2157 + $0x30] sm:$0xf]
      %v2171 = vld [vmem:[%s2157 + $0x34] sm:$0xf]
      %v2172 = vld [vmem:[%s2157 + $0x38] sm:$0x1]
      %v2173 = vld [vmem:[%s2157 + $0x3c] sm:$0xf]
      %v2174 = vld [vmem:[%s2157 + $0x40] sm:$0xf]
      %v2175 = vld [vmem:[%s2157 + $0x44] sm:$0x1]
      %v2176 = vld [vmem:[%s2157 + $0x48] sm:$0xf]
      %v2177 = vld [vmem:[%s2157 + $0x4c] sm:$0xf]
      %v2178 = vld [vmem:[%s2157 + $0x50] sm:$0x1]
      %v2179 = vld [vmem:[%s2157 + $0x54] sm:$0xf]
      %v2180 = vld [vmem:[%s2157 + $0x58] sm:$0xf]
      %v2181 = vld [vmem:[%s2157 + $0x5c] sm:$0x1]
      %v2182 = vld [vmem:[%s2157 + $0x60] sm:$0xf]
      %v2183 = vld [vmem:[%s2157 + $0x64] sm:$0xf]
      %v2184 = vld [vmem:[%s2157 + $0x68] sm:$0x1]
      %v2185 = vld [vmem:[%s2157 + $0x6c] sm:$0xf]
      %v2186 = vld [vmem:[%s2157 + $0x70] sm:$0xf]
      %v2187 = vld [vmem:[%s2157 + $0x74] sm:$0x1]
      %s2188 = scalar_lea.vmem %s1, 24
      %v2189 = vld [vmem:[%s2188] sm:$0xf]
      %v2210 = vunpack.c.l.b16 %v2158
      %v2211 = vunpack.c.l.b16 %v2159
      %v2212 = vunpack.c.l.b16 %v2161
      %v2213 = vunpack.c.l.b16 %v2162
      %v2214 = vunpack.c.l.b16 %v2164
      %v2215 = vunpack.c.l.b16 %v2165
      %v2216 = vunpack.c.l.b16 %v2167
      %v2217 = vunpack.c.l.b16 %v2168
      %v2218 = vunpack.c.l.b16 %v2170
      %v2219 = vunpack.c.l.b16 %v2171
      %v2220 = vunpack.c.l.b16 %v2173
      %v2221 = vunpack.c.l.b16 %v2174
      %v2222 = vunpack.c.l.b16 %v2176
      %v2223 = vunpack.c.l.b16 %v2177
      %v2224 = vunpack.c.l.b16 %v2179
      %v2225 = vunpack.c.l.b16 %v2180
      %v2226 = vunpack.c.l.b16 %v2182
      %v2227 = vunpack.c.l.b16 %v2183
      %v2228 = vunpack.c.l.b16 %v2185
      %v2229 = vunpack.c.l.b16 %v2186
      %v2230 = vpack.c.b16 %v2211, %v2210
      %v2231 = vpack.c.b16 %v2213, %v2212
      %v2232 = vpack.c.b16 %v2215, %v2214
      %v2233 = vpack.c.b16 %v2217, %v2216
      %v2234 = vpack.c.b16 %v2219, %v2218
      %v2235 = vpack.c.b16 %v2221, %v2220
      %v2236 = vpack.c.b16 %v2223, %v2222
      %v2237 = vpack.c.b16 %v2225, %v2224
      %v2238 = vpack.c.b16 %v2227, %v2226
      %v2239 = vpack.c.b16 %v2229, %v2228
      %v2241 = vsel %vm561, %v2230, 0
      %v2244 = vsel %vm561, %v2231, 0
      %v2247 = vsel %vm561, %v2232, 0
      %v2250 = vsel %vm561, %v2233, 0
      %v2253 = vsel %vm561, %v2234, 0
      %v2256 = vsel %vm561, %v2235, 0
      %v2259 = vsel %vm561, %v2236, 0
      %v2262 = vsel %vm561, %v2237, 0
      %v2265 = vsel %vm561, %v2238, 0
      %v2268 = vsel %vm561, %v2239, 0
      %v2271 = vsel %vm592, %v2189, 0
      %2273 = vmatprep.subr.bf16.mxu0 0
      %2274 = vmatpush1.bf16.msra.mxu0 0
      %2275 = vmatprep.subr.bf16.mxu0 0
      %2276 = vmatpush1.bf16.msra.mxu0 0
      %2277 = vmatprep.subr.bf16.mxu0 0
      %2278 = vmatpush1.bf16.msra.mxu0 0
      %2279 = vmatprep.subr.bf16.mxu0 0
      %2280 = vmatpush1.bf16.msra.mxu0 0
      %2281 = vmatprep.subr.bf16.mxu0 0
      %2282 = vmatpush1.bf16.msra.mxu0 0
      %2283 = vmatprep.subr.bf16.mxu0 0
      %2284 = vmatpush1.bf16.msra.mxu0 0
      %2285 = vmatprep.subr.bf16.mxu0 0
      %2286 = vmatpush1.bf16.msra.mxu0 0
      %2287 = vmatprep.subr.bf16.mxu0 0
      %2288 = vmatpush1.bf16.msra.mxu0 %v2271
      %2289 = vmatprep.subr.bf16.mxu0 0
      %2290 = vmatpush2.bf16.msra.mxu0 0
      %2291 = vmatprep.subr.bf16.mxu0 0
      %2292 = vmatpush2.bf16.msra.mxu0 0
      %2293 = vmatprep.subr.bf16.mxu0 0
      %2294 = vmatpush2.bf16.msra.mxu0 0
      %2295 = vmatprep.subr.bf16.mxu0 0
      %2296 = vmatpush2.bf16.msra.mxu0 0
      %2297 = vmatprep.subr.bf16.mxu0 0
      %2298 = vmatpush2.bf16.msra.mxu0 0
      %2299 = vmatprep.subr.bf16.mxu0 0
      %2300 = vmatpush2.bf16.msra.mxu0 0
      %2301 = vmatprep.subr.bf16.mxu0 0
      %2302 = vmatpush2.bf16.msra.mxu0 0
      %2303 = vmatprep.subr.bf16.mxu0 0
      %2304 = vmatpush2.bf16.msra.mxu0 0
      %2305 = vmatprep.mubr.bf16.mxu0 0
      %2306 = vmatmul.mubr.bf16.gmra.mxu0 %v2241
      %v2307 = vpop.f32.mrf.mxu0
      %v2308 = vadd.f32 0.0, %v2307
      %v2309 = vpop.f32.mrf.mxu0
      %v2310 = vpop.f32.mrf.mxu0
      %v2311 = vadd.f32 0.0, %v2310
      %v2312 = vpop.f32.mrf.mxu0
      %2313 = vmatprep.mubr.bf16.mxu0 0
      %2314 = vmatmul.mubr.bf16.gmra.mxu0 %v2244
      %v2315 = vpop.f32.mrf.mxu0
      %v2316 = vadd.f32 0.0, %v2315
      %v2317 = vpop.f32.mrf.mxu0
      %v2318 = vpop.f32.mrf.mxu0
      %v2319 = vadd.f32 0.0, %v2318
      %v2320 = vpop.f32.mrf.mxu0
      %2321 = vmatprep.mubr.bf16.mxu0 0
      %2322 = vmatmul.mubr.bf16.gmra.mxu0 %v2247
      %v2323 = vpop.f32.mrf.mxu0
      %v2324 = vadd.f32 0.0, %v2323
      %v2325 = vpop.f32.mrf.mxu0
      %v2326 = vpop.f32.mrf.mxu0
      %v2327 = vadd.f32 0.0, %v2326
      %v2328 = vpop.f32.mrf.mxu0
      %2329 = vmatprep.mubr.bf16.mxu0 0
      %2330 = vmatmul.mubr.bf16.gmra.mxu0 %v2250
      %v2331 = vpop.f32.mrf.mxu0
      %v2332 = vadd.f32 0.0, %v2331
      %v2333 = vpop.f32.mrf.mxu0
      %v2334 = vpop.f32.mrf.mxu0
      %v2335 = vadd.f32 0.0, %v2334
      %v2336 = vpop.f32.mrf.mxu0
      %2337 = vmatprep.mubr.bf16.mxu0 0
      %2338 = vmatmul.mubr.bf16.gmra.mxu0 %v2253
      %v2339 = vpop.f32.mrf.mxu0
      %v2340 = vadd.f32 0.0, %v2339
      %v2341 = vpop.f32.mrf.mxu0
      %v2342 = vpop.f32.mrf.mxu0
      %v2343 = vadd.f32 0.0, %v2342
      %v2344 = vpop.f32.mrf.mxu0
      %2345 = vmatprep.mubr.bf16.mxu0 0
      %2346 = vmatmul.mubr.bf16.gmra.mxu0 %v2256
      %v2347 = vpop.f32.mrf.mxu0
      %v2348 = vadd.f32 0.0, %v2347
      %v2349 = vpop.f32.mrf.mxu0
      %v2350 = vpop.f32.mrf.mxu0
      %v2351 = vadd.f32 0.0, %v2350
      %v2352 = vpop.f32.mrf.mxu0
      %2353 = vmatprep.mubr.bf16.mxu0 0
      %2354 = vmatmul.mubr.bf16.gmra.mxu0 %v2259
      %v2355 = vpop.f32.mrf.mxu0
      %v2356 = vadd.f32 0.0, %v2355
      %v2357 = vpop.f32.mrf.mxu0
      %v2358 = vpop.f32.mrf.mxu0
      %v2359 = vadd.f32 0.0, %v2358
      %v2360 = vpop.f32.mrf.mxu0
      %2361 = vmatprep.mubr.bf16.mxu0 0
      %2362 = vmatmul.mubr.bf16.gmra.mxu0 %v2262
      %v2363 = vpop.f32.mrf.mxu0
      %v2364 = vadd.f32 0.0, %v2363
      %v2365 = vpop.f32.mrf.mxu0
      %v2366 = vpop.f32.mrf.mxu0
      %v2367 = vadd.f32 0.0, %v2366
      %v2368 = vpop.f32.mrf.mxu0
      %2369 = vmatprep.mubr.bf16.mxu0 0
      %2370 = vmatmul.mubr.bf16.gmra.mxu0 %v2265
      %v2371 = vpop.f32.mrf.mxu0
      %v2372 = vadd.f32 0.0, %v2371
      %v2373 = vpop.f32.mrf.mxu0
      %v2374 = vpop.f32.mrf.mxu0
      %v2375 = vadd.f32 0.0, %v2374
      %v2376 = vpop.f32.mrf.mxu0
      %2377 = vmatprep.mubr.bf16.mxu0 0
      %2378 = vmatmul.mubr.bf16.gmra.mxu0 %v2268
      %v2379 = vpop.f32.mrf.mxu0
      %v2380 = vadd.f32 0.0, %v2379
      %v2381 = vpop.f32.mrf.mxu0
      %v2382 = vpop.f32.mrf.mxu0
      %v2383 = vadd.f32 0.0, %v2382
      %v2384 = vpop.f32.mrf.mxu0
      %2385 = vdwg.mxu0
      %v2386 = vadd.f32 %v2134, %v2308
      %v2387 = vadd.f32 %v2135, %v2311
      %v2388 = vadd.f32 %v2136, %v2316
      %v2389 = vadd.f32 %v2137, %v2319
      %v2390 = vadd.f32 %v2138, %v2324
      %v2391 = vadd.f32 %v2139, %v2327
      %v2392 = vadd.f32 %v2140, %v2332
      %v2393 = vadd.f32 %v2141, %v2335
      %v2394 = vadd.f32 %v2142, %v2340
      %v2395 = vadd.f32 %v2143, %v2343
      %v2396 = vadd.f32 %v2144, %v2348
      %v2397 = vadd.f32 %v2145, %v2351
      %v2398 = vadd.f32 %v2146, %v2356
      %v2399 = vadd.f32 %v2147, %v2359
      %v2400 = vadd.f32 %v2148, %v2364
      %v2401 = vadd.f32 %v2149, %v2367
      %v2402 = vadd.f32 %v2150, %v2372
      %v2403 = vadd.f32 %v2151, %v2375
      %v2404 = vadd.f32 %v2152, %v2380
      %v2405 = vadd.f32 %v2153, %v2383
      %s2406 = scalar_lea.vmem %s1, 28
      %v2407 = vld [vmem:[%s2406] sm:$0xf]
      %v2409 = vshrl.u32 %v2158, 16
      %v2411 = vrot.slane %v2409, 4
      %v2412 = vshll.u32 %v2158, 16
      %v2414 = vrot.slane %v2412, 5
      %v2415 = vor.u32 %v2411, %v2414
      %v2416 = vrot.slane %v2415, 4
      %v2418 = vshll.u32 %v2159, 16
      %v2420 = vrot.slane %v2418, 5
      %v2421 = vsel %vm290, %v2416, %v2420
      %v2422 = vshrl.u32 %v2159, 16
      %v2424 = vrot.slane %v2422, 4
      %v2425 = vor.u32 %v2424, %v2420
      %v2426 = vrot.slane %v2425, 4
      %v2428 = vshll.u32 %v2160, 16
      %v2430 = vrot.slane %v2428, 5
      %v2431 = vsel %vm290, %v2426, %v2430
      %v2433 = vshrl.u32 %v2161, 16
      %v2435 = vrot.slane %v2433, 4
      %v2436 = vshll.u32 %v2161, 16
      %v2438 = vrot.slane %v2436, 5
      %v2439 = vor.u32 %v2435, %v2438
      %v2440 = vrot.slane %v2439, 4
      %v2442 = vshll.u32 %v2162, 16
      %v2444 = vrot.slane %v2442, 5
      %v2445 = vsel %vm290, %v2440, %v2444
      %v2446 = vshrl.u32 %v2162, 16
      %v2448 = vrot.slane %v2446, 4
      %v2449 = vor.u32 %v2448, %v2444
      %v2450 = vrot.slane %v2449, 4
      %v2452 = vshll.u32 %v2163, 16
      %v2454 = vrot.slane %v2452, 5
      %v2455 = vsel %vm290, %v2450, %v2454
      %v2457 = vshrl.u32 %v2164, 16
      %v2459 = vrot.slane %v2457, 4
      %v2460 = vshll.u32 %v2164, 16
      %v2462 = vrot.slane %v2460, 5
      %v2463 = vor.u32 %v2459, %v2462
      %v2464 = vrot.slane %v2463, 4
      %v2466 = vshll.u32 %v2165, 16
      %v2468 = vrot.slane %v2466, 5
      %v2469 = vsel %vm290, %v2464, %v2468
      %v2470 = vshrl.u32 %v2165, 16
      %v2472 = vrot.slane %v2470, 4
      %v2473 = vor.u32 %v2472, %v2468
      %v2474 = vrot.slane %v2473, 4
      %v2476 = vshll.u32 %v2166, 16
      %v2478 = vrot.slane %v2476, 5
      %v2479 = vsel %vm290, %v2474, %v2478
      %v2481 = vshrl.u32 %v2167, 16
      %v2483 = vrot.slane %v2481, 4
      %v2484 = vshll.u32 %v2167, 16
      %v2486 = vrot.slane %v2484, 5
      %v2487 = vor.u32 %v2483, %v2486
      %v2488 = vrot.slane %v2487, 4
      %v2490 = vshll.u32 %v2168, 16
      %v2492 = vrot.slane %v2490, 5
      %v2493 = vsel %vm290, %v2488, %v2492
      %v2494 = vshrl.u32 %v2168, 16
      %v2496 = vrot.slane %v2494, 4
      %v2497 = vor.u32 %v2496, %v2492
      %v2498 = vrot.slane %v2497, 4
      %v2500 = vshll.u32 %v2169, 16
      %v2502 = vrot.slane %v2500, 5
      %v2503 = vsel %vm290, %v2498, %v2502
      %v2505 = vshrl.u32 %v2170, 16
      %v2507 = vrot.slane %v2505, 4
      %v2508 = vshll.u32 %v2170, 16
      %v2510 = vrot.slane %v2508, 5
      %v2511 = vor.u32 %v2507, %v2510
      %v2512 = vrot.slane %v2511, 4
      %v2514 = vshll.u32 %v2171, 16
      %v2516 = vrot.slane %v2514, 5
      %v2517 = vsel %vm290, %v2512, %v2516
      %v2518 = vshrl.u32 %v2171, 16
      %v2520 = vrot.slane %v2518, 4
      %v2521 = vor.u32 %v2520, %v2516
      %v2522 = vrot.slane %v2521, 4
      %v2524 = vshll.u32 %v2172, 16
      %v2526 = vrot.slane %v2524, 5
      %v2527 = vsel %vm290, %v2522, %v2526
      %v2529 = vshrl.u32 %v2173, 16
      %v2531 = vrot.slane %v2529, 4
      %v2532 = vshll.u32 %v2173, 16
      %v2534 = vrot.slane %v2532, 5
      %v2535 = vor.u32 %v2531, %v2534
      %v2536 = vrot.slane %v2535, 4
      %v2538 = vshll.u32 %v2174, 16
      %v2540 = vrot.slane %v2538, 5
      %v2541 = vsel %vm290, %v2536, %v2540
      %v2542 = vshrl.u32 %v2174, 16
      %v2544 = vrot.slane %v2542, 4
      %v2545 = vor.u32 %v2544, %v2540
      %v2546 = vrot.slane %v2545, 4
      %v2548 = vshll.u32 %v2175, 16
      %v2550 = vrot.slane %v2548, 5
      %v2551 = vsel %vm290, %v2546, %v2550
      %v2553 = vshrl.u32 %v2176, 16
      %v2555 = vrot.slane %v2553, 4
      %v2556 = vshll.u32 %v2176, 16
      %v2558 = vrot.slane %v2556, 5
      %v2559 = vor.u32 %v2555, %v2558
      %v2560 = vrot.slane %v2559, 4
      %v2562 = vshll.u32 %v2177, 16
      %v2564 = vrot.slane %v2562, 5
      %v2565 = vsel %vm290, %v2560, %v2564
      %v2566 = vshrl.u32 %v2177, 16
      %v2568 = vrot.slane %v2566, 4
      %v2569 = vor.u32 %v2568, %v2564
      %v2570 = vrot.slane %v2569, 4
      %v2572 = vshll.u32 %v2178, 16
      %v2574 = vrot.slane %v2572, 5
      %v2575 = vsel %vm290, %v2570, %v2574
      %v2577 = vshrl.u32 %v2179, 16
      %v2579 = vrot.slane %v2577, 4
      %v2580 = vshll.u32 %v2179, 16
      %v2582 = vrot.slane %v2580, 5
      %v2583 = vor.u32 %v2579, %v2582
      %v2584 = vrot.slane %v2583, 4
      %v2586 = vshll.u32 %v2180, 16
      %v2588 = vrot.slane %v2586, 5
      %v2589 = vsel %vm290, %v2584, %v2588
      %v2590 = vshrl.u32 %v2180, 16
      %v2592 = vrot.slane %v2590, 4
      %v2593 = vor.u32 %v2592, %v2588
      %v2594 = vrot.slane %v2593, 4
      %v2596 = vshll.u32 %v2181, 16
      %v2598 = vrot.slane %v2596, 5
      %v2599 = vsel %vm290, %v2594, %v2598
      %v2601 = vshrl.u32 %v2182, 16
      %v2603 = vrot.slane %v2601, 4
      %v2604 = vshll.u32 %v2182, 16
      %v2606 = vrot.slane %v2604, 5
      %v2607 = vor.u32 %v2603, %v2606
      %v2608 = vrot.slane %v2607, 4
      %v2610 = vshll.u32 %v2183, 16
      %v2612 = vrot.slane %v2610, 5
      %v2613 = vsel %vm290, %v2608, %v2612
      %v2614 = vshrl.u32 %v2183, 16
      %v2616 = vrot.slane %v2614, 4
      %v2617 = vor.u32 %v2616, %v2612
      %v2618 = vrot.slane %v2617, 4
      %v2620 = vshll.u32 %v2184, 16
      %v2622 = vrot.slane %v2620, 5
      %v2623 = vsel %vm290, %v2618, %v2622
      %v2625 = vshrl.u32 %v2185, 16
      %v2627 = vrot.slane %v2625, 4
      %v2628 = vshll.u32 %v2185, 16
      %v2630 = vrot.slane %v2628, 5
      %v2631 = vor.u32 %v2627, %v2630
      %v2632 = vrot.slane %v2631, 4
      %v2634 = vshll.u32 %v2186, 16
      %v2636 = vrot.slane %v2634, 5
      %v2637 = vsel %vm290, %v2632, %v2636
      %v2638 = vshrl.u32 %v2186, 16
      %v2640 = vrot.slane %v2638, 4
      %v2641 = vor.u32 %v2640, %v2636
      %v2642 = vrot.slane %v2641, 4
      %v2644 = vshll.u32 %v2187, 16
      %v2646 = vrot.slane %v2644, 5
      %v2647 = vsel %vm290, %v2642, %v2646
      %v2648 = vunpack.c.l.b16 %v2421
      %v2649 = vunpack.c.l.b16 %v2431
      %v2650 = vunpack.c.l.b16 %v2445
      %v2651 = vunpack.c.l.b16 %v2455
      %v2652 = vunpack.c.l.b16 %v2469
      %v2653 = vunpack.c.l.b16 %v2479
      %v2654 = vunpack.c.l.b16 %v2493
      %v2655 = vunpack.c.l.b16 %v2503
      %v2656 = vunpack.c.l.b16 %v2517
      %v2657 = vunpack.c.l.b16 %v2527
      %v2658 = vunpack.c.l.b16 %v2541
      %v2659 = vunpack.c.l.b16 %v2551
      %v2660 = vunpack.c.l.b16 %v2565
      %v2661 = vunpack.c.l.b16 %v2575
      %v2662 = vunpack.c.l.b16 %v2589
      %v2663 = vunpack.c.l.b16 %v2599
      %v2664 = vunpack.c.l.b16 %v2613
      %v2665 = vunpack.c.l.b16 %v2623
      %v2666 = vunpack.c.l.b16 %v2637
      %v2667 = vunpack.c.l.b16 %v2647
      %v2668 = vpack.c.b16 %v2649, %v2648
      %v2669 = vpack.c.b16 %v2651, %v2650
      %v2670 = vpack.c.b16 %v2653, %v2652
      %v2671 = vpack.c.b16 %v2655, %v2654
      %v2672 = vpack.c.b16 %v2657, %v2656
      %v2673 = vpack.c.b16 %v2659, %v2658
      %v2674 = vpack.c.b16 %v2661, %v2660
      %v2675 = vpack.c.b16 %v2663, %v2662
      %v2676 = vpack.c.b16 %v2665, %v2664
      %v2677 = vpack.c.b16 %v2667, %v2666
      %v2679 = vsel %vm561, %v2668, 0
      %v2682 = vsel %vm561, %v2669, 0
      %v2685 = vsel %vm561, %v2670, 0
      %v2688 = vsel %vm561, %v2671, 0
      %v2691 = vsel %vm561, %v2672, 0
      %v2694 = vsel %vm561, %v2673, 0
      %v2697 = vsel %vm561, %v2674, 0
      %v2700 = vsel %vm561, %v2675, 0
      %v2703 = vsel %vm561, %v2676, 0
      %v2706 = vsel %vm561, %v2677, 0
      %v2709 = vsel %vm592, %v2407, 0
      %2711 = vmatprep.subr.bf16.mxu0 0
      %2712 = vmatpush1.bf16.msra.mxu0 0
      %2713 = vmatprep.subr.bf16.mxu0 0
      %2714 = vmatpush1.bf16.msra.mxu0 0
      %2715 = vmatprep.subr.bf16.mxu0 0
      %2716 = vmatpush1.bf16.msra.mxu0 0
      %2717 = vmatprep.subr.bf16.mxu0 0
      %2718 = vmatpush1.bf16.msra.mxu0 0
      %2719 = vmatprep.subr.bf16.mxu0 0
      %2720 = vmatpush1.bf16.msra.mxu0 0
      %2721 = vmatprep.subr.bf16.mxu0 0
      %2722 = vmatpush1.bf16.msra.mxu0 0
      %2723 = vmatprep.subr.bf16.mxu0 0
      %2724 = vmatpush1.bf16.msra.mxu0 0
      %2725 = vmatprep.subr.bf16.mxu0 0
      %2726 = vmatpush1.bf16.msra.mxu0 %v2709
      %2727 = vmatprep.subr.bf16.mxu0 0
      %2728 = vmatpush2.bf16.msra.mxu0 0
      %2729 = vmatprep.subr.bf16.mxu0 0
      %2730 = vmatpush2.bf16.msra.mxu0 0
      %2731 = vmatprep.subr.bf16.mxu0 0
      %2732 = vmatpush2.bf16.msra.mxu0 0
      %2733 = vmatprep.subr.bf16.mxu0 0
      %2734 = vmatpush2.bf16.msra.mxu0 0
      %2735 = vmatprep.subr.bf16.mxu0 0
      %2736 = vmatpush2.bf16.msra.mxu0 0
      %2737 = vmatprep.subr.bf16.mxu0 0
      %2738 = vmatpush2.bf16.msra.mxu0 0
      %2739 = vmatprep.subr.bf16.mxu0 0
      %2740 = vmatpush2.bf16.msra.mxu0 0
      %2741 = vmatprep.subr.bf16.mxu0 0
      %2742 = vmatpush2.bf16.msra.mxu0 0
      %2743 = vmatprep.mubr.bf16.mxu0 0
      %2744 = vmatmul.mubr.bf16.gmra.mxu0 %v2679
      %v2745 = vpop.f32.mrf.mxu0
      %v2746 = vadd.f32 0.0, %v2745
      %v2747 = vpop.f32.mrf.mxu0
      %v2748 = vpop.f32.mrf.mxu0
      %v2749 = vadd.f32 0.0, %v2748
      %v2750 = vpop.f32.mrf.mxu0
      %2751 = vmatprep.mubr.bf16.mxu0 0
      %2752 = vmatmul.mubr.bf16.gmra.mxu0 %v2682
      %v2753 = vpop.f32.mrf.mxu0
      %v2754 = vadd.f32 0.0, %v2753
      %v2755 = vpop.f32.mrf.mxu0
      %v2756 = vpop.f32.mrf.mxu0
      %v2757 = vadd.f32 0.0, %v2756
      %v2758 = vpop.f32.mrf.mxu0
      %2759 = vmatprep.mubr.bf16.mxu0 0
      %2760 = vmatmul.mubr.bf16.gmra.mxu0 %v2685
      %v2761 = vpop.f32.mrf.mxu0
      %v2762 = vadd.f32 0.0, %v2761
      %v2763 = vpop.f32.mrf.mxu0
      %v2764 = vpop.f32.mrf.mxu0
      %v2765 = vadd.f32 0.0, %v2764
      %v2766 = vpop.f32.mrf.mxu0
      %2767 = vmatprep.mubr.bf16.mxu0 0
      %2768 = vmatmul.mubr.bf16.gmra.mxu0 %v2688
      %v2769 = vpop.f32.mrf.mxu0
      %v2770 = vadd.f32 0.0, %v2769
      %v2771 = vpop.f32.mrf.mxu0
      %v2772 = vpop.f32.mrf.mxu0
      %v2773 = vadd.f32 0.0, %v2772
      %v2774 = vpop.f32.mrf.mxu0
      %2775 = vmatprep.mubr.bf16.mxu0 0
      %2776 = vmatmul.mubr.bf16.gmra.mxu0 %v2691
      %v2777 = vpop.f32.mrf.mxu0
      %v2778 = vadd.f32 0.0, %v2777
      %v2779 = vpop.f32.mrf.mxu0
      %v2780 = vpop.f32.mrf.mxu0
      %v2781 = vadd.f32 0.0, %v2780
      %v2782 = vpop.f32.mrf.mxu0
      %2783 = vmatprep.mubr.bf16.mxu0 0
      %2784 = vmatmul.mubr.bf16.gmra.mxu0 %v2694
      %v2785 = vpop.f32.mrf.mxu0
      %v2786 = vadd.f32 0.0, %v2785
      %v2787 = vpop.f32.mrf.mxu0
      %v2788 = vpop.f32.mrf.mxu0
      %v2789 = vadd.f32 0.0, %v2788
      %v2790 = vpop.f32.mrf.mxu0
      %2791 = vmatprep.mubr.bf16.mxu0 0
      %2792 = vmatmul.mubr.bf16.gmra.mxu0 %v2697
      %v2793 = vpop.f32.mrf.mxu0
      %v2794 = vadd.f32 0.0, %v2793
      %v2795 = vpop.f32.mrf.mxu0
      %v2796 = vpop.f32.mrf.mxu0
      %v2797 = vadd.f32 0.0, %v2796
      %v2798 = vpop.f32.mrf.mxu0
      %2799 = vmatprep.mubr.bf16.mxu0 0
      %2800 = vmatmul.mubr.bf16.gmra.mxu0 %v2700
      %v2801 = vpop.f32.mrf.mxu0
      %v2802 = vadd.f32 0.0, %v2801
      %v2803 = vpop.f32.mrf.mxu0
      %v2804 = vpop.f32.mrf.mxu0
      %v2805 = vadd.f32 0.0, %v2804
      %v2806 = vpop.f32.mrf.mxu0
      %2807 = vmatprep.mubr.bf16.mxu0 0
      %2808 = vmatmul.mubr.bf16.gmra.mxu0 %v2703
      %v2809 = vpop.f32.mrf.mxu0
      %v2810 = vadd.f32 0.0, %v2809
      %v2811 = vpop.f32.mrf.mxu0
      %v2812 = vpop.f32.mrf.mxu0
      %v2813 = vadd.f32 0.0, %v2812
      %v2814 = vpop.f32.mrf.mxu0
      %2815 = vmatprep.mubr.bf16.mxu0 0
      %2816 = vmatmul.mubr.bf16.gmra.mxu0 %v2706
      %v2817 = vpop.f32.mrf.mxu0
      %v2818 = vadd.f32 0.0, %v2817
      %v2819 = vpop.f32.mrf.mxu0
      %v2820 = vpop.f32.mrf.mxu0
      %v2821 = vadd.f32 0.0, %v2820
      %v2822 = vpop.f32.mrf.mxu0
      %2823 = vdwg.mxu0
      %v2824 = vadd.f32 %v2386, %v2746
      %v2825 = vadd.f32 %v2387, %v2749
      %v2826 = vadd.f32 %v2388, %v2754
      %v2827 = vadd.f32 %v2389, %v2757
      %v2828 = vadd.f32 %v2390, %v2762
      %v2829 = vadd.f32 %v2391, %v2765
      %v2830 = vadd.f32 %v2392, %v2770
      %v2831 = vadd.f32 %v2393, %v2773
      %v2832 = vadd.f32 %v2394, %v2778
      %v2833 = vadd.f32 %v2395, %v2781
      %v2834 = vadd.f32 %v2396, %v2786
      %v2835 = vadd.f32 %v2397, %v2789
      %v2836 = vadd.f32 %v2398, %v2794
      %v2837 = vadd.f32 %v2399, %v2797
      %v2838 = vadd.f32 %v2400, %v2802
      %v2839 = vadd.f32 %v2401, %v2805
      %v2840 = vadd.f32 %v2402, %v2810
      %v2841 = vadd.f32 %v2403, %v2813
      %v2842 = vadd.f32 %v2404, %v2818
      %v2843 = vadd.f32 %v2405, %v2821
      %s2844 = scalar_lea.vmem %s1, 32
      %v2845 = vld [vmem:[%s2844] sm:$0xf]
      %v2856 = vrot.slane %v2158, 5
      %v2857 = vrot.slane %v2856, 4
      %v2858 = vrot.slane %v2159, 5
      %v2859 = vsel %vm919, %v2857, %v2858
      %v2860 = vrot.slane %v2858, 4
      %v2861 = vrot.slane %v2160, 5
      %v2862 = vsel %vm919, %v2860, %v2861
      %v2863 = vrot.slane %v2161, 5
      %v2864 = vrot.slane %v2863, 4
      %v2865 = vrot.slane %v2162, 5
      %v2866 = vsel %vm919, %v2864, %v2865
      %v2867 = vrot.slane %v2865, 4
      %v2868 = vrot.slane %v2163, 5
      %v2869 = vsel %vm919, %v2867, %v2868
      %v2870 = vrot.slane %v2164, 5
      %v2871 = vrot.slane %v2870, 4
      %v2872 = vrot.slane %v2165, 5
      %v2873 = vsel %vm919, %v2871, %v2872
      %v2874 = vrot.slane %v2872, 4
      %v2875 = vrot.slane %v2166, 5
      %v2876 = vsel %vm919, %v2874, %v2875
      %v2877 = vrot.slane %v2167, 5
      %v2878 = vrot.slane %v2877, 4
      %v2879 = vrot.slane %v2168, 5
      %v2880 = vsel %vm919, %v2878, %v2879
      %v2881 = vrot.slane %v2879, 4
      %v2882 = vrot.slane %v2169, 5
      %v2883 = vsel %vm919, %v2881, %v2882
      %v2884 = vrot.slane %v2170, 5
      %v2885 = vrot.slane %v2884, 4
      %v2886 = vrot.slane %v2171, 5
      %v2887 = vsel %vm919, %v2885, %v2886
      %v2888 = vrot.slane %v2886, 4
      %v2889 = vrot.slane %v2172, 5
      %v2890 = vsel %vm919, %v2888, %v2889
      %v2891 = vrot.slane %v2173, 5
      %v2892 = vrot.slane %v2891, 4
      %v2893 = vrot.slane %v2174, 5
      %v2894 = vsel %vm919, %v2892, %v2893
      %v2895 = vrot.slane %v2893, 4
      %v2896 = vrot.slane %v2175, 5
      %v2897 = vsel %vm919, %v2895, %v2896
      %v2898 = vrot.slane %v2176, 5
      %v2899 = vrot.slane %v2898, 4
      %v2900 = vrot.slane %v2177, 5
      %v2901 = vsel %vm919, %v2899, %v2900
      %v2902 = vrot.slane %v2900, 4
      %v2903 = vrot.slane %v2178, 5
      %v2904 = vsel %vm919, %v2902, %v2903
      %v2905 = vrot.slane %v2179, 5
      %v2906 = vrot.slane %v2905, 4
      %v2907 = vrot.slane %v2180, 5
      %v2908 = vsel %vm919, %v2906, %v2907
      %v2909 = vrot.slane %v2907, 4
      %v2910 = vrot.slane %v2181, 5
      %v2911 = vsel %vm919, %v2909, %v2910
      %v2912 = vrot.slane %v2182, 5
      %v2913 = vrot.slane %v2912, 4
      %v2914 = vrot.slane %v2183, 5
      %v2915 = vsel %vm919, %v2913, %v2914
      %v2916 = vrot.slane %v2914, 4
      %v2917 = vrot.slane %v2184, 5
      %v2918 = vsel %vm919, %v2916, %v2917
      %v2919 = vrot.slane %v2185, 5
      %v2920 = vrot.slane %v2919, 4
      %v2921 = vrot.slane %v2186, 5
      %v2922 = vsel %vm919, %v2920, %v2921
      %v2923 = vrot.slane %v2921, 4
      %v2924 = vrot.slane %v2187, 5
      %v2925 = vsel %vm919, %v2923, %v2924
      %v2926 = vunpack.c.l.b16 %v2859
      %v2927 = vunpack.c.l.b16 %v2862
      %v2928 = vunpack.c.l.b16 %v2866
      %v2929 = vunpack.c.l.b16 %v2869
      %v2930 = vunpack.c.l.b16 %v2873
      %v2931 = vunpack.c.l.b16 %v2876
      %v2932 = vunpack.c.l.b16 %v2880
      %v2933 = vunpack.c.l.b16 %v2883
      %v2934 = vunpack.c.l.b16 %v2887
      %v2935 = vunpack.c.l.b16 %v2890
      %v2936 = vunpack.c.l.b16 %v2894
      %v2937 = vunpack.c.l.b16 %v2897
      %v2938 = vunpack.c.l.b16 %v2901
      %v2939 = vunpack.c.l.b16 %v2904
      %v2940 = vunpack.c.l.b16 %v2908
      %v2941 = vunpack.c.l.b16 %v2911
      %v2942 = vunpack.c.l.b16 %v2915
      %v2943 = vunpack.c.l.b16 %v2918
      %v2944 = vunpack.c.l.b16 %v2922
      %v2945 = vunpack.c.l.b16 %v2925
      %v2946 = vpack.c.b16 %v2927, %v2926
      %v2947 = vpack.c.b16 %v2929, %v2928
      %v2948 = vpack.c.b16 %v2931, %v2930
      %v2949 = vpack.c.b16 %v2933, %v2932
      %v2950 = vpack.c.b16 %v2935, %v2934
      %v2951 = vpack.c.b16 %v2937, %v2936
      %v2952 = vpack.c.b16 %v2939, %v2938
      %v2953 = vpack.c.b16 %v2941, %v2940
      %v2954 = vpack.c.b16 %v2943, %v2942
      %v2955 = vpack.c.b16 %v2945, %v2944
      %v2957 = vsel %vm561, %v2946, 0
      %v2960 = vsel %vm561, %v2947, 0
      %v2963 = vsel %vm561, %v2948, 0
      %v2966 = vsel %vm561, %v2949, 0
      %v2969 = vsel %vm561, %v2950, 0
      %v2972 = vsel %vm561, %v2951, 0
      %v2975 = vsel %vm561, %v2952, 0
      %v2978 = vsel %vm561, %v2953, 0
      %v2981 = vsel %vm561, %v2954, 0
      %v2984 = vsel %vm561, %v2955, 0
      %v2987 = vsel %vm592, %v2845, 0
      %2989 = vmatprep.subr.bf16.mxu0 0
      %2990 = vmatpush1.bf16.msra.mxu0 0
      %2991 = vmatprep.subr.bf16.mxu0 0
      %2992 = vmatpush1.bf16.msra.mxu0 0
      %2993 = vmatprep.subr.bf16.mxu0 0
      %2994 = vmatpush1.bf16.msra.mxu0 0
      %2995 = vmatprep.subr.bf16.mxu0 0
      %2996 = vmatpush1.bf16.msra.mxu0 0
      %2997 = vmatprep.subr.bf16.mxu0 0
      %2998 = vmatpush1.bf16.msra.mxu0 0
      %2999 = vmatprep.subr.bf16.mxu0 0
      %3000 = vmatpush1.bf16.msra.mxu0 0
      %3001 = vmatprep.subr.bf16.mxu0 0
      %3002 = vmatpush1.bf16.msra.mxu0 0
      %3003 = vmatprep.subr.bf16.mxu0 0
      %3004 = vmatpush1.bf16.msra.mxu0 %v2987
      %3005 = vmatprep.subr.bf16.mxu0 0
      %3006 = vmatpush2.bf16.msra.mxu0 0
      %3007 = vmatprep.subr.bf16.mxu0 0
      %3008 = vmatpush2.bf16.msra.mxu0 0
      %3009 = vmatprep.subr.bf16.mxu0 0
      %3010 = vmatpush2.bf16.msra.mxu0 0
      %3011 = vmatprep.subr.bf16.mxu0 0
      %3012 = vmatpush2.bf16.msra.mxu0 0
      %3013 = vmatprep.subr.bf16.mxu0 0
      %3014 = vmatpush2.bf16.msra.mxu0 0
      %3015 = vmatprep.subr.bf16.mxu0 0
      %3016 = vmatpush2.bf16.msra.mxu0 0
      %3017 = vmatprep.subr.bf16.mxu0 0
      %3018 = vmatpush2.bf16.msra.mxu0 0
      %3019 = vmatprep.subr.bf16.mxu0 0
      %3020 = vmatpush2.bf16.msra.mxu0 0
      %3021 = vmatprep.mubr.bf16.mxu0 0
      %3022 = vmatmul.mubr.bf16.gmra.mxu0 %v2957
      %v3023 = vpop.f32.mrf.mxu0
      %v3024 = vadd.f32 0.0, %v3023
      %v3025 = vpop.f32.mrf.mxu0
      %v3026 = vpop.f32.mrf.mxu0
      %v3027 = vadd.f32 0.0, %v3026
      %v3028 = vpop.f32.mrf.mxu0
      %3029 = vmatprep.mubr.bf16.mxu0 0
      %3030 = vmatmul.mubr.bf16.gmra.mxu0 %v2960
      %v3031 = vpop.f32.mrf.mxu0
      %v3032 = vadd.f32 0.0, %v3031
      %v3033 = vpop.f32.mrf.mxu0
      %v3034 = vpop.f32.mrf.mxu0
      %v3035 = vadd.f32 0.0, %v3034
      %v3036 = vpop.f32.mrf.mxu0
      %3037 = vmatprep.mubr.bf16.mxu0 0
      %3038 = vmatmul.mubr.bf16.gmra.mxu0 %v2963
      %v3039 = vpop.f32.mrf.mxu0
      %v3040 = vadd.f32 0.0, %v3039
      %v3041 = vpop.f32.mrf.mxu0
      %v3042 = vpop.f32.mrf.mxu0
      %v3043 = vadd.f32 0.0, %v3042
      %v3044 = vpop.f32.mrf.mxu0
      %3045 = vmatprep.mubr.bf16.mxu0 0
      %3046 = vmatmul.mubr.bf16.gmra.mxu0 %v2966
      %v3047 = vpop.f32.mrf.mxu0
      %v3048 = vadd.f32 0.0, %v3047
      %v3049 = vpop.f32.mrf.mxu0
      %v3050 = vpop.f32.mrf.mxu0
      %v3051 = vadd.f32 0.0, %v3050
      %v3052 = vpop.f32.mrf.mxu0
      %3053 = vmatprep.mubr.bf16.mxu0 0
      %3054 = vmatmul.mubr.bf16.gmra.mxu0 %v2969
      %v3055 = vpop.f32.mrf.mxu0
      %v3056 = vadd.f32 0.0, %v3055
      %v3057 = vpop.f32.mrf.mxu0
      %v3058 = vpop.f32.mrf.mxu0
      %v3059 = vadd.f32 0.0, %v3058
      %v3060 = vpop.f32.mrf.mxu0
      %3061 = vmatprep.mubr.bf16.mxu0 0
      %3062 = vmatmul.mubr.bf16.gmra.mxu0 %v2972
      %v3063 = vpop.f32.mrf.mxu0
      %v3064 = vadd.f32 0.0, %v3063
      %v3065 = vpop.f32.mrf.mxu0
      %v3066 = vpop.f32.mrf.mxu0
      %v3067 = vadd.f32 0.0, %v3066
      %v3068 = vpop.f32.mrf.mxu0
      %3069 = vmatprep.mubr.bf16.mxu0 0
      %3070 = vmatmul.mubr.bf16.gmra.mxu0 %v2975
      %v3071 = vpop.f32.mrf.mxu0
      %v3072 = vadd.f32 0.0, %v3071
      %v3073 = vpop.f32.mrf.mxu0
      %v3074 = vpop.f32.mrf.mxu0
      %v3075 = vadd.f32 0.0, %v3074
      %v3076 = vpop.f32.mrf.mxu0
      %3077 = vmatprep.mubr.bf16.mxu0 0
      %3078 = vmatmul.mubr.bf16.gmra.mxu0 %v2978
      %v3079 = vpop.f32.mrf.mxu0
      %v3080 = vadd.f32 0.0, %v3079
      %v3081 = vpop.f32.mrf.mxu0
      %v3082 = vpop.f32.mrf.mxu0
      %v3083 = vadd.f32 0.0, %v3082
      %v3084 = vpop.f32.mrf.mxu0
      %3085 = vmatprep.mubr.bf16.mxu0 0
      %3086 = vmatmul.mubr.bf16.gmra.mxu0 %v2981
      %v3087 = vpop.f32.mrf.mxu0
      %v3088 = vadd.f32 0.0, %v3087
      %v3089 = vpop.f32.mrf.mxu0
      %v3090 = vpop.f32.mrf.mxu0
      %v3091 = vadd.f32 0.0, %v3090
      %v3092 = vpop.f32.mrf.mxu0
      %3093 = vmatprep.mubr.bf16.mxu0 0
      %3094 = vmatmul.mubr.bf16.gmra.mxu0 %v2984
      %v3095 = vpop.f32.mrf.mxu0
      %v3096 = vadd.f32 0.0, %v3095
      %v3097 = vpop.f32.mrf.mxu0
      %v3098 = vpop.f32.mrf.mxu0
      %v3099 = vadd.f32 0.0, %v3098
      %v3100 = vpop.f32.mrf.mxu0
      %3101 = vdwg.mxu0
      %v3102 = vadd.f32 %v2824, %v3024
      %v3103 = vadd.f32 %v2825, %v3027
      %v3104 = vadd.f32 %v2826, %v3032
      %v3105 = vadd.f32 %v2827, %v3035
      %v3106 = vadd.f32 %v2828, %v3040
      %v3107 = vadd.f32 %v2829, %v3043
      %v3108 = vadd.f32 %v2830, %v3048
      %v3109 = vadd.f32 %v2831, %v3051
      %v3110 = vadd.f32 %v2832, %v3056
      %v3111 = vadd.f32 %v2833, %v3059
      %v3112 = vadd.f32 %v2834, %v3064
      %v3113 = vadd.f32 %v2835, %v3067
      %v3114 = vadd.f32 %v2836, %v3072
      %v3115 = vadd.f32 %v2837, %v3075
      %v3116 = vadd.f32 %v2838, %v3080
      %v3117 = vadd.f32 %v2839, %v3083
      %v3118 = vadd.f32 %v2840, %v3088
      %v3119 = vadd.f32 %v2841, %v3091
      %v3120 = vadd.f32 %v2842, %v3096
      %v3121 = vadd.f32 %v2843, %v3099
      %v3122 = vld [vmem:[%s2] sm:$0x1]
      %v3124 = vlaneseq
      %v3125 = vshrl.u32 %v3124, 7
      %v3126 = vsub.s32 0, %v3125
      %v3127 = vrot.slane %v3122, %v3126
      %v3129 = vadd.f32 %v3102, %v3127
      %v3130 = vadd.f32 %v3103, %v3127
      %v3131 = vadd.f32 %v3104, %v3127
      %v3132 = vadd.f32 %v3105, %v3127
      %v3133 = vadd.f32 %v3106, %v3127
      %v3134 = vadd.f32 %v3107, %v3127
      %v3135 = vadd.f32 %v3108, %v3127
      %v3136 = vadd.f32 %v3109, %v3127
      %v3137 = vadd.f32 %v3110, %v3127
      %v3138 = vadd.f32 %v3111, %v3127
      %v3139 = vadd.f32 %v3112, %v3127
      %v3140 = vadd.f32 %v3113, %v3127
      %v3141 = vadd.f32 %v3114, %v3127
      %v3142 = vadd.f32 %v3115, %v3127
      %v3143 = vadd.f32 %v3116, %v3127
      %v3144 = vadd.f32 %v3117, %v3127
      %v3145 = vadd.f32 %v3118, %v3127
      %v3146 = vadd.f32 %v3119, %v3127
      %v3147 = vadd.f32 %v3120, %v3127
      %v3148 = vadd.f32 %v3121, %v3127
      %v3149 = vmax.f32 %v3129, 0.0
      %v3150 = vmax.f32 %v3130, 0.0
      %v3151 = vmax.f32 %v3131, 0.0
      %v3152 = vmax.f32 %v3132, 0.0
      %v3153 = vmax.f32 %v3133, 0.0
      %v3154 = vmax.f32 %v3134, 0.0
      %v3155 = vmax.f32 %v3135, 0.0
      %v3156 = vmax.f32 %v3136, 0.0
      %v3157 = vmax.f32 %v3137, 0.0
      %v3158 = vmax.f32 %v3138, 0.0
      %v3159 = vmax.f32 %v3139, 0.0
      %v3160 = vmax.f32 %v3140, 0.0
      %v3161 = vmax.f32 %v3141, 0.0
      %v3162 = vmax.f32 %v3142, 0.0
      %v3163 = vmax.f32 %v3143, 0.0
      %v3164 = vmax.f32 %v3144, 0.0
      %v3165 = vmax.f32 %v3145, 0.0
      %v3166 = vmax.f32 %v3146, 0.0
      %v3167 = vmax.f32 %v3147, 0.0
      %v3168 = vmax.f32 %v3148, 0.0
      %p3169 = scmp.gt.s32.totalorder %s251, 0
      %s3170 = scalar_select %p3169, 1, 0
      %v3171 = vstv %s3170
      %vm3172 = vcmp.eq.s32.totalorder %v3171, 1
      %s3173 = sadd.s32 %s251, 8
      %p3174 = scmp.lt.s32.totalorder %s3173, 16
      %s3175 = scalar_select %p3174, 1, 0
      %v3176 = vstv %s3175
      %vm3177 = vcmp.eq.s32.totalorder %v3176, 1
      %v3178 = vsel %vm3172, 1, 0
      %v3179 = vsel %vm3177, 1, 0
      %vm3180 = vcmp.eq.s32.totalorder %v3178, 1
      %vm3181 = vcmp.eq.s32.totalorder %v3179, 1
      %v3182 = vsel %vm3180, %v3149, 0.0
      %v3183 = vsel %vm3180, %v3150, 0.0
      %v3184 = vsel 1, %v3151, 0.0
      %v3185 = vsel 1, %v3152, 0.0
      %v3186 = vsel 1, %v3153, 0.0
      %v3187 = vsel 1, %v3154, 0.0
      %v3188 = vsel 1, %v3155, 0.0
      %v3189 = vsel 1, %v3156, 0.0
      %v3190 = vsel 1, %v3157, 0.0
      %v3191 = vsel 1, %v3158, 0.0
      %v3192 = vsel 1, %v3159, 0.0
      %v3193 = vsel 1, %v3160, 0.0
      %v3194 = vsel 1, %v3161, 0.0
      %v3195 = vsel 1, %v3162, 0.0
      %v3196 = vsel 1, %v3163, 0.0
      %v3197 = vsel 1, %v3164, 0.0
      %v3198 = vsel 1, %v3165, 0.0
      %v3199 = vsel 1, %v3166, 0.0
      %v3200 = vsel %vm3181, %v3167, 0.0
      %v3201 = vsel %vm3181, %v3168, 0.0
      %v3202 = vpack.c.bf16 %v3183, %v3182
      %v3203 = vpack.c.bf16 %v3185, %v3184
      %v3204 = vpack.c.bf16 %v3187, %v3186
      %v3205 = vpack.c.bf16 %v3189, %v3188
      %v3206 = vpack.c.bf16 %v3191, %v3190
      %v3207 = vpack.c.bf16 %v3193, %v3192
      %v3208 = vpack.c.bf16 %v3195, %v3194
      %v3209 = vpack.c.bf16 %v3197, %v3196
      %v3210 = vpack.c.bf16 %v3199, %v3198
      %v3211 = vpack.c.bf16 %v3201, %v3200
      %v3213 = vshrl.u32 %v3202, 16
      %v3215 = vrot.slane %v3213, 7
      %v3216 = vshll.u32 %v3202, 16
      %v3218 = vor.u32 %v3215, %v3216
      %v3220 = vshrl.u32 %v3203, 16
      %v3222 = vrot.slane %v3220, 7
      %v3223 = vshll.u32 %v3203, 16
      %v3225 = vor.u32 %v3222, %v3223
      %v3227 = vshrl.u32 %v3204, 16
      %v3229 = vrot.slane %v3227, 7
      %v3230 = vshll.u32 %v3204, 16
      %v3232 = vor.u32 %v3229, %v3230
      %v3234 = vshrl.u32 %v3205, 16
      %v3236 = vrot.slane %v3234, 7
      %v3237 = vshll.u32 %v3205, 16
      %v3239 = vor.u32 %v3236, %v3237
      %v3241 = vshrl.u32 %v3206, 16
      %v3243 = vrot.slane %v3241, 7
      %v3244 = vshll.u32 %v3206, 16
      %v3246 = vor.u32 %v3243, %v3244
      %v3248 = vshrl.u32 %v3207, 16
      %v3250 = vrot.slane %v3248, 7
      %v3251 = vshll.u32 %v3207, 16
      %v3253 = vor.u32 %v3250, %v3251
      %v3255 = vshrl.u32 %v3208, 16
      %v3257 = vrot.slane %v3255, 7
      %v3258 = vshll.u32 %v3208, 16
      %v3260 = vor.u32 %v3257, %v3258
      %v3262 = vshrl.u32 %v3209, 16
      %v3264 = vrot.slane %v3262, 7
      %v3265 = vshll.u32 %v3209, 16
      %v3267 = vor.u32 %v3264, %v3265
      %v3269 = vshrl.u32 %v3210, 16
      %v3271 = vrot.slane %v3269, 7
      %v3272 = vshll.u32 %v3210, 16
      %v3274 = vor.u32 %v3271, %v3272
      %v3276 = vshrl.u32 %v3211, 16
      %v3278 = vrot.slane %v3276, 7
      %v3279 = vshll.u32 %v3211, 16
      %v3281 = vor.u32 %v3278, %v3279
      %vm3292 = vcmask 1040384
      %vm3293 = vsmask.f32 256
      %vm3294 = vmand %vm3292, %vm3293
      %v3295 = vsel %vm3294, 0, %v3218
      %v3296 = vsel %vm3294, 0, %v3225
      %v3297 = vsel %vm3294, 0, %v3232
      %v3298 = vsel %vm3294, 0, %v3239
      %v3299 = vsel %vm3294, 0, %v3246
      %v3300 = vsel %vm3294, 0, %v3253
      %v3301 = vsel %vm3294, 0, %v3260
      %v3302 = vsel %vm3294, 0, %v3267
      %v3303 = vsel %vm3294, 0, %v3274
      %v3304 = vsel %vm3294, 0, %v3281
      %v3305 = vrot.slane %v3216, 1
      %v3306 = vor.u32 %v3213, %v3305
      %v3307 = vrot.slane %v3223, 1
      %v3308 = vor.u32 %v3220, %v3307
      %v3309 = vrot.slane %v3230, 1
      %v3310 = vor.u32 %v3227, %v3309
      %v3311 = vrot.slane %v3237, 1
      %v3312 = vor.u32 %v3234, %v3311
      %v3313 = vrot.slane %v3244, 1
      %v3314 = vor.u32 %v3241, %v3313
      %v3315 = vrot.slane %v3251, 1
      %v3316 = vor.u32 %v3248, %v3315
      %v3317 = vrot.slane %v3258, 1
      %v3318 = vor.u32 %v3255, %v3317
      %v3319 = vrot.slane %v3265, 1
      %v3320 = vor.u32 %v3262, %v3319
      %v3321 = vrot.slane %v3272, 1
      %v3322 = vor.u32 %v3269, %v3321
      %v3323 = vrot.slane %v3279, 1
      %v3324 = vor.u32 %v3276, %v3323
      %vm3335 = vcmask 1047552
      %vm3336 = vsmask.f32 7424
      %vm3337 = vmand %vm3335, %vm3336
      %v3338 = vsel %vm3337, %v3306, 0
      %v3339 = vsel %vm3337, %v3308, 0
      %v3340 = vsel %vm3337, %v3310, 0
      %v3341 = vsel %vm3337, %v3312, 0
      %v3342 = vsel %vm3337, %v3314, 0
      %v3343 = vsel %vm3337, %v3316, 0
      %v3344 = vsel %vm3337, %v3318, 0
      %v3345 = vsel %vm3337, %v3320, 0
      %v3346 = vsel %vm3337, %v3322, 0
      %v3347 = vsel %vm3337, %v3324, 0
      %v3348 = vld [vmem:[%s3] sm:$0xf]
      %s3349 = scalar_lea.vmem %s3, 4
      %v3350 = vld [vmem:[%s3349] sm:$0xf]
      %v3351 = vsel %vm561, %v3202, 0
      %v3353 = vsel %vm561, %v3203, 0
      %v3355 = vsel %vm561, %v3204, 0
      %v3357 = vsel %vm561, %v3205, 0
      %v3359 = vsel %vm561, %v3206, 0
      %v3361 = vsel %vm561, %v3207, 0
      %v3363 = vsel %vm561, %v3208, 0
      %v3365 = vsel %vm561, %v3209, 0
      %v3368 = vsel %vm592, %v3350, 0
      %3370 = vmatprep.subr.bf16.mxu0 0
      %3371 = vmatpush1.bf16.msra.mxu0 0
      %3372 = vmatprep.subr.bf16.mxu0 0
      %3373 = vmatpush1.bf16.msra.mxu0 0
      %3374 = vmatprep.subr.bf16.mxu0 0
      %3375 = vmatpush1.bf16.msra.mxu0 0
      %3376 = vmatprep.subr.bf16.mxu0 0
      %3377 = vmatpush1.bf16.msra.mxu0 0
      %3378 = vmatprep.subr.bf16.mxu0 0
      %3379 = vmatpush1.bf16.msra.mxu0 0
      %3380 = vmatprep.subr.bf16.mxu0 0
      %3381 = vmatpush1.bf16.msra.mxu0 0
      %3382 = vmatprep.subr.bf16.mxu0 0
      %3383 = vmatpush1.bf16.msra.mxu0 0
      %3384 = vmatprep.subr.bf16.mxu0 0
      %3385 = vmatpush1.bf16.msra.mxu0 %v3368
      %3386 = vmatprep.subr.bf16.mxu0 0
      %3387 = vmatpush2.bf16.msra.mxu0 0
      %3388 = vmatprep.subr.bf16.mxu0 0
      %3389 = vmatpush2.bf16.msra.mxu0 0
      %3390 = vmatprep.subr.bf16.mxu0 0
      %3391 = vmatpush2.bf16.msra.mxu0 0
      %3392 = vmatprep.subr.bf16.mxu0 0
      %3393 = vmatpush2.bf16.msra.mxu0 0
      %3394 = vmatprep.subr.bf16.mxu0 0
      %3395 = vmatpush2.bf16.msra.mxu0 0
      %3396 = vmatprep.subr.bf16.mxu0 0
      %3397 = vmatpush2.bf16.msra.mxu0 0
      %3398 = vmatprep.subr.bf16.mxu0 0
      %3399 = vmatpush2.bf16.msra.mxu0 0
      %3400 = vmatprep.subr.bf16.mxu0 0
      %3401 = vmatpush2.bf16.msra.mxu0 0
      %3402 = vmatprep.mubr.bf16.mxu0 0
      %3403 = vmatmul.mubr.bf16.gmra.mxu0 %v3351
      %v3404 = vpop.f32.mrf.mxu0
      %v3405 = vadd.f32 0.0, %v3404
      %v3406 = vpop.f32.mrf.mxu0
      %v3407 = vpop.f32.mrf.mxu0
      %v3408 = vadd.f32 0.0, %v3407
      %v3409 = vpop.f32.mrf.mxu0
      %3410 = vmatprep.mubr.bf16.mxu0 0
      %3411 = vmatmul.mubr.bf16.gmra.mxu0 %v3353
      %v3412 = vpop.f32.mrf.mxu0
      %v3413 = vadd.f32 0.0, %v3412
      %v3414 = vpop.f32.mrf.mxu0
      %v3415 = vpop.f32.mrf.mxu0
      %v3416 = vadd.f32 0.0, %v3415
      %v3417 = vpop.f32.mrf.mxu0
      %3418 = vmatprep.mubr.bf16.mxu0 0
      %3419 = vmatmul.mubr.bf16.gmra.mxu0 %v3355
      %v3420 = vpop.f32.mrf.mxu0
      %v3421 = vadd.f32 0.0, %v3420
      %v3422 = vpop.f32.mrf.mxu0
      %v3423 = vpop.f32.mrf.mxu0
      %v3424 = vadd.f32 0.0, %v3423
      %v3425 = vpop.f32.mrf.mxu0
      %3426 = vmatprep.mubr.bf16.mxu0 0
      %3427 = vmatmul.mubr.bf16.gmra.mxu0 %v3357
      %v3428 = vpop.f32.mrf.mxu0
      %v3429 = vadd.f32 0.0, %v3428
      %v3430 = vpop.f32.mrf.mxu0
      %v3431 = vpop.f32.mrf.mxu0
      %v3432 = vadd.f32 0.0, %v3431
      %v3433 = vpop.f32.mrf.mxu0
      %3434 = vmatprep.mubr.bf16.mxu0 0
      %3435 = vmatmul.mubr.bf16.gmra.mxu0 %v3359
      %v3436 = vpop.f32.mrf.mxu0
      %v3437 = vadd.f32 0.0, %v3436
      %v3438 = vpop.f32.mrf.mxu0
      %v3439 = vpop.f32.mrf.mxu0
      %v3440 = vadd.f32 0.0, %v3439
      %v3441 = vpop.f32.mrf.mxu0
      %3442 = vmatprep.mubr.bf16.mxu0 0
      %3443 = vmatmul.mubr.bf16.gmra.mxu0 %v3361
      %v3444 = vpop.f32.mrf.mxu0
      %v3445 = vadd.f32 0.0, %v3444
      %v3446 = vpop.f32.mrf.mxu0
      %v3447 = vpop.f32.mrf.mxu0
      %v3448 = vadd.f32 0.0, %v3447
      %v3449 = vpop.f32.mrf.mxu0
      %3450 = vmatprep.mubr.bf16.mxu0 0
      %3451 = vmatmul.mubr.bf16.gmra.mxu0 %v3363
      %v3452 = vpop.f32.mrf.mxu0
      %v3453 = vadd.f32 0.0, %v3452
      %v3454 = vpop.f32.mrf.mxu0
      %v3455 = vpop.f32.mrf.mxu0
      %v3456 = vadd.f32 0.0, %v3455
      %v3457 = vpop.f32.mrf.mxu0
      %3458 = vmatprep.mubr.bf16.mxu0 0
      %3459 = vmatmul.mubr.bf16.gmra.mxu0 %v3365
      %v3460 = vpop.f32.mrf.mxu0
      %v3461 = vadd.f32 0.0, %v3460
      %v3462 = vpop.f32.mrf.mxu0
      %v3463 = vpop.f32.mrf.mxu0
      %v3464 = vadd.f32 0.0, %v3463
      %v3465 = vpop.f32.mrf.mxu0
      %3466 = vdwg.mxu0
      %v3468 = vsel %vm561, %v3295, 0
      %v3471 = vsel %vm561, %v3296, 0
      %v3474 = vsel %vm561, %v3297, 0
      %v3477 = vsel %vm561, %v3298, 0
      %v3480 = vsel %vm561, %v3299, 0
      %v3483 = vsel %vm561, %v3300, 0
      %v3486 = vsel %vm561, %v3301, 0
      %v3489 = vsel %vm561, %v3302, 0
      %v3492 = vsel %vm592, %v3348, 0
      %3494 = vmatprep.subr.bf16.mxu0 0
      %3495 = vmatpush1.bf16.msra.mxu0 0
      %3496 = vmatprep.subr.bf16.mxu0 0
      %3497 = vmatpush1.bf16.msra.mxu0 0
      %3498 = vmatprep.subr.bf16.mxu0 0
      %3499 = vmatpush1.bf16.msra.mxu0 0
      %3500 = vmatprep.subr.bf16.mxu0 0
      %3501 = vmatpush1.bf16.msra.mxu0 0
      %3502 = vmatprep.subr.bf16.mxu0 0
      %3503 = vmatpush1.bf16.msra.mxu0 0
      %3504 = vmatprep.subr.bf16.mxu0 0
      %3505 = vmatpush1.bf16.msra.mxu0 0
      %3506 = vmatprep.subr.bf16.mxu0 0
      %3507 = vmatpush1.bf16.msra.mxu0 0
      %3508 = vmatprep.subr.bf16.mxu0 0
      %3509 = vmatpush1.bf16.msra.mxu0 %v3492
      %3510 = vmatprep.subr.bf16.mxu0 0
      %3511 = vmatpush2.bf16.msra.mxu0 0
      %3512 = vmatprep.subr.bf16.mxu0 0
      %3513 = vmatpush2.bf16.msra.mxu0 0
      %3514 = vmatprep.subr.bf16.mxu0 0
      %3515 = vmatpush2.bf16.msra.mxu0 0
      %3516 = vmatprep.subr.bf16.mxu0 0
      %3517 = vmatpush2.bf16.msra.mxu0 0
      %3518 = vmatprep.subr.bf16.mxu0 0
      %3519 = vmatpush2.bf16.msra.mxu0 0
      %3520 = vmatprep.subr.bf16.mxu0 0
      %3521 = vmatpush2.bf16.msra.mxu0 0
      %3522 = vmatprep.subr.bf16.mxu0 0
      %3523 = vmatpush2.bf16.msra.mxu0 0
      %3524 = vmatprep.subr.bf16.mxu0 0
      %3525 = vmatpush2.bf16.msra.mxu0 0
      %3526 = vmatprep.mubr.bf16.mxu0 0
      %3527 = vmatmul.mubr.bf16.gmra.mxu0 %v3468
      %v3528 = vpop.f32.mrf.mxu0
      %v3529 = vadd.f32 %v3405, %v3528
      %v3530 = vpop.f32.mrf.mxu0
      %v3531 = vpop.f32.mrf.mxu0
      %v3532 = vadd.f32 %v3408, %v3531
      %v3533 = vpop.f32.mrf.mxu0
      %3534 = vmatprep.mubr.bf16.mxu0 0
      %3535 = vmatmul.mubr.bf16.gmra.mxu0 %v3471
      %v3536 = vpop.f32.mrf.mxu0
      %v3537 = vadd.f32 %v3413, %v3536
      %v3538 = vpop.f32.mrf.mxu0
      %v3539 = vpop.f32.mrf.mxu0
      %v3540 = vadd.f32 %v3416, %v3539
      %v3541 = vpop.f32.mrf.mxu0
      %3542 = vmatprep.mubr.bf16.mxu0 0
      %3543 = vmatmul.mubr.bf16.gmra.mxu0 %v3474
      %v3544 = vpop.f32.mrf.mxu0
      %v3545 = vadd.f32 %v3421, %v3544
      %v3546 = vpop.f32.mrf.mxu0
      %v3547 = vpop.f32.mrf.mxu0
      %v3548 = vadd.f32 %v3424, %v3547
      %v3549 = vpop.f32.mrf.mxu0
      %3550 = vmatprep.mubr.bf16.mxu0 0
      %3551 = vmatmul.mubr.bf16.gmra.mxu0 %v3477
      %v3552 = vpop.f32.mrf.mxu0
      %v3553 = vadd.f32 %v3429, %v3552
      %v3554 = vpop.f32.mrf.mxu0
      %v3555 = vpop.f32.mrf.mxu0
      %v3556 = vadd.f32 %v3432, %v3555
      %v3557 = vpop.f32.mrf.mxu0
      %3558 = vmatprep.mubr.bf16.mxu0 0
      %3559 = vmatmul.mubr.bf16.gmra.mxu0 %v3480
      %v3560 = vpop.f32.mrf.mxu0
      %v3561 = vadd.f32 %v3437, %v3560
      %v3562 = vpop.f32.mrf.mxu0
      %v3563 = vpop.f32.mrf.mxu0
      %v3564 = vadd.f32 %v3440, %v3563
      %v3565 = vpop.f32.mrf.mxu0
      %3566 = vmatprep.mubr.bf16.mxu0 0
      %3567 = vmatmul.mubr.bf16.gmra.mxu0 %v3483
      %v3568 = vpop.f32.mrf.mxu0
      %v3569 = vadd.f32 %v3445, %v3568
      %v3570 = vpop.f32.mrf.mxu0
      %v3571 = vpop.f32.mrf.mxu0
      %v3572 = vadd.f32 %v3448, %v3571
      %v3573 = vpop.f32.mrf.mxu0
      %3574 = vmatprep.mubr.bf16.mxu0 0
      %3575 = vmatmul.mubr.bf16.gmra.mxu0 %v3486
      %v3576 = vpop.f32.mrf.mxu0
      %v3577 = vadd.f32 %v3453, %v3576
      %v3578 = vpop.f32.mrf.mxu0
      %v3579 = vpop.f32.mrf.mxu0
      %v3580 = vadd.f32 %v3456, %v3579
      %v3581 = vpop.f32.mrf.mxu0
      %3582 = vmatprep.mubr.bf16.mxu0 0
      %3583 = vmatmul.mubr.bf16.gmra.mxu0 %v3489
      %v3584 = vpop.f32.mrf.mxu0
      %v3585 = vadd.f32 %v3461, %v3584
      %v3586 = vpop.f32.mrf.mxu0
      %v3587 = vpop.f32.mrf.mxu0
      %v3588 = vadd.f32 %v3464, %v3587
      %v3589 = vpop.f32.mrf.mxu0
      %3590 = vdwg.mxu0
      %s3591 = scalar_lea.vmem %s3, 8
      %v3592 = vld [vmem:[%s3591] sm:$0xf]
      %v3594 = vsel %vm561, %v3338, 0
      %v3597 = vsel %vm561, %v3339, 0
      %v3600 = vsel %vm561, %v3340, 0
      %v3603 = vsel %vm561, %v3341, 0
      %v3606 = vsel %vm561, %v3342, 0
      %v3609 = vsel %vm561, %v3343, 0
      %v3612 = vsel %vm561, %v3344, 0
      %v3615 = vsel %vm561, %v3345, 0
      %v3618 = vsel %vm592, %v3592, 0
      %3620 = vmatprep.subr.bf16.mxu0 0
      %3621 = vmatpush1.bf16.msra.mxu0 0
      %3622 = vmatprep.subr.bf16.mxu0 0
      %3623 = vmatpush1.bf16.msra.mxu0 0
      %3624 = vmatprep.subr.bf16.mxu0 0
      %3625 = vmatpush1.bf16.msra.mxu0 0
      %3626 = vmatprep.subr.bf16.mxu0 0
      %3627 = vmatpush1.bf16.msra.mxu0 0
      %3628 = vmatprep.subr.bf16.mxu0 0
      %3629 = vmatpush1.bf16.msra.mxu0 0
      %3630 = vmatprep.subr.bf16.mxu0 0
      %3631 = vmatpush1.bf16.msra.mxu0 0
      %3632 = vmatprep.subr.bf16.mxu0 0
      %3633 = vmatpush1.bf16.msra.mxu0 0
      %3634 = vmatprep.subr.bf16.mxu0 0
      %3635 = vmatpush1.bf16.msra.mxu0 %v3618
      %3636 = vmatprep.subr.bf16.mxu0 0
      %3637 = vmatpush2.bf16.msra.mxu0 0
      %3638 = vmatprep.subr.bf16.mxu0 0
      %3639 = vmatpush2.bf16.msra.mxu0 0
      %3640 = vmatprep.subr.bf16.mxu0 0
      %3641 = vmatpush2.bf16.msra.mxu0 0
      %3642 = vmatprep.subr.bf16.mxu0 0
      %3643 = vmatpush2.bf16.msra.mxu0 0
      %3644 = vmatprep.subr.bf16.mxu0 0
      %3645 = vmatpush2.bf16.msra.mxu0 0
      %3646 = vmatprep.subr.bf16.mxu0 0
      %3647 = vmatpush2.bf16.msra.mxu0 0
      %3648 = vmatprep.subr.bf16.mxu0 0
      %3649 = vmatpush2.bf16.msra.mxu0 0
      %3650 = vmatprep.subr.bf16.mxu0 0
      %3651 = vmatpush2.bf16.msra.mxu0 0
      %3652 = vmatprep.mubr.bf16.mxu0 0
      %3653 = vmatmul.mubr.bf16.gmra.mxu0 %v3594
      %v3654 = vpop.f32.mrf.mxu0
      %v3655 = vadd.f32 0.0, %v3654
      %v3656 = vpop.f32.mrf.mxu0
      %v3657 = vpop.f32.mrf.mxu0
      %v3658 = vadd.f32 0.0, %v3657
      %v3659 = vpop.f32.mrf.mxu0
      %3660 = vmatprep.mubr.bf16.mxu0 0
      %3661 = vmatmul.mubr.bf16.gmra.mxu0 %v3597
      %v3662 = vpop.f32.mrf.mxu0
      %v3663 = vadd.f32 0.0, %v3662
      %v3664 = vpop.f32.mrf.mxu0
      %v3665 = vpop.f32.mrf.mxu0
      %v3666 = vadd.f32 0.0, %v3665
      %v3667 = vpop.f32.mrf.mxu0
      %3668 = vmatprep.mubr.bf16.mxu0 0
      %3669 = vmatmul.mubr.bf16.gmra.mxu0 %v3600
      %v3670 = vpop.f32.mrf.mxu0
      %v3671 = vadd.f32 0.0, %v3670
      %v3672 = vpop.f32.mrf.mxu0
      %v3673 = vpop.f32.mrf.mxu0
      %v3674 = vadd.f32 0.0, %v3673
      %v3675 = vpop.f32.mrf.mxu0
      %3676 = vmatprep.mubr.bf16.mxu0 0
      %3677 = vmatmul.mubr.bf16.gmra.mxu0 %v3603
      %v3678 = vpop.f32.mrf.mxu0
      %v3679 = vadd.f32 0.0, %v3678
      %v3680 = vpop.f32.mrf.mxu0
      %v3681 = vpop.f32.mrf.mxu0
      %v3682 = vadd.f32 0.0, %v3681
      %v3683 = vpop.f32.mrf.mxu0
      %3684 = vmatprep.mubr.bf16.mxu0 0
      %3685 = vmatmul.mubr.bf16.gmra.mxu0 %v3606
      %v3686 = vpop.f32.mrf.mxu0
      %v3687 = vadd.f32 0.0, %v3686
      %v3688 = vpop.f32.mrf.mxu0
      %v3689 = vpop.f32.mrf.mxu0
      %v3690 = vadd.f32 0.0, %v3689
      %v3691 = vpop.f32.mrf.mxu0
      %3692 = vmatprep.mubr.bf16.mxu0 0
      %3693 = vmatmul.mubr.bf16.gmra.mxu0 %v3609
      %v3694 = vpop.f32.mrf.mxu0
      %v3695 = vadd.f32 0.0, %v3694
      %v3696 = vpop.f32.mrf.mxu0
      %v3697 = vpop.f32.mrf.mxu0
      %v3698 = vadd.f32 0.0, %v3697
      %v3699 = vpop.f32.mrf.mxu0
      %3700 = vmatprep.mubr.bf16.mxu0 0
      %3701 = vmatmul.mubr.bf16.gmra.mxu0 %v3612
      %v3702 = vpop.f32.mrf.mxu0
      %v3703 = vadd.f32 0.0, %v3702
      %v3704 = vpop.f32.mrf.mxu0
      %v3705 = vpop.f32.mrf.mxu0
      %v3706 = vadd.f32 0.0, %v3705
      %v3707 = vpop.f32.mrf.mxu0
      %3708 = vmatprep.mubr.bf16.mxu0 0
      %3709 = vmatmul.mubr.bf16.gmra.mxu0 %v3615
      %v3710 = vpop.f32.mrf.mxu0
      %v3711 = vadd.f32 0.0, %v3710
      %v3712 = vpop.f32.mrf.mxu0
      %v3713 = vpop.f32.mrf.mxu0
      %v3714 = vadd.f32 0.0, %v3713
      %v3715 = vpop.f32.mrf.mxu0
      %3716 = vdwg.mxu0
      %v3717 = vadd.f32 %v3529, %v3655
      %v3718 = vadd.f32 %v3532, %v3658
      %v3719 = vadd.f32 %v3537, %v3663
      %v3720 = vadd.f32 %v3540, %v3666
      %v3721 = vadd.f32 %v3545, %v3671
      %v3722 = vadd.f32 %v3548, %v3674
      %v3723 = vadd.f32 %v3553, %v3679
      %v3724 = vadd.f32 %v3556, %v3682
      %v3725 = vadd.f32 %v3561, %v3687
      %v3726 = vadd.f32 %v3564, %v3690
      %v3727 = vadd.f32 %v3569, %v3695
      %v3728 = vadd.f32 %v3572, %v3698
      %v3729 = vadd.f32 %v3577, %v3703
      %v3730 = vadd.f32 %v3580, %v3706
      %v3731 = vadd.f32 %v3585, %v3711
      %v3732 = vadd.f32 %v3588, %v3714
      %s3733 = scalar_lea.vmem %s3, 12
      %v3734 = vld [vmem:[%s3733] sm:$0xf]
      %v3736 = vsel %vm561, %v3303, 0
      %v3739 = vsel %vm592, %v3734, 0
      %3741 = vmatprep.subr.bf16.mxu0 0
      %3742 = vmatpush1.bf16.msra.mxu0 0
      %3743 = vmatprep.subr.bf16.mxu0 0
      %3744 = vmatpush1.bf16.msra.mxu0 0
      %3745 = vmatprep.subr.bf16.mxu0 0
      %3746 = vmatpush1.bf16.msra.mxu0 0
      %3747 = vmatprep.subr.bf16.mxu0 0
      %3748 = vmatpush1.bf16.msra.mxu0 0
      %3749 = vmatprep.subr.bf16.mxu0 0
      %3750 = vmatpush1.bf16.msra.mxu0 0
      %3751 = vmatprep.subr.bf16.mxu0 0
      %3752 = vmatpush1.bf16.msra.mxu0 0
      %3753 = vmatprep.subr.bf16.mxu0 0
      %3754 = vmatpush1.bf16.msra.mxu0 0
      %3755 = vmatprep.subr.bf16.mxu0 0
      %3756 = vmatpush1.bf16.msra.mxu0 %v3739
      %3757 = vmatprep.subr.bf16.mxu0 0
      %3758 = vmatpush2.bf16.msra.mxu0 0
      %3759 = vmatprep.subr.bf16.mxu0 0
      %3760 = vmatpush2.bf16.msra.mxu0 0
      %3761 = vmatprep.subr.bf16.mxu0 0
      %3762 = vmatpush2.bf16.msra.mxu0 0
      %3763 = vmatprep.subr.bf16.mxu0 0
      %3764 = vmatpush2.bf16.msra.mxu0 0
      %3765 = vmatprep.subr.bf16.mxu0 0
      %3766 = vmatpush2.bf16.msra.mxu0 0
      %3767 = vmatprep.subr.bf16.mxu0 0
      %3768 = vmatpush2.bf16.msra.mxu0 0
      %3769 = vmatprep.subr.bf16.mxu0 0
      %3770 = vmatpush2.bf16.msra.mxu0 0
      %3771 = vmatprep.subr.bf16.mxu0 0
      %3772 = vmatpush2.bf16.msra.mxu0 0
      %3773 = vmatprep.mubr.bf16.mxu0 0
      %3774 = vmatmul.mubr.bf16.gmra.mxu0 %v3471
      %v3775 = vpop.f32.mrf.mxu0
      %v3776 = vadd.f32 0.0, %v3775
      %v3777 = vpop.f32.mrf.mxu0
      %v3778 = vpop.f32.mrf.mxu0
      %v3779 = vadd.f32 0.0, %v3778
      %v3780 = vpop.f32.mrf.mxu0
      %3781 = vmatprep.mubr.bf16.mxu0 0
      %3782 = vmatmul.mubr.bf16.gmra.mxu0 %v3474
      %v3783 = vpop.f32.mrf.mxu0
      %v3784 = vadd.f32 0.0, %v3783
      %v3785 = vpop.f32.mrf.mxu0
      %v3786 = vpop.f32.mrf.mxu0
      %v3787 = vadd.f32 0.0, %v3786
      %v3788 = vpop.f32.mrf.mxu0
      %3789 = vmatprep.mubr.bf16.mxu0 0
      %3790 = vmatmul.mubr.bf16.gmra.mxu0 %v3477
      %v3791 = vpop.f32.mrf.mxu0
      %v3792 = vadd.f32 0.0, %v3791
      %v3793 = vpop.f32.mrf.mxu0
      %v3794 = vpop.f32.mrf.mxu0
      %v3795 = vadd.f32 0.0, %v3794
      %v3796 = vpop.f32.mrf.mxu0
      %3797 = vmatprep.mubr.bf16.mxu0 0
      %3798 = vmatmul.mubr.bf16.gmra.mxu0 %v3480
      %v3799 = vpop.f32.mrf.mxu0
      %v3800 = vadd.f32 0.0, %v3799
      %v3801 = vpop.f32.mrf.mxu0
      %v3802 = vpop.f32.mrf.mxu0
      %v3803 = vadd.f32 0.0, %v3802
      %v3804 = vpop.f32.mrf.mxu0
      %3805 = vmatprep.mubr.bf16.mxu0 0
      %3806 = vmatmul.mubr.bf16.gmra.mxu0 %v3483
      %v3807 = vpop.f32.mrf.mxu0
      %v3808 = vadd.f32 0.0, %v3807
      %v3809 = vpop.f32.mrf.mxu0
      %v3810 = vpop.f32.mrf.mxu0
      %v3811 = vadd.f32 0.0, %v3810
      %v3812 = vpop.f32.mrf.mxu0
      %3813 = vmatprep.mubr.bf16.mxu0 0
      %3814 = vmatmul.mubr.bf16.gmra.mxu0 %v3486
      %v3815 = vpop.f32.mrf.mxu0
      %v3816 = vadd.f32 0.0, %v3815
      %v3817 = vpop.f32.mrf.mxu0
      %v3818 = vpop.f32.mrf.mxu0
      %v3819 = vadd.f32 0.0, %v3818
      %v3820 = vpop.f32.mrf.mxu0
      %3821 = vmatprep.mubr.bf16.mxu0 0
      %3822 = vmatmul.mubr.bf16.gmra.mxu0 %v3489
      %v3823 = vpop.f32.mrf.mxu0
      %v3824 = vadd.f32 0.0, %v3823
      %v3825 = vpop.f32.mrf.mxu0
      %v3826 = vpop.f32.mrf.mxu0
      %v3827 = vadd.f32 0.0, %v3826
      %v3828 = vpop.f32.mrf.mxu0
      %3829 = vmatprep.mubr.bf16.mxu0 0
      %3830 = vmatmul.mubr.bf16.gmra.mxu0 %v3736
      %v3831 = vpop.f32.mrf.mxu0
      %v3832 = vadd.f32 0.0, %v3831
      %v3833 = vpop.f32.mrf.mxu0
      %v3834 = vpop.f32.mrf.mxu0
      %v3835 = vadd.f32 0.0, %v3834
      %v3836 = vpop.f32.mrf.mxu0
      %3837 = vdwg.mxu0
      %v3838 = vadd.f32 %v3717, %v3776
      %v3839 = vadd.f32 %v3718, %v3779
      %v3840 = vadd.f32 %v3719, %v3784
      %v3841 = vadd.f32 %v3720, %v3787
      %v3842 = vadd.f32 %v3721, %v3792
      %v3843 = vadd.f32 %v3722, %v3795
      %v3844 = vadd.f32 %v3723, %v3800
      %v3845 = vadd.f32 %v3724, %v3803
      %v3846 = vadd.f32 %v3725, %v3808
      %v3847 = vadd.f32 %v3726, %v3811
      %v3848 = vadd.f32 %v3727, %v3816
      %v3849 = vadd.f32 %v3728, %v3819
      %v3850 = vadd.f32 %v3729, %v3824
      %v3851 = vadd.f32 %v3730, %v3827
      %v3852 = vadd.f32 %v3731, %v3832
      %v3853 = vadd.f32 %v3732, %v3835
      %s3854 = scalar_lea.vmem %s3, 16
      %v3855 = vld [vmem:[%s3854] sm:$0xf]
      %v3856 = vsel %vm561, %v3210, 0
      %v3859 = vsel %vm592, %v3855, 0
      %3861 = vmatprep.subr.bf16.mxu0 0
      %3862 = vmatpush1.bf16.msra.mxu0 0
      %3863 = vmatprep.subr.bf16.mxu0 0
      %3864 = vmatpush1.bf16.msra.mxu0 0
      %3865 = vmatprep.subr.bf16.mxu0 0
      %3866 = vmatpush1.bf16.msra.mxu0 0
      %3867 = vmatprep.subr.bf16.mxu0 0
      %3868 = vmatpush1.bf16.msra.mxu0 0
      %3869 = vmatprep.subr.bf16.mxu0 0
      %3870 = vmatpush1.bf16.msra.mxu0 0
      %3871 = vmatprep.subr.bf16.mxu0 0
      %3872 = vmatpush1.bf16.msra.mxu0 0
      %3873 = vmatprep.subr.bf16.mxu0 0
      %3874 = vmatpush1.bf16.msra.mxu0 0
      %3875 = vmatprep.subr.bf16.mxu0 0
      %3876 = vmatpush1.bf16.msra.mxu0 %v3859
      %3877 = vmatprep.subr.bf16.mxu0 0
      %3878 = vmatpush2.bf16.msra.mxu0 0
      %3879 = vmatprep.subr.bf16.mxu0 0
      %3880 = vmatpush2.bf16.msra.mxu0 0
      %3881 = vmatprep.subr.bf16.mxu0 0
      %3882 = vmatpush2.bf16.msra.mxu0 0
      %3883 = vmatprep.subr.bf16.mxu0 0
      %3884 = vmatpush2.bf16.msra.mxu0 0
      %3885 = vmatprep.subr.bf16.mxu0 0
      %3886 = vmatpush2.bf16.msra.mxu0 0
      %3887 = vmatprep.subr.bf16.mxu0 0
      %3888 = vmatpush2.bf16.msra.mxu0 0
      %3889 = vmatprep.subr.bf16.mxu0 0
      %3890 = vmatpush2.bf16.msra.mxu0 0
      %3891 = vmatprep.subr.bf16.mxu0 0
      %3892 = vmatpush2.bf16.msra.mxu0 0
      %3893 = vmatprep.mubr.bf16.mxu0 0
      %3894 = vmatmul.mubr.bf16.gmra.mxu0 %v3353
      %v3895 = vpop.f32.mrf.mxu0
      %v3896 = vadd.f32 0.0, %v3895
      %v3897 = vpop.f32.mrf.mxu0
      %v3898 = vpop.f32.mrf.mxu0
      %v3899 = vadd.f32 0.0, %v3898
      %v3900 = vpop.f32.mrf.mxu0
      %3901 = vmatprep.mubr.bf16.mxu0 0
      %3902 = vmatmul.mubr.bf16.gmra.mxu0 %v3355
      %v3903 = vpop.f32.mrf.mxu0
      %v3904 = vadd.f32 0.0, %v3903
      %v3905 = vpop.f32.mrf.mxu0
      %v3906 = vpop.f32.mrf.mxu0
      %v3907 = vadd.f32 0.0, %v3906
      %v3908 = vpop.f32.mrf.mxu0
      %3909 = vmatprep.mubr.bf16.mxu0 0
      %3910 = vmatmul.mubr.bf16.gmra.mxu0 %v3357
      %v3911 = vpop.f32.mrf.mxu0
      %v3912 = vadd.f32 0.0, %v3911
      %v3913 = vpop.f32.mrf.mxu0
      %v3914 = vpop.f32.mrf.mxu0
      %v3915 = vadd.f32 0.0, %v3914
      %v3916 = vpop.f32.mrf.mxu0
      %3917 = vmatprep.mubr.bf16.mxu0 0
      %3918 = vmatmul.mubr.bf16.gmra.mxu0 %v3359
      %v3919 = vpop.f32.mrf.mxu0
      %v3920 = vadd.f32 0.0, %v3919
      %v3921 = vpop.f32.mrf.mxu0
      %v3922 = vpop.f32.mrf.mxu0
      %v3923 = vadd.f32 0.0, %v3922
      %v3924 = vpop.f32.mrf.mxu0
      %3925 = vmatprep.mubr.bf16.mxu0 0
      %3926 = vmatmul.mubr.bf16.gmra.mxu0 %v3361
      %v3927 = vpop.f32.mrf.mxu0
      %v3928 = vadd.f32 0.0, %v3927
      %v3929 = vpop.f32.mrf.mxu0
      %v3930 = vpop.f32.mrf.mxu0
      %v3931 = vadd.f32 0.0, %v3930
      %v3932 = vpop.f32.mrf.mxu0
      %3933 = vmatprep.mubr.bf16.mxu0 0
      %3934 = vmatmul.mubr.bf16.gmra.mxu0 %v3363
      %v3935 = vpop.f32.mrf.mxu0
      %v3936 = vadd.f32 0.0, %v3935
      %v3937 = vpop.f32.mrf.mxu0
      %v3938 = vpop.f32.mrf.mxu0
      %v3939 = vadd.f32 0.0, %v3938
      %v3940 = vpop.f32.mrf.mxu0
      %3941 = vmatprep.mubr.bf16.mxu0 0
      %3942 = vmatmul.mubr.bf16.gmra.mxu0 %v3365
      %v3943 = vpop.f32.mrf.mxu0
      %v3944 = vadd.f32 0.0, %v3943
      %v3945 = vpop.f32.mrf.mxu0
      %v3946 = vpop.f32.mrf.mxu0
      %v3947 = vadd.f32 0.0, %v3946
      %v3948 = vpop.f32.mrf.mxu0
      %3949 = vmatprep.mubr.bf16.mxu0 0
      %3950 = vmatmul.mubr.bf16.gmra.mxu0 %v3856
      %v3951 = vpop.f32.mrf.mxu0
      %v3952 = vadd.f32 0.0, %v3951
      %v3953 = vpop.f32.mrf.mxu0
      %v3954 = vpop.f32.mrf.mxu0
      %v3955 = vadd.f32 0.0, %v3954
      %v3956 = vpop.f32.mrf.mxu0
      %3957 = vdwg.mxu0
      %v3958 = vadd.f32 %v3838, %v3896
      %v3959 = vadd.f32 %v3839, %v3899
      %v3960 = vadd.f32 %v3840, %v3904
      %v3961 = vadd.f32 %v3841, %v3907
      %v3962 = vadd.f32 %v3842, %v3912
      %v3963 = vadd.f32 %v3843, %v3915
      %v3964 = vadd.f32 %v3844, %v3920
      %v3965 = vadd.f32 %v3845, %v3923
      %v3966 = vadd.f32 %v3846, %v3928
      %v3967 = vadd.f32 %v3847, %v3931
      %v3968 = vadd.f32 %v3848, %v3936
      %v3969 = vadd.f32 %v3849, %v3939
      %v3970 = vadd.f32 %v3850, %v3944
      %v3971 = vadd.f32 %v3851, %v3947
      %v3972 = vadd.f32 %v3852, %v3952
      %v3973 = vadd.f32 %v3853, %v3955
      %s3974 = scalar_lea.vmem %s3, 20
      %v3975 = vld [vmem:[%s3974] sm:$0xf]
      %v3977 = vsel %vm561, %v3346, 0
      %v3980 = vsel %vm592, %v3975, 0
      %3982 = vmatprep.subr.bf16.mxu0 0
      %3983 = vmatpush1.bf16.msra.mxu0 0
      %3984 = vmatprep.subr.bf16.mxu0 0
      %3985 = vmatpush1.bf16.msra.mxu0 0
      %3986 = vmatprep.subr.bf16.mxu0 0
      %3987 = vmatpush1.bf16.msra.mxu0 0
      %3988 = vmatprep.subr.bf16.mxu0 0
      %3989 = vmatpush1.bf16.msra.mxu0 0
      %3990 = vmatprep.subr.bf16.mxu0 0
      %3991 = vmatpush1.bf16.msra.mxu0 0
      %3992 = vmatprep.subr.bf16.mxu0 0
      %3993 = vmatpush1.bf16.msra.mxu0 0
      %3994 = vmatprep.subr.bf16.mxu0 0
      %3995 = vmatpush1.bf16.msra.mxu0 0
      %3996 = vmatprep.subr.bf16.mxu0 0
      %3997 = vmatpush1.bf16.msra.mxu0 %v3980
      %3998 = vmatprep.subr.bf16.mxu0 0
      %3999 = vmatpush2.bf16.msra.mxu0 0
      %4000 = vmatprep.subr.bf16.mxu0 0
      %4001 = vmatpush2.bf16.msra.mxu0 0
      %4002 = vmatprep.subr.bf16.mxu0 0
      %4003 = vmatpush2.bf16.msra.mxu0 0
      %4004 = vmatprep.subr.bf16.mxu0 0
      %4005 = vmatpush2.bf16.msra.mxu0 0
      %4006 = vmatprep.subr.bf16.mxu0 0
      %4007 = vmatpush2.bf16.msra.mxu0 0
      %4008 = vmatprep.subr.bf16.mxu0 0
      %4009 = vmatpush2.bf16.msra.mxu0 0
      %4010 = vmatprep.subr.bf16.mxu0 0
      %4011 = vmatpush2.bf16.msra.mxu0 0
      %4012 = vmatprep.subr.bf16.mxu0 0
      %4013 = vmatpush2.bf16.msra.mxu0 0
      %4014 = vmatprep.mubr.bf16.mxu0 0
      %4015 = vmatmul.mubr.bf16.gmra.mxu0 %v3597
      %v4016 = vpop.f32.mrf.mxu0
      %v4017 = vadd.f32 0.0, %v4016
      %v4018 = vpop.f32.mrf.mxu0
      %v4019 = vpop.f32.mrf.mxu0
      %v4020 = vadd.f32 0.0, %v4019
      %v4021 = vpop.f32.mrf.mxu0
      %4022 = vmatprep.mubr.bf16.mxu0 0
      %4023 = vmatmul.mubr.bf16.gmra.mxu0 %v3600
      %v4024 = vpop.f32.mrf.mxu0
      %v4025 = vadd.f32 0.0, %v4024
      %v4026 = vpop.f32.mrf.mxu0
      %v4027 = vpop.f32.mrf.mxu0
      %v4028 = vadd.f32 0.0, %v4027
      %v4029 = vpop.f32.mrf.mxu0
      %4030 = vmatprep.mubr.bf16.mxu0 0
      %4031 = vmatmul.mubr.bf16.gmra.mxu0 %v3603
      %v4032 = vpop.f32.mrf.mxu0
      %v4033 = vadd.f32 0.0, %v4032
      %v4034 = vpop.f32.mrf.mxu0
      %v4035 = vpop.f32.mrf.mxu0
      %v4036 = vadd.f32 0.0, %v4035
      %v4037 = vpop.f32.mrf.mxu0
      %4038 = vmatprep.mubr.bf16.mxu0 0
      %4039 = vmatmul.mubr.bf16.gmra.mxu0 %v3606
      %v4040 = vpop.f32.mrf.mxu0
      %v4041 = vadd.f32 0.0, %v4040
      %v4042 = vpop.f32.mrf.mxu0
      %v4043 = vpop.f32.mrf.mxu0
      %v4044 = vadd.f32 0.0, %v4043
      %v4045 = vpop.f32.mrf.mxu0
      %4046 = vmatprep.mubr.bf16.mxu0 0
      %4047 = vmatmul.mubr.bf16.gmra.mxu0 %v3609
      %v4048 = vpop.f32.mrf.mxu0
      %v4049 = vadd.f32 0.0, %v4048
      %v4050 = vpop.f32.mrf.mxu0
      %v4051 = vpop.f32.mrf.mxu0
      %v4052 = vadd.f32 0.0, %v4051
      %v4053 = vpop.f32.mrf.mxu0
      %4054 = vmatprep.mubr.bf16.mxu0 0
      %4055 = vmatmul.mubr.bf16.gmra.mxu0 %v3612
      %v4056 = vpop.f32.mrf.mxu0
      %v4057 = vadd.f32 0.0, %v4056
      %v4058 = vpop.f32.mrf.mxu0
      %v4059 = vpop.f32.mrf.mxu0
      %v4060 = vadd.f32 0.0, %v4059
      %v4061 = vpop.f32.mrf.mxu0
      %4062 = vmatprep.mubr.bf16.mxu0 0
      %4063 = vmatmul.mubr.bf16.gmra.mxu0 %v3615
      %v4064 = vpop.f32.mrf.mxu0
      %v4065 = vadd.f32 0.0, %v4064
      %v4066 = vpop.f32.mrf.mxu0
      %v4067 = vpop.f32.mrf.mxu0
      %v4068 = vadd.f32 0.0, %v4067
      %v4069 = vpop.f32.mrf.mxu0
      %4070 = vmatprep.mubr.bf16.mxu0 0
      %4071 = vmatmul.mubr.bf16.gmra.mxu0 %v3977
      %v4072 = vpop.f32.mrf.mxu0
      %v4073 = vadd.f32 0.0, %v4072
      %v4074 = vpop.f32.mrf.mxu0
      %v4075 = vpop.f32.mrf.mxu0
      %v4076 = vadd.f32 0.0, %v4075
      %v4077 = vpop.f32.mrf.mxu0
      %4078 = vdwg.mxu0
      %v4079 = vadd.f32 %v3958, %v4017
      %v4080 = vadd.f32 %v3959, %v4020
      %v4081 = vadd.f32 %v3960, %v4025
      %v4082 = vadd.f32 %v3961, %v4028
      %v4083 = vadd.f32 %v3962, %v4033
      %v4084 = vadd.f32 %v3963, %v4036
      %v4085 = vadd.f32 %v3964, %v4041
      %v4086 = vadd.f32 %v3965, %v4044
      %v4087 = vadd.f32 %v3966, %v4049
      %v4088 = vadd.f32 %v3967, %v4052
      %v4089 = vadd.f32 %v3968, %v4057
      %v4090 = vadd.f32 %v3969, %v4060
      %v4091 = vadd.f32 %v3970, %v4065
      %v4092 = vadd.f32 %v3971, %v4068
      %v4093 = vadd.f32 %v3972, %v4073
      %v4094 = vadd.f32 %v3973, %v4076
      %s4095 = scalar_lea.vmem %s3, 24
      %v4096 = vld [vmem:[%s4095] sm:$0xf]
      %v4098 = vsel %vm561, %v3304, 0
      %v4101 = vsel %vm592, %v4096, 0
      %4103 = vmatprep.subr.bf16.mxu0 0
      %4104 = vmatpush1.bf16.msra.mxu0 0
      %4105 = vmatprep.subr.bf16.mxu0 0
      %4106 = vmatpush1.bf16.msra.mxu0 0
      %4107 = vmatprep.subr.bf16.mxu0 0
      %4108 = vmatpush1.bf16.msra.mxu0 0
      %4109 = vmatprep.subr.bf16.mxu0 0
      %4110 = vmatpush1.bf16.msra.mxu0 0
      %4111 = vmatprep.subr.bf16.mxu0 0
      %4112 = vmatpush1.bf16.msra.mxu0 0
      %4113 = vmatprep.subr.bf16.mxu0 0
      %4114 = vmatpush1.bf16.msra.mxu0 0
      %4115 = vmatprep.subr.bf16.mxu0 0
      %4116 = vmatpush1.bf16.msra.mxu0 0
      %4117 = vmatprep.subr.bf16.mxu0 0
      %4118 = vmatpush1.bf16.msra.mxu0 %v4101
      %4119 = vmatprep.subr.bf16.mxu0 0
      %4120 = vmatpush2.bf16.msra.mxu0 0
      %4121 = vmatprep.subr.bf16.mxu0 0
      %4122 = vmatpush2.bf16.msra.mxu0 0
      %4123 = vmatprep.subr.bf16.mxu0 0
      %4124 = vmatpush2.bf16.msra.mxu0 0
      %4125 = vmatprep.subr.bf16.mxu0 0
      %4126 = vmatpush2.bf16.msra.mxu0 0
      %4127 = vmatprep.subr.bf16.mxu0 0
      %4128 = vmatpush2.bf16.msra.mxu0 0
      %4129 = vmatprep.subr.bf16.mxu0 0
      %4130 = vmatpush2.bf16.msra.mxu0 0
      %4131 = vmatprep.subr.bf16.mxu0 0
      %4132 = vmatpush2.bf16.msra.mxu0 0
      %4133 = vmatprep.subr.bf16.mxu0 0
      %4134 = vmatpush2.bf16.msra.mxu0 0
      %4135 = vmatprep.mubr.bf16.mxu0 0
      %4136 = vmatmul.mubr.bf16.gmra.mxu0 %v3474
      %v4137 = vpop.f32.mrf.mxu0
      %v4138 = vadd.f32 0.0, %v4137
      %v4139 = vpop.f32.mrf.mxu0
      %v4140 = vpop.f32.mrf.mxu0
      %v4141 = vadd.f32 0.0, %v4140
      %v4142 = vpop.f32.mrf.mxu0
      %4143 = vmatprep.mubr.bf16.mxu0 0
      %4144 = vmatmul.mubr.bf16.gmra.mxu0 %v3477
      %v4145 = vpop.f32.mrf.mxu0
      %v4146 = vadd.f32 0.0, %v4145
      %v4147 = vpop.f32.mrf.mxu0
      %v4148 = vpop.f32.mrf.mxu0
      %v4149 = vadd.f32 0.0, %v4148
      %v4150 = vpop.f32.mrf.mxu0
      %4151 = vmatprep.mubr.bf16.mxu0 0
      %4152 = vmatmul.mubr.bf16.gmra.mxu0 %v3480
      %v4153 = vpop.f32.mrf.mxu0
      %v4154 = vadd.f32 0.0, %v4153
      %v4155 = vpop.f32.mrf.mxu0
      %v4156 = vpop.f32.mrf.mxu0
      %v4157 = vadd.f32 0.0, %v4156
      %v4158 = vpop.f32.mrf.mxu0
      %4159 = vmatprep.mubr.bf16.mxu0 0
      %4160 = vmatmul.mubr.bf16.gmra.mxu0 %v3483
      %v4161 = vpop.f32.mrf.mxu0
      %v4162 = vadd.f32 0.0, %v4161
      %v4163 = vpop.f32.mrf.mxu0
      %v4164 = vpop.f32.mrf.mxu0
      %v4165 = vadd.f32 0.0, %v4164
      %v4166 = vpop.f32.mrf.mxu0
      %4167 = vmatprep.mubr.bf16.mxu0 0
      %4168 = vmatmul.mubr.bf16.gmra.mxu0 %v3486
      %v4169 = vpop.f32.mrf.mxu0
      %v4170 = vadd.f32 0.0, %v4169
      %v4171 = vpop.f32.mrf.mxu0
      %v4172 = vpop.f32.mrf.mxu0
      %v4173 = vadd.f32 0.0, %v4172
      %v4174 = vpop.f32.mrf.mxu0
      %4175 = vmatprep.mubr.bf16.mxu0 0
      %4176 = vmatmul.mubr.bf16.gmra.mxu0 %v3489
      %v4177 = vpop.f32.mrf.mxu0
      %v4178 = vadd.f32 0.0, %v4177
      %v4179 = vpop.f32.mrf.mxu0
      %v4180 = vpop.f32.mrf.mxu0
      %v4181 = vadd.f32 0.0, %v4180
      %v4182 = vpop.f32.mrf.mxu0
      %4183 = vmatprep.mubr.bf16.mxu0 0
      %4184 = vmatmul.mubr.bf16.gmra.mxu0 %v3736
      %v4185 = vpop.f32.mrf.mxu0
      %v4186 = vadd.f32 0.0, %v4185
      %v4187 = vpop.f32.mrf.mxu0
      %v4188 = vpop.f32.mrf.mxu0
      %v4189 = vadd.f32 0.0, %v4188
      %v4190 = vpop.f32.mrf.mxu0
      %4191 = vmatprep.mubr.bf16.mxu0 0
      %4192 = vmatmul.mubr.bf16.gmra.mxu0 %v4098
      %v4193 = vpop.f32.mrf.mxu0
      %v4194 = vadd.f32 0.0, %v4193
      %v4195 = vpop.f32.mrf.mxu0
      %v4196 = vpop.f32.mrf.mxu0
      %v4197 = vadd.f32 0.0, %v4196
      %v4198 = vpop.f32.mrf.mxu0
      %4199 = vdwg.mxu0
      %v4200 = vadd.f32 %v4079, %v4138
      %v4201 = vadd.f32 %v4080, %v4141
      %v4202 = vadd.f32 %v4081, %v4146
      %v4203 = vadd.f32 %v4082, %v4149
      %v4204 = vadd.f32 %v4083, %v4154
      %v4205 = vadd.f32 %v4084, %v4157
      %v4206 = vadd.f32 %v4085, %v4162
      %v4207 = vadd.f32 %v4086, %v4165
      %v4208 = vadd.f32 %v4087, %v4170
      %v4209 = vadd.f32 %v4088, %v4173
      %v4210 = vadd.f32 %v4089, %v4178
      %v4211 = vadd.f32 %v4090, %v4181
      %v4212 = vadd.f32 %v4091, %v4186
      %v4213 = vadd.f32 %v4092, %v4189
      %v4214 = vadd.f32 %v4093, %v4194
      %v4215 = vadd.f32 %v4094, %v4197
      %s4216 = scalar_lea.vmem %s3, 28
      %v4217 = vld [vmem:[%s4216] sm:$0xf]
      %v4218 = vsel %vm561, %v3211, 0
      %v4221 = vsel %vm592, %v4217, 0
      %4223 = vmatprep.subr.bf16.mxu0 0
      %4224 = vmatpush1.bf16.msra.mxu0 0
      %4225 = vmatprep.subr.bf16.mxu0 0
      %4226 = vmatpush1.bf16.msra.mxu0 0
      %4227 = vmatprep.subr.bf16.mxu0 0
      %4228 = vmatpush1.bf16.msra.mxu0 0
      %4229 = vmatprep.subr.bf16.mxu0 0
      %4230 = vmatpush1.bf16.msra.mxu0 0
      %4231 = vmatprep.subr.bf16.mxu0 0
      %4232 = vmatpush1.bf16.msra.mxu0 0
      %4233 = vmatprep.subr.bf16.mxu0 0
      %4234 = vmatpush1.bf16.msra.mxu0 0
      %4235 = vmatprep.subr.bf16.mxu0 0
      %4236 = vmatpush1.bf16.msra.mxu0 0
      %4237 = vmatprep.subr.bf16.mxu0 0
      %4238 = vmatpush1.bf16.msra.mxu0 %v4221
      %4239 = vmatprep.subr.bf16.mxu0 0
      %4240 = vmatpush2.bf16.msra.mxu0 0
      %4241 = vmatprep.subr.bf16.mxu0 0
      %4242 = vmatpush2.bf16.msra.mxu0 0
      %4243 = vmatprep.subr.bf16.mxu0 0
      %4244 = vmatpush2.bf16.msra.mxu0 0
      %4245 = vmatprep.subr.bf16.mxu0 0
      %4246 = vmatpush2.bf16.msra.mxu0 0
      %4247 = vmatprep.subr.bf16.mxu0 0
      %4248 = vmatpush2.bf16.msra.mxu0 0
      %4249 = vmatprep.subr.bf16.mxu0 0
      %4250 = vmatpush2.bf16.msra.mxu0 0
      %4251 = vmatprep.subr.bf16.mxu0 0
      %4252 = vmatpush2.bf16.msra.mxu0 0
      %4253 = vmatprep.subr.bf16.mxu0 0
      %4254 = vmatpush2.bf16.msra.mxu0 0
      %4255 = vmatprep.mubr.bf16.mxu0 0
      %4256 = vmatmul.mubr.bf16.gmra.mxu0 %v3355
      %v4257 = vpop.f32.mrf.mxu0
      %v4258 = vadd.f32 0.0, %v4257
      %v4259 = vpop.f32.mrf.mxu0
      %v4260 = vpop.f32.mrf.mxu0
      %v4261 = vadd.f32 0.0, %v4260
      %v4262 = vpop.f32.mrf.mxu0
      %4263 = vmatprep.mubr.bf16.mxu0 0
      %4264 = vmatmul.mubr.bf16.gmra.mxu0 %v3357
      %v4265 = vpop.f32.mrf.mxu0
      %v4266 = vadd.f32 0.0, %v4265
      %v4267 = vpop.f32.mrf.mxu0
      %v4268 = vpop.f32.mrf.mxu0
      %v4269 = vadd.f32 0.0, %v4268
      %v4270 = vpop.f32.mrf.mxu0
      %4271 = vmatprep.mubr.bf16.mxu0 0
      %4272 = vmatmul.mubr.bf16.gmra.mxu0 %v3359
      %v4273 = vpop.f32.mrf.mxu0
      %v4274 = vadd.f32 0.0, %v4273
      %v4275 = vpop.f32.mrf.mxu0
      %v4276 = vpop.f32.mrf.mxu0
      %v4277 = vadd.f32 0.0, %v4276
      %v4278 = vpop.f32.mrf.mxu0
      %4279 = vmatprep.mubr.bf16.mxu0 0
      %4280 = vmatmul.mubr.bf16.gmra.mxu0 %v3361
      %v4281 = vpop.f32.mrf.mxu0
      %v4282 = vadd.f32 0.0, %v4281
      %v4283 = vpop.f32.mrf.mxu0
      %v4284 = vpop.f32.mrf.mxu0
      %v4285 = vadd.f32 0.0, %v4284
      %v4286 = vpop.f32.mrf.mxu0
      %4287 = vmatprep.mubr.bf16.mxu0 0
      %4288 = vmatmul.mubr.bf16.gmra.mxu0 %v3363
      %v4289 = vpop.f32.mrf.mxu0
      %v4290 = vadd.f32 0.0, %v4289
      %v4291 = vpop.f32.mrf.mxu0
      %v4292 = vpop.f32.mrf.mxu0
      %v4293 = vadd.f32 0.0, %v4292
      %v4294 = vpop.f32.mrf.mxu0
      %4295 = vmatprep.mubr.bf16.mxu0 0
      %4296 = vmatmul.mubr.bf16.gmra.mxu0 %v3365
      %v4297 = vpop.f32.mrf.mxu0
      %v4298 = vadd.f32 0.0, %v4297
      %v4299 = vpop.f32.mrf.mxu0
      %v4300 = vpop.f32.mrf.mxu0
      %v4301 = vadd.f32 0.0, %v4300
      %v4302 = vpop.f32.mrf.mxu0
      %4303 = vmatprep.mubr.bf16.mxu0 0
      %4304 = vmatmul.mubr.bf16.gmra.mxu0 %v3856
      %v4305 = vpop.f32.mrf.mxu0
      %v4306 = vadd.f32 0.0, %v4305
      %v4307 = vpop.f32.mrf.mxu0
      %v4308 = vpop.f32.mrf.mxu0
      %v4309 = vadd.f32 0.0, %v4308
      %v4310 = vpop.f32.mrf.mxu0
      %4311 = vmatprep.mubr.bf16.mxu0 0
      %4312 = vmatmul.mubr.bf16.gmra.mxu0 %v4218
      %v4313 = vpop.f32.mrf.mxu0
      %v4314 = vadd.f32 0.0, %v4313
      %v4315 = vpop.f32.mrf.mxu0
      %v4316 = vpop.f32.mrf.mxu0
      %v4317 = vadd.f32 0.0, %v4316
      %v4318 = vpop.f32.mrf.mxu0
      %4319 = vdwg.mxu0
      %v4320 = vadd.f32 %v4200, %v4258
      %v4321 = vadd.f32 %v4201, %v4261
      %v4322 = vadd.f32 %v4202, %v4266
      %v4323 = vadd.f32 %v4203, %v4269
      %v4324 = vadd.f32 %v4204, %v4274
      %v4325 = vadd.f32 %v4205, %v4277
      %v4326 = vadd.f32 %v4206, %v4282
      %v4327 = vadd.f32 %v4207, %v4285
      %v4328 = vadd.f32 %v4208, %v4290
      %v4329 = vadd.f32 %v4209, %v4293
      %v4330 = vadd.f32 %v4210, %v4298
      %v4331 = vadd.f32 %v4211, %v4301
      %v4332 = vadd.f32 %v4212, %v4306
      %v4333 = vadd.f32 %v4213, %v4309
      %v4334 = vadd.f32 %v4214, %v4314
      %v4335 = vadd.f32 %v4215, %v4317
      %s4336 = scalar_lea.vmem %s3, 32
      %v4337 = vld [vmem:[%s4336] sm:$0xf]
      %v4339 = vsel %vm561, %v3347, 0
      %v4342 = vsel %vm592, %v4337, 0
      %4344 = vmatprep.subr.bf16.mxu0 0
      %4345 = vmatpush1.bf16.msra.mxu0 0
      %4346 = vmatprep.subr.bf16.mxu0 0
      %4347 = vmatpush1.bf16.msra.mxu0 0
      %4348 = vmatprep.subr.bf16.mxu0 0
      %4349 = vmatpush1.bf16.msra.mxu0 0
      %4350 = vmatprep.subr.bf16.mxu0 0
      %4351 = vmatpush1.bf16.msra.mxu0 0
      %4352 = vmatprep.subr.bf16.mxu0 0
      %4353 = vmatpush1.bf16.msra.mxu0 0
      %4354 = vmatprep.subr.bf16.mxu0 0
      %4355 = vmatpush1.bf16.msra.mxu0 0
      %4356 = vmatprep.subr.bf16.mxu0 0
      %4357 = vmatpush1.bf16.msra.mxu0 0
      %4358 = vmatprep.subr.bf16.mxu0 0
      %4359 = vmatpush1.bf16.msra.mxu0 %v4342
      %4360 = vmatprep.subr.bf16.mxu0 0
      %4361 = vmatpush2.bf16.msra.mxu0 0
      %4362 = vmatprep.subr.bf16.mxu0 0
      %4363 = vmatpush2.bf16.msra.mxu0 0
      %4364 = vmatprep.subr.bf16.mxu0 0
      %4365 = vmatpush2.bf16.msra.mxu0 0
      %4366 = vmatprep.subr.bf16.mxu0 0
      %4367 = vmatpush2.bf16.msra.mxu0 0
      %4368 = vmatprep.subr.bf16.mxu0 0
      %4369 = vmatpush2.bf16.msra.mxu0 0
      %4370 = vmatprep.subr.bf16.mxu0 0
      %4371 = vmatpush2.bf16.msra.mxu0 0
      %4372 = vmatprep.subr.bf16.mxu0 0
      %4373 = vmatpush2.bf16.msra.mxu0 0
      %4374 = vmatprep.subr.bf16.mxu0 0
      %4375 = vmatpush2.bf16.msra.mxu0 0
      %4376 = vmatprep.mubr.bf16.mxu0 0
      %4377 = vmatmul.mubr.bf16.gmra.mxu0 %v3600
      %v4378 = vpop.f32.mrf.mxu0
      %v4379 = vadd.f32 0.0, %v4378
      %v4380 = vpop.f32.mrf.mxu0
      %v4381 = vpop.f32.mrf.mxu0
      %v4382 = vadd.f32 0.0, %v4381
      %v4383 = vpop.f32.mrf.mxu0
      %4384 = vmatprep.mubr.bf16.mxu0 0
      %4385 = vmatmul.mubr.bf16.gmra.mxu0 %v3603
      %v4386 = vpop.f32.mrf.mxu0
      %v4387 = vadd.f32 0.0, %v4386
      %v4388 = vpop.f32.mrf.mxu0
      %v4389 = vpop.f32.mrf.mxu0
      %v4390 = vadd.f32 0.0, %v4389
      %v4391 = vpop.f32.mrf.mxu0
      %4392 = vmatprep.mubr.bf16.mxu0 0
      %4393 = vmatmul.mubr.bf16.gmra.mxu0 %v3606
      %v4394 = vpop.f32.mrf.mxu0
      %v4395 = vadd.f32 0.0, %v4394
      %v4396 = vpop.f32.mrf.mxu0
      %v4397 = vpop.f32.mrf.mxu0
      %v4398 = vadd.f32 0.0, %v4397
      %v4399 = vpop.f32.mrf.mxu0
      %4400 = vmatprep.mubr.bf16.mxu0 0
      %4401 = vmatmul.mubr.bf16.gmra.mxu0 %v3609
      %v4402 = vpop.f32.mrf.mxu0
      %v4403 = vadd.f32 0.0, %v4402
      %v4404 = vpop.f32.mrf.mxu0
      %v4405 = vpop.f32.mrf.mxu0
      %v4406 = vadd.f32 0.0, %v4405
      %v4407 = vpop.f32.mrf.mxu0
      %4408 = vmatprep.mubr.bf16.mxu0 0
      %4409 = vmatmul.mubr.bf16.gmra.mxu0 %v3612
      %v4410 = vpop.f32.mrf.mxu0
      %v4411 = vadd.f32 0.0, %v4410
      %v4412 = vpop.f32.mrf.mxu0
      %v4413 = vpop.f32.mrf.mxu0
      %v4414 = vadd.f32 0.0, %v4413
      %v4415 = vpop.f32.mrf.mxu0
      %4416 = vmatprep.mubr.bf16.mxu0 0
      %4417 = vmatmul.mubr.bf16.gmra.mxu0 %v3615
      %v4418 = vpop.f32.mrf.mxu0
      %v4419 = vadd.f32 0.0, %v4418
      %v4420 = vpop.f32.mrf.mxu0
      %v4421 = vpop.f32.mrf.mxu0
      %v4422 = vadd.f32 0.0, %v4421
      %v4423 = vpop.f32.mrf.mxu0
      %4424 = vmatprep.mubr.bf16.mxu0 0
      %4425 = vmatmul.mubr.bf16.gmra.mxu0 %v3977
      %v4426 = vpop.f32.mrf.mxu0
      %v4427 = vadd.f32 0.0, %v4426
      %v4428 = vpop.f32.mrf.mxu0
      %v4429 = vpop.f32.mrf.mxu0
      %v4430 = vadd.f32 0.0, %v4429
      %v4431 = vpop.f32.mrf.mxu0
      %4432 = vmatprep.mubr.bf16.mxu0 0
      %4433 = vmatmul.mubr.bf16.gmra.mxu0 %v4339
      %v4434 = vpop.f32.mrf.mxu0
      %v4435 = vadd.f32 0.0, %v4434
      %v4436 = vpop.f32.mrf.mxu0
      %v4437 = vpop.f32.mrf.mxu0
      %v4438 = vadd.f32 0.0, %v4437
      %v4439 = vpop.f32.mrf.mxu0
      %4440 = vdwg.mxu0
      %v4441 = vadd.f32 %v4320, %v4379
      %v4442 = vadd.f32 %v4321, %v4382
      %v4443 = vadd.f32 %v4322, %v4387
      %v4444 = vadd.f32 %v4323, %v4390
      %v4445 = vadd.f32 %v4324, %v4395
      %v4446 = vadd.f32 %v4325, %v4398
      %v4447 = vadd.f32 %v4326, %v4403
      %v4448 = vadd.f32 %v4327, %v4406
      %v4449 = vadd.f32 %v4328, %v4411
      %v4450 = vadd.f32 %v4329, %v4414
      %v4451 = vadd.f32 %v4330, %v4419
      %v4452 = vadd.f32 %v4331, %v4422
      %v4453 = vadd.f32 %v4332, %v4427
      %v4454 = vadd.f32 %v4333, %v4430
      %v4455 = vadd.f32 %v4334, %v4435
      %v4456 = vadd.f32 %v4335, %v4438
      %v4457 = vld [vmem:[%s2157] sm:$0xf]
      %v4458 = vld [vmem:[%s2157 + $0x4] sm:$0xf]
      %v4459 = vld [vmem:[%s2157 + $0x8] sm:$0x1]
      %v4460 = vld [vmem:[%s2157 + $0xc] sm:$0xf]
      %v4461 = vld [vmem:[%s2157 + $0x10] sm:$0xf]
      %v4462 = vld [vmem:[%s2157 + $0x14] sm:$0x1]
      %v4463 = vld [vmem:[%s2157 + $0x18] sm:$0xf]
      %v4464 = vld [vmem:[%s2157 + $0x1c] sm:$0xf]
      %v4465 = vld [vmem:[%s2157 + $0x20] sm:$0x1]
      %v4466 = vld [vmem:[%s2157 + $0x24] sm:$0xf]
      %v4467 = vld [vmem:[%s2157 + $0x28] sm:$0xf]
      %v4468 = vld [vmem:[%s2157 + $0x2c] sm:$0x1]
      %v4469 = vld [vmem:[%s2157 + $0x30] sm:$0xf]
      %v4470 = vld [vmem:[%s2157 + $0x34] sm:$0xf]
      %v4471 = vld [vmem:[%s2157 + $0x38] sm:$0x1]
      %v4472 = vld [vmem:[%s2157 + $0x3c] sm:$0xf]
      %v4473 = vld [vmem:[%s2157 + $0x40] sm:$0xf]
      %v4474 = vld [vmem:[%s2157 + $0x44] sm:$0x1]
      %v4475 = vld [vmem:[%s2157 + $0x48] sm:$0xf]
      %v4476 = vld [vmem:[%s2157 + $0x4c] sm:$0xf]
      %v4477 = vld [vmem:[%s2157 + $0x50] sm:$0x1]
      %v4478 = vld [vmem:[%s2157 + $0x54] sm:$0xf]
      %v4479 = vld [vmem:[%s2157 + $0x58] sm:$0xf]
      %v4480 = vld [vmem:[%s2157 + $0x5c] sm:$0x1]
      %v4481 = vunpack.c.l.bf16 %v4457
      %v4482 = vunpack.c.l.bf16 %v4458
      %v4483 = vunpack.c.l.bf16 %v4459
      %v4484 = vunpack.c.l.bf16 %v4460
      %v4485 = vunpack.c.l.bf16 %v4461
      %v4486 = vunpack.c.l.bf16 %v4462
      %v4487 = vunpack.c.l.bf16 %v4463
      %v4488 = vunpack.c.l.bf16 %v4464
      %v4489 = vunpack.c.l.bf16 %v4465
      %v4490 = vunpack.c.l.bf16 %v4466
      %v4491 = vunpack.c.l.bf16 %v4467
      %v4492 = vunpack.c.l.bf16 %v4468
      %v4493 = vunpack.c.l.bf16 %v4469
      %v4494 = vunpack.c.l.bf16 %v4470
      %v4495 = vunpack.c.l.bf16 %v4471
      %v4496 = vunpack.c.l.bf16 %v4472
      %v4497 = vunpack.c.l.bf16 %v4473
      %v4498 = vunpack.c.l.bf16 %v4474
      %v4499 = vunpack.c.l.bf16 %v4475
      %v4500 = vunpack.c.l.bf16 %v4476
      %v4501 = vunpack.c.l.bf16 %v4477
      %v4502 = vunpack.c.l.bf16 %v4478
      %v4503 = vunpack.c.l.bf16 %v4479
      %v4504 = vunpack.c.l.bf16 %v4480
      %v4505 = vld [vmem:[%s4] sm:$0x1]
      %v4507 = vlaneseq
      %v4508 = vshrl.u32 %v4507, 7
      %v4509 = vsub.s32 0, %v4508
      %v4510 = vrot.slane %v4505, %v4509
      %v4512 = vadd.f32 %v4441, %v4510
      %v4513 = vadd.f32 %v4442, %v4510
      %v4514 = vadd.f32 %v4443, %v4510
      %v4515 = vadd.f32 %v4444, %v4510
      %v4516 = vadd.f32 %v4445, %v4510
      %v4517 = vadd.f32 %v4446, %v4510
      %v4518 = vadd.f32 %v4447, %v4510
      %v4519 = vadd.f32 %v4448, %v4510
      %v4520 = vadd.f32 %v4449, %v4510
      %v4521 = vadd.f32 %v4450, %v4510
      %v4522 = vadd.f32 %v4451, %v4510
      %v4523 = vadd.f32 %v4452, %v4510
      %v4524 = vadd.f32 %v4453, %v4510
      %v4525 = vadd.f32 %v4454, %v4510
      %v4526 = vadd.f32 %v4455, %v4510
      %v4527 = vadd.f32 %v4456, %v4510
      %vm4552 = vcmask 1046528
      %v4553 = vrot.slane %v4481, 1
      %v4554 = vrot.slane %v4482, 1
      %v4555 = vsel %vm4552, %v4553, %v4554
      %v4556 = vrot.slane %v4483, 1
      %v4557 = vsel %vm4552, %v4554, %v4556
      %v4558 = vrot.slane %v4484, 1
      %v4559 = vrot.slane %v4485, 1
      %v4560 = vsel %vm4552, %v4558, %v4559
      %v4561 = vrot.slane %v4486, 1
      %v4562 = vsel %vm4552, %v4559, %v4561
      %v4563 = vrot.slane %v4487, 1
      %v4564 = vrot.slane %v4488, 1
      %v4565 = vsel %vm4552, %v4563, %v4564
      %v4566 = vrot.slane %v4489, 1
      %v4567 = vsel %vm4552, %v4564, %v4566
      %v4568 = vrot.slane %v4490, 1
      %v4569 = vrot.slane %v4491, 1
      %v4570 = vsel %vm4552, %v4568, %v4569
      %v4571 = vrot.slane %v4492, 1
      %v4572 = vsel %vm4552, %v4569, %v4571
      %v4573 = vrot.slane %v4493, 1
      %v4574 = vrot.slane %v4494, 1
      %v4575 = vsel %vm4552, %v4573, %v4574
      %v4576 = vrot.slane %v4495, 1
      %v4577 = vsel %vm4552, %v4574, %v4576
      %v4578 = vrot.slane %v4496, 1
      %v4579 = vrot.slane %v4497, 1
      %v4580 = vsel %vm4552, %v4578, %v4579
      %v4581 = vrot.slane %v4498, 1
      %v4582 = vsel %vm4552, %v4579, %v4581
      %v4583 = vrot.slane %v4499, 1
      %v4584 = vrot.slane %v4500, 1
      %v4585 = vsel %vm4552, %v4583, %v4584
      %v4586 = vrot.slane %v4501, 1
      %v4587 = vsel %vm4552, %v4584, %v4586
      %v4588 = vrot.slane %v4502, 1
      %v4589 = vrot.slane %v4503, 1
      %v4590 = vsel %vm4552, %v4588, %v4589
      %v4591 = vrot.slane %v4504, 1
      %v4592 = vsel %vm4552, %v4589, %v4591
      %v4609 = vadd.f32 %v4512, %v4555
      %v4610 = vadd.f32 %v4513, %v4557
      %v4611 = vadd.f32 %v4514, %v4560
      %v4612 = vadd.f32 %v4515, %v4562
      %v4613 = vadd.f32 %v4516, %v4565
      %v4614 = vadd.f32 %v4517, %v4567
      %v4615 = vadd.f32 %v4518, %v4570
      %v4616 = vadd.f32 %v4519, %v4572
      %v4617 = vadd.f32 %v4520, %v4575
      %v4618 = vadd.f32 %v4521, %v4577
      %v4619 = vadd.f32 %v4522, %v4580
      %v4620 = vadd.f32 %v4523, %v4582
      %v4621 = vadd.f32 %v4524, %v4585
      %v4622 = vadd.f32 %v4525, %v4587
      %v4623 = vadd.f32 %v4526, %v4590
      %v4624 = vadd.f32 %v4527, %v4592
      %v4625 = vmax.f32 %v4609, 0.0
      %v4626 = vmax.f32 %v4610, 0.0
      %v4627 = vmax.f32 %v4611, 0.0
      %v4628 = vmax.f32 %v4612, 0.0
      %v4629 = vmax.f32 %v4613, 0.0
      %v4630 = vmax.f32 %v4614, 0.0
      %v4631 = vmax.f32 %v4615, 0.0
      %v4632 = vmax.f32 %v4616, 0.0
      %v4633 = vmax.f32 %v4617, 0.0
      %v4634 = vmax.f32 %v4618, 0.0
      %v4635 = vmax.f32 %v4619, 0.0
      %v4636 = vmax.f32 %v4620, 0.0
      %v4637 = vmax.f32 %v4621, 0.0
      %v4638 = vmax.f32 %v4622, 0.0
      %v4639 = vmax.f32 %v4623, 0.0
      %v4640 = vmax.f32 %v4624, 0.0
      %4641 = vst.msk [vmem:[%s248] sm:$0xff] %vm561, %v4625
      %4642 = vst.msk [vmem:[%s248 + $0x8] sm:$0xff] %vm561, %v4626
      %4643 = vst.msk [vmem:[%s248 + $0x10] sm:$0xff] %vm561, %v4627
      %4644 = vst.msk [vmem:[%s248 + $0x18] sm:$0xff] %vm561, %v4628
      %4645 = vst.msk [vmem:[%s248 + $0x20] sm:$0xff] %vm561, %v4629
      %4646 = vst.msk [vmem:[%s248 + $0x28] sm:$0xff] %vm561, %v4630
      %4647 = vst.msk [vmem:[%s248 + $0x30] sm:$0xff] %vm561, %v4631
      %4648 = vst.msk [vmem:[%s248 + $0x38] sm:$0xff] %vm561, %v4632
      %4649 = vst.msk [vmem:[%s248 + $0x40] sm:$0xff] %vm561, %v4633
      %4650 = vst.msk [vmem:[%s248 + $0x48] sm:$0xff] %vm561, %v4634
      %4651 = vst.msk [vmem:[%s248 + $0x50] sm:$0xff] %vm561, %v4635
      %4652 = vst.msk [vmem:[%s248 + $0x58] sm:$0xff] %vm561, %v4636
      %4653 = vst.msk [vmem:[%s248 + $0x60] sm:$0xff] %vm561, %v4637
      %4654 = vst.msk [vmem:[%s248 + $0x68] sm:$0xff] %vm561, %v4638
      %4655 = vst.msk [vmem:[%s248 + $0x70] sm:$0xff] %vm561, %v4639
      %4656 = vst.msk [vmem:[%s248 + $0x78] sm:$0xff] %vm561, %v4640
      %s4657 = smul.u32 8, %s21
      %p4658 = scmp.lt.s32.totalorder %s20, 1
      %s4659 = scalar_select %p4658, %s20, 1
      %p4660 = scmp.lt.s32.totalorder %s4657, 15
      %s4661 = scalar_select %p4660, %s4657, 15
      %s4662 = smul.addr %s4661, 2
      %s4663 = smul.addr %s4659, 32
      %s4664 = sadd.s32 %s4662, %s4663
      %s4665 = smul.addr %s4664, 8
      %s4666 = scalar_lea.vmem %s5, %s4665
      // Predicated region
      $region41: #{deep_basic_block.1} parent=39 // pred_check
        %p4667 = pneg %p158
      $region42: #{deep_basic_block.1} parent=39 // pred_check_branch
        %4669 = sbr.rel (%p4667) target = $region44
      $region43: #{deep_basic_block.1} parent=39 // pred_region
        %s4670 = smul.u32 8, %s21
      $region44: #{deep_basic_block.1} parent=39 // pred_fallthru
        _
    $region40: #{deep_basic_block.1} parent=5 // pred_fallthru
      _
    %p4671 = scmp.le.s32.totalorder 2, %s11
    // Predicated region
    $region45: #{deep_basic_block.1} parent=5 // pred_check
      %p4672 = pneg %p4671
    $region46: #{deep_basic_block.1} parent=5 // pred_check_branch
      %4674 = sbr.rel (%p4672) target = $region48
    $region47: #{deep_basic_block.1} parent=5 // pred_region
      %s4675 = ssub.s32 %s11, 2
      // Predicated region
      $region49: #{deep_basic_block.1} parent=47 // pred_check
        %p4676 = pneg %p164
      $region50: #{deep_basic_block.1} parent=47 // pred_check_branch
        %4678 = sbr.rel (%p4676) target = $region52
      $region51: #{deep_basic_block.1} parent=47 // pred_region
        %s4679 = smul.u32 8, %s23
        %p4680 = scmp.lt.s32.totalorder %s22, 1
        %s4681 = scalar_select %p4680, %s22, 1
        %p4682 = scmp.lt.s32.totalorder %s4679, 15
        %s4683 = scalar_select %p4682, %s4679, 15
        %s4684 = smul.addr %s4683, 2
        %s4685 = smul.addr %s4681, 32
        %s4686 = sadd.s32 %s4684, %s4685
        %s4687 = smul.addr %s4686, 8
        %s4688 = scalar_lea.vmem %s5, %s4687
      $region52: #{deep_basic_block.1} parent=47 // pred_fallthru
        _
    $region48: #{deep_basic_block.1} parent=5 // pred_fallthru
      _
  $region6: #{deep_basic_block.1} parent=0 // loop_footer
    %s15 = sadd.s32 1, %s11
  $region7: #{deep_basic_block.1} parent=0 // loop_footer_branch
    %10 = sbr.rel target = $region3
  $region8: #{deep_basic_block.1} parent=0 // loop_exit
    _

</llo_original>
